<compile_context>
chip_gen: v6e
topology: v6e:2x2x1
jax: 0.10.0
libtpu: 0.0.40
codegen_flags: <defaults>
</compile_context>

<pallas_src>
import math
from functools import partial

import jax
import jax.numpy as jnp
import numpy as np
from jax.experimental import pallas as pl
from jax.experimental.pallas import tpu as pltpu

# ----------------------------- model config ---------------------------------
D = 8                   # number of pts_linears
W = 128                 # hidden width (module default is 256; 128 kept small)
INPUT_CH = 3
INPUT_CH_VIEWS = 3
INPUT_CH_LIGHTS = 3
OUTPUT_CH = 4
SKIPS = (4,)
C_TOTAL = INPUT_CH + INPUT_CH_VIEWS + INPUT_CH_LIGHTS   # 9
PTS_PAD = 8             # pts features zero-padded to 8 lanes (sublane-friendly K)
OUT_PAD = 8             # output lanes padded to 8 (block dim == full array dim)

NUM_PTS_W = 1 + len(SKIPS)      # layer 0 + one per skip consumer
NUM_H_W = D - 1                 # layers 1..D-1 each consume one (W, W) weight
assert (D - 1) not in SKIPS     # output layer consumes plain h in this config


# ------------------------------- kernel -------------------------------------
def nerf_kernel(x_ref, wpts_ref, wh_ref, wout_ref, bh_ref, bout_ref, out_ref):
    """One batch tile of the full 9-layer MLP.  All matmuls are bf16 x bf16 on
    the MXU with f32 accumulation; bias add / ReLU stay in f32 on the VPU."""
    pts = x_ref[...]                                   # (TB, 8) bf16, lanes 3..7 zero
    h = None
    pi = 0                                             # index into stacked pts weights
    hi = 0                                             # index into stacked hidden weights
    for layer in range(D):
        b = bh_ref[layer:layer + 1, :]                 # (1, W) f32, static slice
        if layer == 0:
            z = jnp.dot(pts, wpts_ref[pi], preferred_element_type=jnp.float32)
            pi += 1
        elif (layer - 1) in SKIPS:
            # cat([pts, h]) @ w  ==  pts @ w_pts + h @ w_h  (weights split on host)
            z = (jnp.dot(pts, wpts_ref[pi], preferred_element_type=jnp.float32)
                 + jnp.dot(h, wh_ref[hi], preferred_element_type=jnp.float32))
            pi += 1
            hi += 1
        else:
            z = jnp.dot(h, wh_ref[hi], preferred_element_type=jnp.float32)
            hi += 1
        h = jnp.maximum(z + b, 0.0).astype(jnp.bfloat16)
    z = jnp.dot(h, wout_ref[...], preferred_element_type=jnp.float32) + bout_ref[...]
    out_ref[...] = z                                   # (TB, OUT_PAD) f32


# --------------------------- host-side param prep ----------------------------
def prepare_params(weights, biases):
    """Stack / split / pad / cast parameters once (call outside the hot loop).

    weights/biases are torch-layout lists: weights[i] is [in, out], biases[i]
    is [1, out].  Skip-layer weights are split into a zero-padded (8, W) pts
    part and a (W, W) h part so no sublane-crossing slice happens in-kernel."""
    w_pts, w_h, b_h = [], [], []
    for i in range(D):
        w = weights[i]
        if i == 0:
            w_pts.append(jnp.pad(w, ((0, PTS_PAD - INPUT_CH), (0, 0))))
        elif (i - 1) in SKIPS:
            w_pts.append(jnp.pad(w[:INPUT_CH], ((0, PTS_PAD - INPUT_CH), (0, 0))))
            w_h.append(w[INPUT_CH:])
        else:
            w_h.append(w)
        b_h.append(jnp.reshape(biases[i], (1, W)))
    w_out = jnp.pad(weights[D], ((0, 0), (0, OUT_PAD - OUTPUT_CH)))
    b_out = jnp.pad(jnp.reshape(biases[D], (1, OUTPUT_CH)),
                    ((0, 0), (0, OUT_PAD - OUTPUT_CH)))
    return {
        "w_pts": jnp.stack(w_pts).astype(jnp.bfloat16),            # (2, 8, W)
        "w_h": jnp.stack(w_h).astype(jnp.bfloat16),                # (7, W, W)
        "w_out": w_out.astype(jnp.bfloat16),                       # (W, OUT_PAD)
        "b_h": jnp.concatenate(b_h, axis=0).astype(jnp.float32),   # (D, W)
        "b_out": b_out.astype(jnp.float32),                        # (1, OUT_PAD)
    }


# ------------------------------ tile selection --------------------------------
def _round_up(v, m):
    return (v + m - 1) // m * m


def _pick_tb(n):
    # >=2 grid steps so both v7x TensorCores get work on the "parallel" axis;
    # tiles a multiple of 256 rows (bf16 sublane packing needs %16); cap 4096.
    return int(min(4096, _round_up(max(-(-n // 2), 256), 256)))


# ------------------------------- wrapper -------------------------------------
@partial(jax.jit, static_argnames=("tb",))
def nerf2_forward(x, params, *, tb=None):
    """x: (N, 9) f32 rows of [pts, dirs, lights]. params: prepare_params output."""
    N = x.shape[0]
    if tb is None:
        tb = _pick_tb(N)
    assert tb % 16 == 0
    n_pad = _round_up(N, tb)
    # Ship only the pts columns, zero-padded to 8 lanes / n_pad rows, as bf16.
    x_pts = jnp.pad(x[:, :INPUT_CH],
                    ((0, n_pad - N), (0, PTS_PAD - INPUT_CH))).astype(jnp.bfloat16)

    inv2 = lambda i: (0, 0)
    inv3 = lambda i: (0, 0, 0)
    out = pl.pallas_call(
        nerf_kernel,
        out_shape=jax.ShapeDtypeStruct((n_pad, OUT_PAD), jnp.float32),
        grid_spec=pltpu.PrefetchScalarGridSpec(
            num_scalar_prefetch=0,
            grid=(n_pad // tb,),
            in_specs=[
                pl.BlockSpec((tb, PTS_PAD), lambda i: (i, 0)),
                pl.BlockSpec((NUM_PTS_W, PTS_PAD, W), inv3),
                pl.BlockSpec((NUM_H_W, W, W), inv3),
                pl.BlockSpec((W, OUT_PAD), inv2),
                pl.BlockSpec((D, W), inv2),
                pl.BlockSpec((1, OUT_PAD), inv2),
            ],
            out_specs=pl.BlockSpec((tb, OUT_PAD), lambda i: (i, 0)),
        ),
        compiler_params=pltpu.CompilerParams(
            dimension_semantics=("parallel",),
            vmem_limit_bytes=32 * 1024 * 1024,
        ),
    )(x_pts, params["w_pts"], params["w_h"], params["w_out"],
      params["b_h"], params["b_out"])
    return out[:N, :OUTPUT_CH]


# --------------------------- parameter init ----------------------------------
def init_params(key):
    """Deterministic, PyTorch-Linear-style uniform(-1/sqrt(in), 1/sqrt(in)) init.
    Weights stored as [in, out] (transposed vs torch), unsplit / unpadded."""
    weights, biases = [], []
    layer_in = INPUT_CH
    for i in range(D):
        if i > 0:
            layer_in = W + INPUT_CH if (i - 1) in SKIPS else W
        key, kw, kb = jax.random.split(key, 3)
        bound = 1.0 / math.sqrt(layer_in)
        weights.append(jax.random.uniform(kw, (layer_in, W), jnp.float32, -bound, bound))
        biases.append(jax.random.uniform(kb, (1, W), jnp.float32, -bound, bound))
    out_in = W + INPUT_CH if (D - 1) in SKIPS else W
    key, kw, kb = jax.random.split(key, 3)
    bound = 1.0 / math.sqrt(out_in)
    weights.append(jax.random.uniform(kw, (out_in, OUTPUT_CH), jnp.float32, -bound, bound))
    biases.append(jax.random.uniform(kb, (1, OUTPUT_CH), jnp.float32, -bound, bound))
    return weights, biases


# ---------------------------- pure-JAX reference ------------------------------
def nerf2_ref(x, weights, biases):
    pts = x[:, :INPUT_CH]
    h = pts
    for i in range(D):
        h = jnp.maximum(h @ weights[i] + biases[i], 0.0)
        if i in SKIPS:
            h = jnp.concatenate([pts, h], axis=-1)
    return h @ weights[D] + biases[D]


# --------------------------------- main ---------------------------------------
if __name__ == "__main__":
    key = jax.random.PRNGKey(0)
    key, kx = jax.random.split(key)
    N = 1000                                    # not a tile multiple: exercises padding
    x = jax.random.normal(kx, (N, C_TOTAL), jnp.float32)

    weights, biases = init_params(key)
    params = prepare_params(weights, biases)    # one-time prep (pad/split/stack/bf16)

    out = nerf2_forward(x, params)              # tb auto-picked (>=2 grid steps)
    out = jax.block_until_ready(out)

    ref = jax.block_until_ready(nerf2_ref(x, weights, biases))
    assert out.shape == (N, OUTPUT_CH)
    # bf16 MXU inputs with f32 accumulation vs. a pure-f32 reference.
    assert np.allclose(np.asarray(out), np.asarray(ref), rtol=5e-2, atol=5e-2), (
        "mismatch vs reference")

    print("KERNEL_OK")
</pallas_src>

<mosaic_0001>
module attributes {stable_mosaic.version = 11 : i64} {
  func.func @nerf_kernel(%arg0: i32, %arg1: memref<512x8xbf16, #tpu.memory_space<vmem>>, %arg2: memref<2x8x128xbf16, #tpu.memory_space<vmem>>, %arg3: memref<7x128x128xbf16, #tpu.memory_space<vmem>>, %arg4: memref<128x8xbf16, #tpu.memory_space<vmem>>, %arg5: memref<8x128xf32, #tpu.memory_space<vmem>>, %arg6: memref<1x8xf32, #tpu.memory_space<vmem>>, %arg7: memref<512x8xf32, #tpu.memory_space<vmem>>) attributes {dimension_semantics = [#tpu.dimension_semantics<parallel>], iteration_bounds = array<i64: 2>, scalar_prefetch = 0 : i64, scratch_operands = 0 : i64, tpu.core_type = #tpu.core_type<tc>, window_params = [{transform_indices = @transform_0, window_bounds = array<i64: 512, 8>}, {pipeline_mode = #tpu.pipeline_mode<synchronous>, transform_indices = @transform_1, window_bounds = array<i64: 2, 8, 128>}, {pipeline_mode = #tpu.pipeline_mode<synchronous>, transform_indices = @transform_2, window_bounds = array<i64: 7, 128, 128>}, {pipeline_mode = #tpu.pipeline_mode<synchronous>, transform_indices = @transform_3, window_bounds = array<i64: 128, 8>}, {pipeline_mode = #tpu.pipeline_mode<synchronous>, transform_indices = @transform_4, window_bounds = array<i64: 8, 128>}, {pipeline_mode = #tpu.pipeline_mode<synchronous>, transform_indices = @transform_5, window_bounds = array<i64: 1, 8>}, {transform_indices = @transform_6, window_bounds = array<i64: 512, 8>}]} {
    %c0 = arith.constant 0 : index
    %c0_0 = arith.constant 0 : index
    %0 = vector.load %arg1[%c0, %c0_0] : memref<512x8xbf16, #tpu.memory_space<vmem>>, vector<512x8xbf16>
    %c0_1 = arith.constant 0 : index
    %c0_2 = arith.constant 0 : index
    %1 = vector.load %arg5[%c0_1, %c0_2] : memref<8x128xf32, #tpu.memory_space<vmem>>, vector<1x128xf32>
    %c0_3 = arith.constant 0 : index
    %c0_4 = arith.constant 0 : index
    %c0_5 = arith.constant 0 : index
    %2 = vector.load %arg2[%c0_3, %c0_4, %c0_5] : memref<2x8x128xbf16, #tpu.memory_space<vmem>>, vector<1x8x128xbf16>
    %3 = vector.shape_cast %2 : vector<1x8x128xbf16> to vector<8x128xbf16>
    %cst = arith.constant dense<0.000000e+00> : vector<512x128xf32>
    %4 = tpu.matmul %0, %3, %cst {dimension_numbers = #tpu.dot_dimension_numbers<[1], [0], [0], [1], [0, 0, 1, 1], [], []>} : vector<512x8xbf16>, vector<8x128xbf16>, vector<512x128xf32> -> vector<512x128xf32>
    %5 = vector.broadcast %1 : vector<1x128xf32> to vector<512x128xf32>
    %6 = arith.addf %4, %5 : vector<512x128xf32>
    %cst_6 = arith.constant 0.000000e+00 : f32
    %7 = vector.broadcast %cst_6 : f32 to vector<512x128xf32>
    %8 = arith.maximumf %6, %7 : vector<512x128xf32>
    %9 = arith.truncf %8 : vector<512x128xf32> to vector<512x128xbf16>
    %c1 = arith.constant 1 : index
    %c0_7 = arith.constant 0 : index
    %10 = vector.load %arg5[%c1, %c0_7] : memref<8x128xf32, #tpu.memory_space<vmem>>, vector<1x128xf32>
    %c0_8 = arith.constant 0 : index
    %c0_9 = arith.constant 0 : index
    %c0_10 = arith.constant 0 : index
    %11 = vector.load %arg3[%c0_8, %c0_9, %c0_10] : memref<7x128x128xbf16, #tpu.memory_space<vmem>>, vector<1x128x128xbf16>
    %12 = vector.shape_cast %11 : vector<1x128x128xbf16> to vector<128x128xbf16>
    %cst_11 = arith.constant dense<0.000000e+00> : vector<512x128xf32>
    %13 = tpu.matmul %9, %12, %cst_11 {dimension_numbers = #tpu.dot_dimension_numbers<[1], [0], [0], [1], [0, 0, 1, 1], [], []>} : vector<512x128xbf16>, vector<128x128xbf16>, vector<512x128xf32> -> vector<512x128xf32>
    %14 = vector.broadcast %10 : vector<1x128xf32> to vector<512x128xf32>
    %15 = arith.addf %13, %14 : vector<512x128xf32>
    %cst_12 = arith.constant 0.000000e+00 : f32
    %16 = vector.broadcast %cst_12 : f32 to vector<512x128xf32>
    %17 = arith.maximumf %15, %16 : vector<512x128xf32>
    %18 = arith.truncf %17 : vector<512x128xf32> to vector<512x128xbf16>
    %c2 = arith.constant 2 : index
    %c0_13 = arith.constant 0 : index
    %19 = vector.load %arg5[%c2, %c0_13] : memref<8x128xf32, #tpu.memory_space<vmem>>, vector<1x128xf32>
    %c1_14 = arith.constant 1 : index
    %c0_15 = arith.constant 0 : index
    %c0_16 = arith.constant 0 : index
    %20 = vector.load %arg3[%c1_14, %c0_15, %c0_16] : memref<7x128x128xbf16, #tpu.memory_space<vmem>>, vector<1x128x128xbf16>
    %21 = vector.shape_cast %20 : vector<1x128x128xbf16> to vector<128x128xbf16>
    %cst_17 = arith.constant dense<0.000000e+00> : vector<512x128xf32>
    %22 = tpu.matmul %18, %21, %cst_17 {dimension_numbers = #tpu.dot_dimension_numbers<[1], [0], [0], [1], [0, 0, 1, 1], [], []>} : vector<512x128xbf16>, vector<128x128xbf16>, vector<512x128xf32> -> vector<512x128xf32>
    %23 = vector.broadcast %19 : vector<1x128xf32> to vector<512x128xf32>
    %24 = arith.addf %22, %23 : vector<512x128xf32>
    %cst_18 = arith.constant 0.000000e+00 : f32
    %25 = vector.broadcast %cst_18 : f32 to vector<512x128xf32>
    %26 = arith.maximumf %24, %25 : vector<512x128xf32>
    %27 = arith.truncf %26 : vector<512x128xf32> to vector<512x128xbf16>
    %c3 = arith.constant 3 : index
    %c0_19 = arith.constant 0 : index
    %28 = vector.load %arg5[%c3, %c0_19] : memref<8x128xf32, #tpu.memory_space<vmem>>, vector<1x128xf32>
    %c2_20 = arith.constant 2 : index
    %c0_21 = arith.constant 0 : index
    %c0_22 = arith.constant 0 : index
    %29 = vector.load %arg3[%c2_20, %c0_21, %c0_22] : memref<7x128x128xbf16, #tpu.memory_space<vmem>>, vector<1x128x128xbf16>
    %30 = vector.shape_cast %29 : vector<1x128x128xbf16> to vector<128x128xbf16>
    %cst_23 = arith.constant dense<0.000000e+00> : vector<512x128xf32>
    %31 = tpu.matmul %27, %30, %cst_23 {dimension_numbers = #tpu.dot_dimension_numbers<[1], [0], [0], [1], [0, 0, 1, 1], [], []>} : vector<512x128xbf16>, vector<128x128xbf16>, vector<512x128xf32> -> vector<512x128xf32>
    %32 = vector.broadcast %28 : vector<1x128xf32> to vector<512x128xf32>
    %33 = arith.addf %31, %32 : vector<512x128xf32>
    %cst_24 = arith.constant 0.000000e+00 : f32
    %34 = vector.broadcast %cst_24 : f32 to vector<512x128xf32>
    %35 = arith.maximumf %33, %34 : vector<512x128xf32>
    %36 = arith.truncf %35 : vector<512x128xf32> to vector<512x128xbf16>
    %c4 = arith.constant 4 : index
    %c0_25 = arith.constant 0 : index
    %37 = vector.load %arg5[%c4, %c0_25] : memref<8x128xf32, #tpu.memory_space<vmem>>, vector<1x128xf32>
    %c3_26 = arith.constant 3 : index
    %c0_27 = arith.constant 0 : index
    %c0_28 = arith.constant 0 : index
    %38 = vector.load %arg3[%c3_26, %c0_27, %c0_28] : memref<7x128x128xbf16, #tpu.memory_space<vmem>>, vector<1x128x128xbf16>
    %39 = vector.shape_cast %38 : vector<1x128x128xbf16> to vector<128x128xbf16>
    %cst_29 = arith.constant dense<0.000000e+00> : vector<512x128xf32>
    %40 = tpu.matmul %36, %39, %cst_29 {dimension_numbers = #tpu.dot_dimension_numbers<[1], [0], [0], [1], [0, 0, 1, 1], [], []>} : vector<512x128xbf16>, vector<128x128xbf16>, vector<512x128xf32> -> vector<512x128xf32>
    %41 = vector.broadcast %37 : vector<1x128xf32> to vector<512x128xf32>
    %42 = arith.addf %40, %41 : vector<512x128xf32>
    %cst_30 = arith.constant 0.000000e+00 : f32
    %43 = vector.broadcast %cst_30 : f32 to vector<512x128xf32>
    %44 = arith.maximumf %42, %43 : vector<512x128xf32>
    %45 = arith.truncf %44 : vector<512x128xf32> to vector<512x128xbf16>
    %c5 = arith.constant 5 : index
    %c0_31 = arith.constant 0 : index
    %46 = vector.load %arg5[%c5, %c0_31] : memref<8x128xf32, #tpu.memory_space<vmem>>, vector<1x128xf32>
    %c1_32 = arith.constant 1 : index
    %c0_33 = arith.constant 0 : index
    %c0_34 = arith.constant 0 : index
    %47 = vector.load %arg2[%c1_32, %c0_33, %c0_34] : memref<2x8x128xbf16, #tpu.memory_space<vmem>>, vector<1x8x128xbf16>
    %48 = vector.shape_cast %47 : vector<1x8x128xbf16> to vector<8x128xbf16>
    %cst_35 = arith.constant dense<0.000000e+00> : vector<512x128xf32>
    %49 = tpu.matmul %0, %48, %cst_35 {dimension_numbers = #tpu.dot_dimension_numbers<[1], [0], [0], [1], [0, 0, 1, 1], [], []>} : vector<512x8xbf16>, vector<8x128xbf16>, vector<512x128xf32> -> vector<512x128xf32>
    %c4_36 = arith.constant 4 : index
    %c0_37 = arith.constant 0 : index
    %c0_38 = arith.constant 0 : index
    %50 = vector.load %arg3[%c4_36, %c0_37, %c0_38] : memref<7x128x128xbf16, #tpu.memory_space<vmem>>, vector<1x128x128xbf16>
    %51 = vector.shape_cast %50 : vector<1x128x128xbf16> to vector<128x128xbf16>
    %cst_39 = arith.constant dense<0.000000e+00> : vector<512x128xf32>
    %52 = tpu.matmul %45, %51, %cst_39 {dimension_numbers = #tpu.dot_dimension_numbers<[1], [0], [0], [1], [0, 0, 1, 1], [], []>} : vector<512x128xbf16>, vector<128x128xbf16>, vector<512x128xf32> -> vector<512x128xf32>
    %53 = arith.addf %49, %52 : vector<512x128xf32>
    %54 = vector.broadcast %46 : vector<1x128xf32> to vector<512x128xf32>
    %55 = arith.addf %53, %54 : vector<512x128xf32>
    %cst_40 = arith.constant 0.000000e+00 : f32
    %56 = vector.broadcast %cst_40 : f32 to vector<512x128xf32>
    %57 = arith.maximumf %55, %56 : vector<512x128xf32>
    %58 = arith.truncf %57 : vector<512x128xf32> to vector<512x128xbf16>
    %c6 = arith.constant 6 : index
    %c0_41 = arith.constant 0 : index
    %59 = vector.load %arg5[%c6, %c0_41] : memref<8x128xf32, #tpu.memory_space<vmem>>, vector<1x128xf32>
    %c5_42 = arith.constant 5 : index
    %c0_43 = arith.constant 0 : index
    %c0_44 = arith.constant 0 : index
    %60 = vector.load %arg3[%c5_42, %c0_43, %c0_44] : memref<7x128x128xbf16, #tpu.memory_space<vmem>>, vector<1x128x128xbf16>
    %61 = vector.shape_cast %60 : vector<1x128x128xbf16> to vector<128x128xbf16>
    %cst_45 = arith.constant dense<0.000000e+00> : vector<512x128xf32>
    %62 = tpu.matmul %58, %61, %cst_45 {dimension_numbers = #tpu.dot_dimension_numbers<[1], [0], [0], [1], [0, 0, 1, 1], [], []>} : vector<512x128xbf16>, vector<128x128xbf16>, vector<512x128xf32> -> vector<512x128xf32>
    %63 = vector.broadcast %59 : vector<1x128xf32> to vector<512x128xf32>
    %64 = arith.addf %62, %63 : vector<512x128xf32>
    %cst_46 = arith.constant 0.000000e+00 : f32
    %65 = vector.broadcast %cst_46 : f32 to vector<512x128xf32>
    %66 = arith.maximumf %64, %65 : vector<512x128xf32>
    %67 = arith.truncf %66 : vector<512x128xf32> to vector<512x128xbf16>
    %c7 = arith.constant 7 : index
    %c0_47 = arith.constant 0 : index
    %68 = vector.load %arg5[%c7, %c0_47] : memref<8x128xf32, #tpu.memory_space<vmem>>, vector<1x128xf32>
    %c6_48 = arith.constant 6 : index
    %c0_49 = arith.constant 0 : index
    %c0_50 = arith.constant 0 : index
    %69 = vector.load %arg3[%c6_48, %c0_49, %c0_50] : memref<7x128x128xbf16, #tpu.memory_space<vmem>>, vector<1x128x128xbf16>
    %70 = vector.shape_cast %69 : vector<1x128x128xbf16> to vector<128x128xbf16>
    %cst_51 = arith.constant dense<0.000000e+00> : vector<512x128xf32>
    %71 = tpu.matmul %67, %70, %cst_51 {dimension_numbers = #tpu.dot_dimension_numbers<[1], [0], [0], [1], [0, 0, 1, 1], [], []>} : vector<512x128xbf16>, vector<128x128xbf16>, vector<512x128xf32> -> vector<512x128xf32>
    %72 = vector.broadcast %68 : vector<1x128xf32> to vector<512x128xf32>
    %73 = arith.addf %71, %72 : vector<512x128xf32>
    %cst_52 = arith.constant 0.000000e+00 : f32
    %74 = vector.broadcast %cst_52 : f32 to vector<512x128xf32>
    %75 = arith.maximumf %73, %74 : vector<512x128xf32>
    %76 = arith.truncf %75 : vector<512x128xf32> to vector<512x128xbf16>
    %c0_53 = arith.constant 0 : index
    %c0_54 = arith.constant 0 : index
    %77 = vector.load %arg4[%c0_53, %c0_54] : memref<128x8xbf16, #tpu.memory_space<vmem>>, vector<128x8xbf16>
    %cst_55 = arith.constant dense<0.000000e+00> : vector<512x8xf32>
    %78 = tpu.matmul %76, %77, %cst_55 {dimension_numbers = #tpu.dot_dimension_numbers<[1], [0], [0], [1], [0, 0, 1, 1], [], []>} : vector<512x128xbf16>, vector<128x8xbf16>, vector<512x8xf32> -> vector<512x8xf32>
    %c0_56 = arith.constant 0 : index
    %c0_57 = arith.constant 0 : index
    %79 = vector.load %arg6[%c0_56, %c0_57] : memref<1x8xf32, #tpu.memory_space<vmem>>, vector<1x8xf32>
    %80 = vector.broadcast %79 : vector<1x8xf32> to vector<512x8xf32>
    %81 = arith.addf %78, %80 : vector<512x8xf32>
    %c0_58 = arith.constant 0 : index
    %c0_59 = arith.constant 0 : index
    %82 = vector.load %arg7[%c0_58, %c0_59] : memref<512x8xf32, #tpu.memory_space<vmem>>, vector<512x8xf32>
    tpu.vector_store %arg7[%c0_58, %c0_59], %81 {strides = array<i32>} : memref<512x8xf32, #tpu.memory_space<vmem>>, vector<512x8xf32>,
    return
  }
  func.func @transform_0(%arg0: i32) -> (i32, i32) {
    %c0_i32 = arith.constant 0 : i32
    %c0_i32_0 = arith.constant 0 : i32
    return %arg0, %c0_i32 : i32, i32
  }
  func.func @transform_1(%arg0: i32) -> (i32, i32, i32) {
    %c0_i32 = arith.constant 0 : i32
    %c0_i32_0 = arith.constant 0 : i32
    %c0_i32_1 = arith.constant 0 : i32
    %c0_i32_2 = arith.constant 0 : i32
    return %c0_i32, %c0_i32_0, %c0_i32_1 : i32, i32, i32
  }
  func.func @transform_2(%arg0: i32) -> (i32, i32, i32) {
    %c0_i32 = arith.constant 0 : i32
    %c0_i32_0 = arith.constant 0 : i32
    %c0_i32_1 = arith.constant 0 : i32
    %c0_i32_2 = arith.constant 0 : i32
    return %c0_i32, %c0_i32_0, %c0_i32_1 : i32, i32, i32
  }
  func.func @transform_3(%arg0: i32) -> (i32, i32) {
    %c0_i32 = arith.constant 0 : i32
    %c0_i32_0 = arith.constant 0 : i32
    %c0_i32_1 = arith.constant 0 : i32
    return %c0_i32, %c0_i32_0 : i32, i32
  }
  func.func @transform_4(%arg0: i32) -> (i32, i32) {
    %c0_i32 = arith.constant 0 : i32
    %c0_i32_0 = arith.constant 0 : i32
    %c0_i32_1 = arith.constant 0 : i32
    return %c0_i32, %c0_i32_0 : i32, i32
  }
  func.func @transform_5(%arg0: i32) -> (i32, i32) {
    %c0_i32 = arith.constant 0 : i32
    %c0_i32_0 = arith.constant 0 : i32
    %c0_i32_1 = arith.constant 0 : i32
    return %c0_i32, %c0_i32_0 : i32, i32
  }
  func.func @transform_6(%arg0: i32) -> (i32, i32) {
    %c0_i32 = arith.constant 0 : i32
    %c0_i32_0 = arith.constant 0 : i32
    return %arg0, %c0_i32 : i32, i32
  }
}

</mosaic_0001>

<llo_original>
// kernel: nerf2_forward.1
$region0: #{nerf2_forward.1}
  #allocation0 [shape = 'u32[]', space=smem, size = 0x4, offset = 0x4, fixed_abs, tag = 'smem constant byte address 0x4 - core index']
  #allocation1 [shape = 'u32[144,128]{1,0:T(1,128)}', space=vmem, size = 0x12000, scoped, tag = 'internal scratch']
  %s0 = inlined_call_operand.vmem [shape: bf16[1024,8], index: 0, kind: input, shape index: {}]
  %s1 = inlined_call_operand.vmem [shape: bf16[2,8,128], index: 1, kind: input, shape index: {}]
  %s2 = inlined_call_operand.vmem [shape: bf16[7,128,128], index: 2, kind: input, shape index: {}]
  %s3 = inlined_call_operand.vmem [shape: bf16[128,8], index: 3, kind: input, shape index: {}]
  %s4 = inlined_call_operand.vmem [shape: f32[8,128], index: 4, kind: input, shape index: {}]
  %s5 = inlined_call_operand.vmem [shape: f32[1,8], index: 5, kind: input, shape index: {}]
  %s6 = inlined_call_operand.vmem [shape: f32[1024,8], index: 6, kind: output, shape index: {}]
  %s7 = sld [smem:[#allocation0]]
  $region57: #{nerf2_forward.1} parent=0
    _
  %s9 = ssub.s32 1, %s7
  %s10 = scalar_select 0, %s9, %s7
  loop: start=0, step=1, limit=4
  $region2: #{nerf2_forward.1} parent=0 // loop_pre_header
    _
  $region3: #{nerf2_forward.1} parent=0 // loop_header
    %s12 = sphi 0, %s16
    %p13 = scmp.ge.s32.totalorder %s12, 4
    %s22 = sphi 0, %s24
    %s25 = sphi 0, %s22
    %s26 = sphi 0, %s25
    %s42 = sphi 0, %s26
    %s46 = sphi 0, %s46
    %s48 = sphi 0, %s46
    %s49 = sphi 0, %s48
    %s63 = sphi 0, %s49
    %s67 = sphi 0, %s67
    %s69 = sphi 0, %s67
    %s70 = sphi 0, %s69
    %s84 = sphi 0, %s70
    %s88 = sphi 0, %s88
    %s90 = sphi 0, %s88
    %s91 = sphi 0, %s90
    %s105 = sphi 0, %s91
    %s109 = sphi 0, %s109
    %s111 = sphi 0, %s109
    %s112 = sphi 0, %s111
    %s126 = sphi 0, %s112
    %s130 = sphi 0, %s130
    %s132 = sphi 0, %s130
    %s133 = sphi 0, %s132
    %s147 = sphi 0, %s133
    %s153 = sphi 0, %s155
    %s156 = sphi 0, %s153
    %s157 = sphi 0, %s156
    %s173 = sphi 0, %s157
  $region4: #{nerf2_forward.1} parent=0 // loop_header_branch
    %15 = sbr.rel (%p13) target = $region8
  $region5: #{nerf2_forward.1} parent=0 // loop_body
    %s17 = ssub.s32 %s12, 1
    %s18 = ssub.s32 %s12, 2
    %s19 = sadd.s32 %s12, 1
    %s20 = ssub.s32 %s12, %s19
    %p21 = scmp.eq.s32.totalorder %s20, 0
    %s23 = sadd.s32 %s22, 1
    %s24 = scalar_select %p21, %s22, %s23
    %p27 = pneg %p21
    %p28 = scmp.eq.s32.totalorder %s12, 1
    %p29 = por %p27, %p28
    %p30 = scmp.ne.s32.totalorder %s22, %s25
    %p31 = scmp.eq.s32.totalorder %s12, 0
    %p32 = por %p30, %p31
    %p33 = scmp.ne.s32.totalorder %s22, %s25
    %p34 = scmp.eq.s32.totalorder %s17, 1
    %p35 = por %p33, %p34
    %p36 = scmp.ne.s32.totalorder %s25, %s26
    %p37 = scmp.eq.s32.totalorder %s17, 0
    %p38 = por %p36, %p37
    %p39 = scmp.ne.s32.totalorder %s25, %s26
    %p40 = scmp.eq.s32.totalorder %s18, 1
    %p41 = por %p39, %p40
    %p43 = scmp.ne.s32.totalorder %s26, %s42
    %p44 = scmp.eq.s32.totalorder %s18, 0
    %p45 = por %p43, %p44
    %s47 = sadd.s32 %s46, 1
    %p50 = scmp.eq.s32.totalorder %s12, 1
    %p51 = scmp.ne.s32.totalorder %s46, %s48
    %p52 = scmp.eq.s32.totalorder %s12, 0
    %p53 = por %p51, %p52
    %p54 = scmp.ne.s32.totalorder %s46, %s48
    %p55 = scmp.eq.s32.totalorder %s17, 1
    %p56 = por %p54, %p55
    %p57 = scmp.ne.s32.totalorder %s48, %s49
    %p58 = scmp.eq.s32.totalorder %s17, 0
    %p59 = por %p57, %p58
    %p60 = scmp.ne.s32.totalorder %s48, %s49
    %p61 = scmp.eq.s32.totalorder %s18, 1
    %p62 = por %p60, %p61
    %p64 = scmp.ne.s32.totalorder %s49, %s63
    %p65 = scmp.eq.s32.totalorder %s18, 0
    %p66 = por %p64, %p65
    %s68 = sadd.s32 %s67, 1
    %p71 = scmp.eq.s32.totalorder %s12, 1
    %p72 = scmp.ne.s32.totalorder %s67, %s69
    %p73 = scmp.eq.s32.totalorder %s12, 0
    %p74 = por %p72, %p73
    %p75 = scmp.ne.s32.totalorder %s67, %s69
    %p76 = scmp.eq.s32.totalorder %s17, 1
    %p77 = por %p75, %p76
    %p78 = scmp.ne.s32.totalorder %s69, %s70
    %p79 = scmp.eq.s32.totalorder %s17, 0
    %p80 = por %p78, %p79
    %p81 = scmp.ne.s32.totalorder %s69, %s70
    %p82 = scmp.eq.s32.totalorder %s18, 1
    %p83 = por %p81, %p82
    %p85 = scmp.ne.s32.totalorder %s70, %s84
    %p86 = scmp.eq.s32.totalorder %s18, 0
    %p87 = por %p85, %p86
    %s89 = sadd.s32 %s88, 1
    %p92 = scmp.eq.s32.totalorder %s12, 1
    %p93 = scmp.ne.s32.totalorder %s88, %s90
    %p94 = scmp.eq.s32.totalorder %s12, 0
    %p95 = por %p93, %p94
    %p96 = scmp.ne.s32.totalorder %s88, %s90
    %p97 = scmp.eq.s32.totalorder %s17, 1
    %p98 = por %p96, %p97
    %p99 = scmp.ne.s32.totalorder %s90, %s91
    %p100 = scmp.eq.s32.totalorder %s17, 0
    %p101 = por %p99, %p100
    %p102 = scmp.ne.s32.totalorder %s90, %s91
    %p103 = scmp.eq.s32.totalorder %s18, 1
    %p104 = por %p102, %p103
    %p106 = scmp.ne.s32.totalorder %s91, %s105
    %p107 = scmp.eq.s32.totalorder %s18, 0
    %p108 = por %p106, %p107
    %s110 = sadd.s32 %s109, 1
    %p113 = scmp.eq.s32.totalorder %s12, 1
    %p114 = scmp.ne.s32.totalorder %s109, %s111
    %p115 = scmp.eq.s32.totalorder %s12, 0
    %p116 = por %p114, %p115
    %p117 = scmp.ne.s32.totalorder %s109, %s111
    %p118 = scmp.eq.s32.totalorder %s17, 1
    %p119 = por %p117, %p118
    %p120 = scmp.ne.s32.totalorder %s111, %s112
    %p121 = scmp.eq.s32.totalorder %s17, 0
    %p122 = por %p120, %p121
    %p123 = scmp.ne.s32.totalorder %s111, %s112
    %p124 = scmp.eq.s32.totalorder %s18, 1
    %p125 = por %p123, %p124
    %p127 = scmp.ne.s32.totalorder %s112, %s126
    %p128 = scmp.eq.s32.totalorder %s18, 0
    %p129 = por %p127, %p128
    %s131 = sadd.s32 %s130, 1
    %p134 = scmp.eq.s32.totalorder %s12, 1
    %p135 = scmp.ne.s32.totalorder %s130, %s132
    %p136 = scmp.eq.s32.totalorder %s12, 0
    %p137 = por %p135, %p136
    %p138 = scmp.ne.s32.totalorder %s130, %s132
    %p139 = scmp.eq.s32.totalorder %s17, 1
    %p140 = por %p138, %p139
    %p141 = scmp.ne.s32.totalorder %s132, %s133
    %p142 = scmp.eq.s32.totalorder %s17, 0
    %p143 = por %p141, %p142
    %p144 = scmp.ne.s32.totalorder %s132, %s133
    %p145 = scmp.eq.s32.totalorder %s18, 1
    %p146 = por %p144, %p145
    %p148 = scmp.ne.s32.totalorder %s133, %s147
    %p149 = scmp.eq.s32.totalorder %s18, 0
    %p150 = por %p148, %p149
    %s151 = ssub.s32 %s12, %s19
    %p152 = scmp.eq.s32.totalorder %s151, 0
    %s154 = sadd.s32 %s153, 1
    %s155 = scalar_select %p152, %s153, %s154
    %p158 = pneg %p152
    %p159 = scmp.eq.s32.totalorder %s12, 1
    %p160 = por %p158, %p159
    %p161 = scmp.ne.s32.totalorder %s153, %s156
    %p162 = scmp.eq.s32.totalorder %s12, 0
    %p163 = por %p161, %p162
    %p164 = scmp.ne.s32.totalorder %s153, %s156
    %p165 = scmp.eq.s32.totalorder %s17, 1
    %p166 = por %p164, %p165
    %p167 = scmp.ne.s32.totalorder %s156, %s157
    %p168 = scmp.eq.s32.totalorder %s17, 0
    %p169 = por %p167, %p168
    %p170 = scmp.ne.s32.totalorder %s156, %s157
    %p171 = scmp.eq.s32.totalorder %s18, 1
    %p172 = por %p170, %p171
    %p174 = scmp.ne.s32.totalorder %s157, %s173
    %p175 = scmp.eq.s32.totalorder %s18, 0
    %p176 = por %p174, %p175
    %p177 = scmp.le.s32.totalorder 1, %s12
    %p178 = scmp.lt.s32.totalorder %s12, 3
    %p179 = pnand %p177, %p178
    %p180 = pneg %p179
    // Predicated region
    $region9: #{nerf2_forward.1} parent=5 // pred_check
      _
    $region10: #{nerf2_forward.1} parent=5 // pred_check_branch
      %182 = sbr.rel (%p179) target = $region12
    $region11: #{nerf2_forward.1} parent=5 // pred_region
      %s183 = ssub.s32 %s12, 1
      // Predicated region
      $region13: #{nerf2_forward.1} parent=11 // pred_check
        %p184 = pneg %p59
      $region14: #{nerf2_forward.1} parent=11 // pred_check_branch
        %186 = sbr.rel (%p184) target = $region16
      $region15: #{nerf2_forward.1} parent=11 // pred_region
        _
      $region16: #{nerf2_forward.1} parent=11 // pred_fallthru
        _
      // Predicated region
      $region17: #{nerf2_forward.1} parent=11 // pred_check
        %p187 = pneg %p80
      $region18: #{nerf2_forward.1} parent=11 // pred_check_branch
        %189 = sbr.rel (%p187) target = $region20
      $region19: #{nerf2_forward.1} parent=11 // pred_region
        _
      $region20: #{nerf2_forward.1} parent=11 // pred_fallthru
        _
      // Predicated region
      $region21: #{nerf2_forward.1} parent=11 // pred_check
        %p190 = pneg %p101
      $region22: #{nerf2_forward.1} parent=11 // pred_check_branch
        %192 = sbr.rel (%p190) target = $region24
      $region23: #{nerf2_forward.1} parent=11 // pred_region
        _
      $region24: #{nerf2_forward.1} parent=11 // pred_fallthru
        _
      // Predicated region
      $region25: #{nerf2_forward.1} parent=11 // pred_check
        %p193 = pneg %p122
      $region26: #{nerf2_forward.1} parent=11 // pred_check_branch
        %195 = sbr.rel (%p193) target = $region28
      $region27: #{nerf2_forward.1} parent=11 // pred_region
        _
      $region28: #{nerf2_forward.1} parent=11 // pred_fallthru
        _
      // Predicated region
      $region29: #{nerf2_forward.1} parent=11 // pred_check
        %p196 = pneg %p143
      $region30: #{nerf2_forward.1} parent=11 // pred_check_branch
        %198 = sbr.rel (%p196) target = $region32
      $region31: #{nerf2_forward.1} parent=11 // pred_region
        _
      $region32: #{nerf2_forward.1} parent=11 // pred_fallthru
        _
    $region12: #{nerf2_forward.1} parent=5 // pred_fallthru
      _
    %p199 = scmp.lt.s32.totalorder %s12, 2
    // Predicated region
    $region33: #{nerf2_forward.1} parent=5 // pred_check
      %p200 = pneg %p199
    $region34: #{nerf2_forward.1} parent=5 // pred_check_branch
      %202 = sbr.rel (%p200) target = $region36
    $region35: #{nerf2_forward.1} parent=5 // pred_region
      // Predicated region
      $region37: #{nerf2_forward.1} parent=35 // pred_check
        %p203 = pneg %p32
      $region38: #{nerf2_forward.1} parent=35 // pred_check_branch
        %205 = sbr.rel (%p203) target = $region40
      $region39: #{nerf2_forward.1} parent=35 // pred_region
        %s206 = smul.u32 64, %s12
        %p207 = scmp.lt.s32.totalorder %s206, 127
        %s208 = scalar_select %p207, %s206, 127
        %s209 = smul.addr %s208, 4
        %s210 = scalar_lea.vmem %s0, %s209
        %s211 = smul.u32 64, %s12
      $region40: #{nerf2_forward.1} parent=35 // pred_fallthru
        _
    $region36: #{nerf2_forward.1} parent=5 // pred_fallthru
      _
    %p212 = scmp.le.s32.totalorder 1, %s12
    %p213 = scmp.lt.s32.totalorder %s12, 3
    %p214 = pnand %p212, %p213
    %p215 = pneg %p214
    // Predicated region
    $region41: #{nerf2_forward.1} parent=5 // pred_check
      _
    $region42: #{nerf2_forward.1} parent=5 // pred_check_branch
      %217 = sbr.rel (%p214) target = $region44
    $region43: #{nerf2_forward.1} parent=5 // pred_region
      %s218 = ssub.s32 %s12, 1
      %s219 = smul.u32 64, %s17
      %p220 = scmp.lt.s32.totalorder %s219, 127
      %s221 = scalar_select %p220, %s219, 127
      %s222 = smul.addr %s221, 4
      %s223 = scalar_lea.vmem %s0, %s222
      %p224 = pneg %p38
      %p225 = pneg %p35
      %p226 = pneg %p59
      %p227 = pneg %p56
      %p228 = pneg %p80
      %p229 = pneg %p77
      %p230 = pneg %p101
      %p231 = pneg %p98
      %p232 = pneg %p122
      %p233 = pneg %p119
      %p234 = pneg %p143
      %p235 = pneg %p140
      %p236 = pneg %p169
      %p237 = pneg %p166
      %s238 = smul.u32 64, %s17
      %p239 = scmp.lt.s32.totalorder %s238, 127
      %s240 = scalar_select %p239, %s238, 127
      %s241 = smul.addr %s240, 8
      %s242 = scalar_lea.vmem %s6, %s241
      %s243 = smul.u32 64, %s17
      %p244 = scmp.lt.s32.totalorder %s243, 127
      %s245 = scalar_select %p244, %s243, 127
      %s246 = smul.addr %s245, 4
      %s247 = scalar_lea.vmem %s0, %s246
      %s248 = smul.u32 64, %s17
      %s249 = smul.u32 64, %s17
      %p250 = scmp.lt.s32.totalorder %s249, 127
      %s251 = scalar_select %p250, %s249, 127
      %s252 = smul.addr %s251, 8
      %s253 = scalar_lea.vmem %s6, %s252
      %s254 = smul.u32 64, %s17
      %v256 = vld [vmem:[%s247] sm:$0xf]
      %v257 = vld [vmem:[%s247 + $0x4] sm:$0xf]
      %v258 = vld [vmem:[%s247 + $0x8] sm:$0xf]
      %v259 = vld [vmem:[%s247 + $0xc] sm:$0xf]
      %v260 = vld [vmem:[%s247 + $0x10] sm:$0xf]
      %v261 = vld [vmem:[%s247 + $0x14] sm:$0xf]
      %v262 = vld [vmem:[%s247 + $0x18] sm:$0xf]
      %v263 = vld [vmem:[%s247 + $0x1c] sm:$0xf]
      %v264 = vld [vmem:[%s247 + $0x20] sm:$0xf]
      %v265 = vld [vmem:[%s247 + $0x24] sm:$0xf]
      %v266 = vld [vmem:[%s247 + $0x28] sm:$0xf]
      %v267 = vld [vmem:[%s247 + $0x2c] sm:$0xf]
      %v268 = vld [vmem:[%s247 + $0x30] sm:$0xf]
      %v269 = vld [vmem:[%s247 + $0x34] sm:$0xf]
      %v270 = vld [vmem:[%s247 + $0x38] sm:$0xf]
      %v271 = vld [vmem:[%s247 + $0x3c] sm:$0xf]
      %v272 = vld [vmem:[%s247 + $0x40] sm:$0xf]
      %v273 = vld [vmem:[%s247 + $0x44] sm:$0xf]
      %v274 = vld [vmem:[%s247 + $0x48] sm:$0xf]
      %v275 = vld [vmem:[%s247 + $0x4c] sm:$0xf]
      %v276 = vld [vmem:[%s247 + $0x50] sm:$0xf]
      %v277 = vld [vmem:[%s247 + $0x54] sm:$0xf]
      %v278 = vld [vmem:[%s247 + $0x58] sm:$0xf]
      %v279 = vld [vmem:[%s247 + $0x5c] sm:$0xf]
      %v280 = vld [vmem:[%s247 + $0x60] sm:$0xf]
      %v281 = vld [vmem:[%s247 + $0x64] sm:$0xf]
      %v282 = vld [vmem:[%s247 + $0x68] sm:$0xf]
      %v283 = vld [vmem:[%s247 + $0x6c] sm:$0xf]
      %v284 = vld [vmem:[%s247 + $0x70] sm:$0xf]
      %v285 = vld [vmem:[%s247 + $0x74] sm:$0xf]
      %v286 = vld [vmem:[%s247 + $0x78] sm:$0xf]
      %v287 = vld [vmem:[%s247 + $0x7c] sm:$0xf]
      %v288 = vld [vmem:[%s247 + $0x80] sm:$0xf]
      %v289 = vld [vmem:[%s247 + $0x84] sm:$0xf]
      %v290 = vld [vmem:[%s247 + $0x88] sm:$0xf]
      %v291 = vld [vmem:[%s247 + $0x8c] sm:$0xf]
      %v292 = vld [vmem:[%s247 + $0x90] sm:$0xf]
      %v293 = vld [vmem:[%s247 + $0x94] sm:$0xf]
      %v294 = vld [vmem:[%s247 + $0x98] sm:$0xf]
      %v295 = vld [vmem:[%s247 + $0x9c] sm:$0xf]
      %v296 = vld [vmem:[%s247 + $0xa0] sm:$0xf]
      %v297 = vld [vmem:[%s247 + $0xa4] sm:$0xf]
      %v298 = vld [vmem:[%s247 + $0xa8] sm:$0xf]
      %v299 = vld [vmem:[%s247 + $0xac] sm:$0xf]
      %v300 = vld [vmem:[%s247 + $0xb0] sm:$0xf]
      %v301 = vld [vmem:[%s247 + $0xb4] sm:$0xf]
      %v302 = vld [vmem:[%s247 + $0xb8] sm:$0xf]
      %v303 = vld [vmem:[%s247 + $0xbc] sm:$0xf]
      %v304 = vld [vmem:[%s247 + $0xc0] sm:$0xf]
      %v305 = vld [vmem:[%s247 + $0xc4] sm:$0xf]
      %v306 = vld [vmem:[%s247 + $0xc8] sm:$0xf]
      %v307 = vld [vmem:[%s247 + $0xcc] sm:$0xf]
      %v308 = vld [vmem:[%s247 + $0xd0] sm:$0xf]
      %v309 = vld [vmem:[%s247 + $0xd4] sm:$0xf]
      %v310 = vld [vmem:[%s247 + $0xd8] sm:$0xf]
      %v311 = vld [vmem:[%s247 + $0xdc] sm:$0xf]
      %v312 = vld [vmem:[%s247 + $0xe0] sm:$0xf]
      %v313 = vld [vmem:[%s247 + $0xe4] sm:$0xf]
      %v314 = vld [vmem:[%s247 + $0xe8] sm:$0xf]
      %v315 = vld [vmem:[%s247 + $0xec] sm:$0xf]
      %v316 = vld [vmem:[%s247 + $0xf0] sm:$0xf]
      %v317 = vld [vmem:[%s247 + $0xf4] sm:$0xf]
      %v318 = vld [vmem:[%s247 + $0xf8] sm:$0xf]
      %v319 = vld [vmem:[%s247 + $0xfc] sm:$0xf]
      %v320 = vld [vmem:[%s4] sm:$0x1]
      %v321 = vld [vmem:[%s1] sm:$0xf]
      %v322 = vlaneseq
      %v323 = vshrl.u32 %v322, 7
      %v324 = vsub.s32 0, %v323
      %v325 = vrot.slane %v320, %v324
      %v390 = vunpack.c.l.b16 %v256
      %v391 = vunpack.c.l.b16 %v257
      %v392 = vunpack.c.l.b16 %v258
      %v393 = vunpack.c.l.b16 %v259
      %v394 = vunpack.c.l.b16 %v260
      %v395 = vunpack.c.l.b16 %v261
      %v396 = vunpack.c.l.b16 %v262
      %v397 = vunpack.c.l.b16 %v263
      %v398 = vunpack.c.l.b16 %v264
      %v399 = vunpack.c.l.b16 %v265
      %v400 = vunpack.c.l.b16 %v266
      %v401 = vunpack.c.l.b16 %v267
      %v402 = vunpack.c.l.b16 %v268
      %v403 = vunpack.c.l.b16 %v269
      %v404 = vunpack.c.l.b16 %v270
      %v405 = vunpack.c.l.b16 %v271
      %v406 = vunpack.c.l.b16 %v272
      %v407 = vunpack.c.l.b16 %v273
      %v408 = vunpack.c.l.b16 %v274
      %v409 = vunpack.c.l.b16 %v275
      %v410 = vunpack.c.l.b16 %v276
      %v411 = vunpack.c.l.b16 %v277
      %v412 = vunpack.c.l.b16 %v278
      %v413 = vunpack.c.l.b16 %v279
      %v414 = vunpack.c.l.b16 %v280
      %v415 = vunpack.c.l.b16 %v281
      %v416 = vunpack.c.l.b16 %v282
      %v417 = vunpack.c.l.b16 %v283
      %v418 = vunpack.c.l.b16 %v284
      %v419 = vunpack.c.l.b16 %v285
      %v420 = vunpack.c.l.b16 %v286
      %v421 = vunpack.c.l.b16 %v287
      %v422 = vunpack.c.l.b16 %v288
      %v423 = vunpack.c.l.b16 %v289
      %v424 = vunpack.c.l.b16 %v290
      %v425 = vunpack.c.l.b16 %v291
      %v426 = vunpack.c.l.b16 %v292
      %v427 = vunpack.c.l.b16 %v293
      %v428 = vunpack.c.l.b16 %v294
      %v429 = vunpack.c.l.b16 %v295
      %v430 = vunpack.c.l.b16 %v296
      %v431 = vunpack.c.l.b16 %v297
      %v432 = vunpack.c.l.b16 %v298
      %v433 = vunpack.c.l.b16 %v299
      %v434 = vunpack.c.l.b16 %v300
      %v435 = vunpack.c.l.b16 %v301
      %v436 = vunpack.c.l.b16 %v302
      %v437 = vunpack.c.l.b16 %v303
      %v438 = vunpack.c.l.b16 %v304
      %v439 = vunpack.c.l.b16 %v305
      %v440 = vunpack.c.l.b16 %v306
      %v441 = vunpack.c.l.b16 %v307
      %v442 = vunpack.c.l.b16 %v308
      %v443 = vunpack.c.l.b16 %v309
      %v444 = vunpack.c.l.b16 %v310
      %v445 = vunpack.c.l.b16 %v311
      %v446 = vunpack.c.l.b16 %v312
      %v447 = vunpack.c.l.b16 %v313
      %v448 = vunpack.c.l.b16 %v314
      %v449 = vunpack.c.l.b16 %v315
      %v450 = vunpack.c.l.b16 %v316
      %v451 = vunpack.c.l.b16 %v317
      %v452 = vunpack.c.l.b16 %v318
      %v453 = vunpack.c.l.b16 %v319
      %v454 = vpack.c.b16 %v391, %v390
      %v455 = vpack.c.b16 %v393, %v392
      %v456 = vpack.c.b16 %v395, %v394
      %v457 = vpack.c.b16 %v397, %v396
      %v458 = vpack.c.b16 %v399, %v398
      %v459 = vpack.c.b16 %v401, %v400
      %v460 = vpack.c.b16 %v403, %v402
      %v461 = vpack.c.b16 %v405, %v404
      %v462 = vpack.c.b16 %v407, %v406
      %v463 = vpack.c.b16 %v409, %v408
      %v464 = vpack.c.b16 %v411, %v410
      %v465 = vpack.c.b16 %v413, %v412
      %v466 = vpack.c.b16 %v415, %v414
      %v467 = vpack.c.b16 %v417, %v416
      %v468 = vpack.c.b16 %v419, %v418
      %v469 = vpack.c.b16 %v421, %v420
      %v470 = vpack.c.b16 %v423, %v422
      %v471 = vpack.c.b16 %v425, %v424
      %v472 = vpack.c.b16 %v427, %v426
      %v473 = vpack.c.b16 %v429, %v428
      %v474 = vpack.c.b16 %v431, %v430
      %v475 = vpack.c.b16 %v433, %v432
      %v476 = vpack.c.b16 %v435, %v434
      %v477 = vpack.c.b16 %v437, %v436
      %v478 = vpack.c.b16 %v439, %v438
      %v479 = vpack.c.b16 %v441, %v440
      %v480 = vpack.c.b16 %v443, %v442
      %v481 = vpack.c.b16 %v445, %v444
      %v482 = vpack.c.b16 %v447, %v446
      %v483 = vpack.c.b16 %v449, %v448
      %v484 = vpack.c.b16 %v451, %v450
      %v485 = vpack.c.b16 %v453, %v452
      %vm486 = vcmask 64512
      %v488 = vsel %vm486, %v454, 0
      %v491 = vsel %vm486, %v455, 0
      %v494 = vsel %vm486, %v456, 0
      %v497 = vsel %vm486, %v457, 0
      %v500 = vsel %vm486, %v458, 0
      %v503 = vsel %vm486, %v459, 0
      %v506 = vsel %vm486, %v460, 0
      %v509 = vsel %vm486, %v461, 0
      %v512 = vsel %vm486, %v462, 0
      %v515 = vsel %vm486, %v463, 0
      %v518 = vsel %vm486, %v464, 0
      %v521 = vsel %vm486, %v465, 0
      %v524 = vsel %vm486, %v466, 0
      %v527 = vsel %vm486, %v467, 0
      %v530 = vsel %vm486, %v468, 0
      %v533 = vsel %vm486, %v469, 0
      %v536 = vsel %vm486, %v470, 0
      %v539 = vsel %vm486, %v471, 0
      %v542 = vsel %vm486, %v472, 0
      %v545 = vsel %vm486, %v473, 0
      %v548 = vsel %vm486, %v474, 0
      %v551 = vsel %vm486, %v475, 0
      %v554 = vsel %vm486, %v476, 0
      %v557 = vsel %vm486, %v477, 0
      %v560 = vsel %vm486, %v478, 0
      %v563 = vsel %vm486, %v479, 0
      %v566 = vsel %vm486, %v480, 0
      %v569 = vsel %vm486, %v481, 0
      %v572 = vsel %vm486, %v482, 0
      %v575 = vsel %vm486, %v483, 0
      %v578 = vsel %vm486, %v484, 0
      %v581 = vsel %vm486, %v485, 0
      %vm583 = vcmask 1043456
      %v585 = vsel %vm583, %v321, 0
      %587 = vmatprep.subr.bf16.mxu0 0
      %588 = vmatpush1.bf16.msra.mxu0 0
      %589 = vmatprep.subr.bf16.mxu0 0
      %590 = vmatpush1.bf16.msra.mxu0 0
      %591 = vmatprep.subr.bf16.mxu0 0
      %592 = vmatpush1.bf16.msra.mxu0 0
      %593 = vmatprep.subr.bf16.mxu0 0
      %594 = vmatpush1.bf16.msra.mxu0 0
      %595 = vmatprep.subr.bf16.mxu0 0
      %596 = vmatpush1.bf16.msra.mxu0 0
      %597 = vmatprep.subr.bf16.mxu0 0
      %598 = vmatpush1.bf16.msra.mxu0 0
      %599 = vmatprep.subr.bf16.mxu0 0
      %600 = vmatpush1.bf16.msra.mxu0 0
      %601 = vmatprep.subr.bf16.mxu0 0
      %602 = vmatpush1.bf16.msra.mxu0 %v585
      %603 = vmatprep.subr.bf16.mxu0 0
      %604 = vmatpush2.bf16.msra.mxu0 0
      %605 = vmatprep.subr.bf16.mxu0 0
      %606 = vmatpush2.bf16.msra.mxu0 0
      %607 = vmatprep.subr.bf16.mxu0 0
      %608 = vmatpush2.bf16.msra.mxu0 0
      %609 = vmatprep.subr.bf16.mxu0 0
      %610 = vmatpush2.bf16.msra.mxu0 0
      %611 = vmatprep.subr.bf16.mxu0 0
      %612 = vmatpush2.bf16.msra.mxu0 0
      %613 = vmatprep.subr.bf16.mxu0 0
      %614 = vmatpush2.bf16.msra.mxu0 0
      %615 = vmatprep.subr.bf16.mxu0 0
      %616 = vmatpush2.bf16.msra.mxu0 0
      %617 = vmatprep.subr.bf16.mxu0 0
      %618 = vmatpush2.bf16.msra.mxu0 0
      %619 = vmatprep.mubr.bf16.mxu0 0
      %620 = vmatmul.mubr.bf16.gmra.mxu0 %v488
      %v621 = vpop.f32.mrf.mxu0
      %v622 = vadd.f32 %v325, %v621
      %v623 = vpop.f32.mrf.mxu0
      %v624 = vpop.f32.mrf.mxu0
      %v625 = vadd.f32 %v325, %v624
      %v626 = vpop.f32.mrf.mxu0
      %627 = vmatprep.mubr.bf16.mxu0 0
      %628 = vmatmul.mubr.bf16.gmra.mxu0 %v491
      %v629 = vpop.f32.mrf.mxu0
      %v630 = vadd.f32 %v325, %v629
      %v631 = vpop.f32.mrf.mxu0
      %v632 = vpop.f32.mrf.mxu0
      %v633 = vadd.f32 %v325, %v632
      %v634 = vpop.f32.mrf.mxu0
      %635 = vmatprep.mubr.bf16.mxu0 0
      %636 = vmatmul.mubr.bf16.gmra.mxu0 %v494
      %v637 = vpop.f32.mrf.mxu0
      %v638 = vadd.f32 %v325, %v637
      %v639 = vpop.f32.mrf.mxu0
      %v640 = vpop.f32.mrf.mxu0
      %v641 = vadd.f32 %v325, %v640
      %v642 = vpop.f32.mrf.mxu0
      %643 = vmatprep.mubr.bf16.mxu0 0
      %644 = vmatmul.mubr.bf16.gmra.mxu0 %v497
      %v645 = vpop.f32.mrf.mxu0
      %v646 = vadd.f32 %v325, %v645
      %v647 = vpop.f32.mrf.mxu0
      %v648 = vpop.f32.mrf.mxu0
      %v649 = vadd.f32 %v325, %v648
      %v650 = vpop.f32.mrf.mxu0
      %651 = vmatprep.mubr.bf16.mxu0 0
      %652 = vmatmul.mubr.bf16.gmra.mxu0 %v500
      %v653 = vpop.f32.mrf.mxu0
      %v654 = vadd.f32 %v325, %v653
      %v655 = vpop.f32.mrf.mxu0
      %v656 = vpop.f32.mrf.mxu0
      %v657 = vadd.f32 %v325, %v656
      %v658 = vpop.f32.mrf.mxu0
      %659 = vmatprep.mubr.bf16.mxu0 0
      %660 = vmatmul.mubr.bf16.gmra.mxu0 %v503
      %v661 = vpop.f32.mrf.mxu0
      %v662 = vadd.f32 %v325, %v661
      %v663 = vpop.f32.mrf.mxu0
      %v664 = vpop.f32.mrf.mxu0
      %v665 = vadd.f32 %v325, %v664
      %v666 = vpop.f32.mrf.mxu0
      %667 = vmatprep.mubr.bf16.mxu0 0
      %668 = vmatmul.mubr.bf16.gmra.mxu0 %v506
      %v669 = vpop.f32.mrf.mxu0
      %v670 = vadd.f32 %v325, %v669
      %v671 = vpop.f32.mrf.mxu0
      %v672 = vpop.f32.mrf.mxu0
      %v673 = vadd.f32 %v325, %v672
      %v674 = vpop.f32.mrf.mxu0
      %675 = vmatprep.mubr.bf16.mxu0 0
      %676 = vmatmul.mubr.bf16.gmra.mxu0 %v509
      %v677 = vpop.f32.mrf.mxu0
      %v678 = vadd.f32 %v325, %v677
      %v679 = vpop.f32.mrf.mxu0
      %v680 = vpop.f32.mrf.mxu0
      %v681 = vadd.f32 %v325, %v680
      %v682 = vpop.f32.mrf.mxu0
      %683 = vmatprep.mubr.bf16.mxu0 0
      %684 = vmatmul.mubr.bf16.gmra.mxu0 %v512
      %v685 = vpop.f32.mrf.mxu0
      %v686 = vadd.f32 %v325, %v685
      %v687 = vpop.f32.mrf.mxu0
      %v688 = vpop.f32.mrf.mxu0
      %v689 = vadd.f32 %v325, %v688
      %v690 = vpop.f32.mrf.mxu0
      %691 = vmatprep.mubr.bf16.mxu0 0
      %692 = vmatmul.mubr.bf16.gmra.mxu0 %v515
      %v693 = vpop.f32.mrf.mxu0
      %v694 = vadd.f32 %v325, %v693
      %v695 = vpop.f32.mrf.mxu0
      %v696 = vpop.f32.mrf.mxu0
      %v697 = vadd.f32 %v325, %v696
      %v698 = vpop.f32.mrf.mxu0
      %699 = vmatprep.mubr.bf16.mxu0 0
      %700 = vmatmul.mubr.bf16.gmra.mxu0 %v518
      %v701 = vpop.f32.mrf.mxu0
      %v702 = vadd.f32 %v325, %v701
      %v703 = vpop.f32.mrf.mxu0
      %v704 = vpop.f32.mrf.mxu0
      %v705 = vadd.f32 %v325, %v704
      %v706 = vpop.f32.mrf.mxu0
      %707 = vmatprep.mubr.bf16.mxu0 0
      %708 = vmatmul.mubr.bf16.gmra.mxu0 %v521
      %v709 = vpop.f32.mrf.mxu0
      %v710 = vadd.f32 %v325, %v709
      %v711 = vpop.f32.mrf.mxu0
      %v712 = vpop.f32.mrf.mxu0
      %v713 = vadd.f32 %v325, %v712
      %v714 = vpop.f32.mrf.mxu0
      %715 = vmatprep.mubr.bf16.mxu0 0
      %716 = vmatmul.mubr.bf16.gmra.mxu0 %v524
      %v717 = vpop.f32.mrf.mxu0
      %v718 = vadd.f32 %v325, %v717
      %v719 = vpop.f32.mrf.mxu0
      %v720 = vpop.f32.mrf.mxu0
      %v721 = vadd.f32 %v325, %v720
      %v722 = vpop.f32.mrf.mxu0
      %723 = vmatprep.mubr.bf16.mxu0 0
      %724 = vmatmul.mubr.bf16.gmra.mxu0 %v527
      %v725 = vpop.f32.mrf.mxu0
      %v726 = vadd.f32 %v325, %v725
      %v727 = vpop.f32.mrf.mxu0
      %v728 = vpop.f32.mrf.mxu0
      %v729 = vadd.f32 %v325, %v728
      %v730 = vpop.f32.mrf.mxu0
      %731 = vmatprep.mubr.bf16.mxu0 0
      %732 = vmatmul.mubr.bf16.gmra.mxu0 %v530
      %v733 = vpop.f32.mrf.mxu0
      %v734 = vadd.f32 %v325, %v733
      %v735 = vpop.f32.mrf.mxu0
      %v736 = vpop.f32.mrf.mxu0
      %v737 = vadd.f32 %v325, %v736
      %v738 = vpop.f32.mrf.mxu0
      %739 = vmatprep.mubr.bf16.mxu0 0
      %740 = vmatmul.mubr.bf16.gmra.mxu0 %v533
      %v741 = vpop.f32.mrf.mxu0
      %v742 = vadd.f32 %v325, %v741
      %v743 = vpop.f32.mrf.mxu0
      %v744 = vpop.f32.mrf.mxu0
      %v745 = vadd.f32 %v325, %v744
      %v746 = vpop.f32.mrf.mxu0
      %747 = vmatprep.mubr.bf16.mxu0 0
      %748 = vmatmul.mubr.bf16.gmra.mxu0 %v536
      %v749 = vpop.f32.mrf.mxu0
      %v750 = vadd.f32 %v325, %v749
      %v751 = vpop.f32.mrf.mxu0
      %v752 = vpop.f32.mrf.mxu0
      %v753 = vadd.f32 %v325, %v752
      %v754 = vpop.f32.mrf.mxu0
      %755 = vmatprep.mubr.bf16.mxu0 0
      %756 = vmatmul.mubr.bf16.gmra.mxu0 %v539
      %v757 = vpop.f32.mrf.mxu0
      %v758 = vadd.f32 %v325, %v757
      %v759 = vpop.f32.mrf.mxu0
      %v760 = vpop.f32.mrf.mxu0
      %v761 = vadd.f32 %v325, %v760
      %v762 = vpop.f32.mrf.mxu0
      %763 = vmatprep.mubr.bf16.mxu0 0
      %764 = vmatmul.mubr.bf16.gmra.mxu0 %v542
      %v765 = vpop.f32.mrf.mxu0
      %v766 = vadd.f32 %v325, %v765
      %v767 = vpop.f32.mrf.mxu0
      %v768 = vpop.f32.mrf.mxu0
      %v769 = vadd.f32 %v325, %v768
      %v770 = vpop.f32.mrf.mxu0
      %771 = vmatprep.mubr.bf16.mxu0 0
      %772 = vmatmul.mubr.bf16.gmra.mxu0 %v545
      %v773 = vpop.f32.mrf.mxu0
      %v774 = vadd.f32 %v325, %v773
      %v775 = vpop.f32.mrf.mxu0
      %v776 = vpop.f32.mrf.mxu0
      %v777 = vadd.f32 %v325, %v776
      %v778 = vpop.f32.mrf.mxu0
      %779 = vmatprep.mubr.bf16.mxu0 0
      %780 = vmatmul.mubr.bf16.gmra.mxu0 %v548
      %v781 = vpop.f32.mrf.mxu0
      %v782 = vadd.f32 %v325, %v781
      %v783 = vpop.f32.mrf.mxu0
      %v784 = vpop.f32.mrf.mxu0
      %v785 = vadd.f32 %v325, %v784
      %v786 = vpop.f32.mrf.mxu0
      %787 = vmatprep.mubr.bf16.mxu0 0
      %788 = vmatmul.mubr.bf16.gmra.mxu0 %v551
      %v789 = vpop.f32.mrf.mxu0
      %v790 = vadd.f32 %v325, %v789
      %v791 = vpop.f32.mrf.mxu0
      %v792 = vpop.f32.mrf.mxu0
      %v793 = vadd.f32 %v325, %v792
      %v794 = vpop.f32.mrf.mxu0
      %795 = vmatprep.mubr.bf16.mxu0 0
      %796 = vmatmul.mubr.bf16.gmra.mxu0 %v554
      %v797 = vpop.f32.mrf.mxu0
      %v798 = vadd.f32 %v325, %v797
      %v799 = vpop.f32.mrf.mxu0
      %v800 = vpop.f32.mrf.mxu0
      %v801 = vadd.f32 %v325, %v800
      %v802 = vpop.f32.mrf.mxu0
      %803 = vmatprep.mubr.bf16.mxu0 0
      %804 = vmatmul.mubr.bf16.gmra.mxu0 %v557
      %v805 = vpop.f32.mrf.mxu0
      %v806 = vadd.f32 %v325, %v805
      %v807 = vpop.f32.mrf.mxu0
      %v808 = vpop.f32.mrf.mxu0
      %v809 = vadd.f32 %v325, %v808
      %v810 = vpop.f32.mrf.mxu0
      %811 = vmatprep.mubr.bf16.mxu0 0
      %812 = vmatmul.mubr.bf16.gmra.mxu0 %v560
      %v813 = vpop.f32.mrf.mxu0
      %v814 = vadd.f32 %v325, %v813
      %v815 = vpop.f32.mrf.mxu0
      %v816 = vpop.f32.mrf.mxu0
      %v817 = vadd.f32 %v325, %v816
      %v818 = vpop.f32.mrf.mxu0
      %819 = vmatprep.mubr.bf16.mxu0 0
      %820 = vmatmul.mubr.bf16.gmra.mxu0 %v563
      %v821 = vpop.f32.mrf.mxu0
      %v822 = vadd.f32 %v325, %v821
      %v823 = vpop.f32.mrf.mxu0
      %v824 = vpop.f32.mrf.mxu0
      %v825 = vadd.f32 %v325, %v824
      %v826 = vpop.f32.mrf.mxu0
      %827 = vmatprep.mubr.bf16.mxu0 0
      %828 = vmatmul.mubr.bf16.gmra.mxu0 %v566
      %v829 = vpop.f32.mrf.mxu0
      %v830 = vadd.f32 %v325, %v829
      %v831 = vpop.f32.mrf.mxu0
      %v832 = vpop.f32.mrf.mxu0
      %v833 = vadd.f32 %v325, %v832
      %v834 = vpop.f32.mrf.mxu0
      %835 = vmatprep.mubr.bf16.mxu0 0
      %836 = vmatmul.mubr.bf16.gmra.mxu0 %v569
      %v837 = vpop.f32.mrf.mxu0
      %v838 = vadd.f32 %v325, %v837
      %v839 = vpop.f32.mrf.mxu0
      %v840 = vpop.f32.mrf.mxu0
      %v841 = vadd.f32 %v325, %v840
      %v842 = vpop.f32.mrf.mxu0
      %843 = vmatprep.mubr.bf16.mxu0 0
      %844 = vmatmul.mubr.bf16.gmra.mxu0 %v572
      %v845 = vpop.f32.mrf.mxu0
      %v846 = vadd.f32 %v325, %v845
      %v847 = vpop.f32.mrf.mxu0
      %v848 = vpop.f32.mrf.mxu0
      %v849 = vadd.f32 %v325, %v848
      %v850 = vpop.f32.mrf.mxu0
      %851 = vmatprep.mubr.bf16.mxu0 0
      %852 = vmatmul.mubr.bf16.gmra.mxu0 %v575
      %v853 = vpop.f32.mrf.mxu0
      %v854 = vadd.f32 %v325, %v853
      %v855 = vpop.f32.mrf.mxu0
      %v856 = vpop.f32.mrf.mxu0
      %v857 = vadd.f32 %v325, %v856
      %v858 = vpop.f32.mrf.mxu0
      %859 = vmatprep.mubr.bf16.mxu0 0
      %860 = vmatmul.mubr.bf16.gmra.mxu0 %v578
      %v861 = vpop.f32.mrf.mxu0
      %v862 = vadd.f32 %v325, %v861
      %v863 = vpop.f32.mrf.mxu0
      %v864 = vpop.f32.mrf.mxu0
      %v865 = vadd.f32 %v325, %v864
      %v866 = vpop.f32.mrf.mxu0
      %867 = vmatprep.mubr.bf16.mxu0 0
      %868 = vmatmul.mubr.bf16.gmra.mxu0 %v581
      %v869 = vpop.f32.mrf.mxu0
      %v870 = vadd.f32 %v325, %v869
      %v871 = vpop.f32.mrf.mxu0
      %v872 = vpop.f32.mrf.mxu0
      %v873 = vadd.f32 %v325, %v872
      %v874 = vpop.f32.mrf.mxu0
      %875 = vdwg.mxu0
      %v876 = vmax.f32 %v622, 0.0
      %v877 = vmax.f32 %v625, 0.0
      %v878 = vmax.f32 %v630, 0.0
      %v879 = vmax.f32 %v633, 0.0
      %v880 = vmax.f32 %v638, 0.0
      %v881 = vmax.f32 %v641, 0.0
      %v882 = vmax.f32 %v646, 0.0
      %v883 = vmax.f32 %v649, 0.0
      %v884 = vmax.f32 %v654, 0.0
      %v885 = vmax.f32 %v657, 0.0
      %v886 = vmax.f32 %v662, 0.0
      %v887 = vmax.f32 %v665, 0.0
      %v888 = vmax.f32 %v670, 0.0
      %v889 = vmax.f32 %v673, 0.0
      %v890 = vmax.f32 %v678, 0.0
      %v891 = vmax.f32 %v681, 0.0
      %v892 = vmax.f32 %v686, 0.0
      %v893 = vmax.f32 %v689, 0.0
      %v894 = vmax.f32 %v694, 0.0
      %v895 = vmax.f32 %v697, 0.0
      %v896 = vmax.f32 %v702, 0.0
      %v897 = vmax.f32 %v705, 0.0
      %v898 = vmax.f32 %v710, 0.0
      %v899 = vmax.f32 %v713, 0.0
      %v900 = vmax.f32 %v718, 0.0
      %v901 = vmax.f32 %v721, 0.0
      %v902 = vmax.f32 %v726, 0.0
      %v903 = vmax.f32 %v729, 0.0
      %v904 = vmax.f32 %v734, 0.0
      %v905 = vmax.f32 %v737, 0.0
      %v906 = vmax.f32 %v742, 0.0
      %v907 = vmax.f32 %v745, 0.0
      %v908 = vmax.f32 %v750, 0.0
      %v909 = vmax.f32 %v753, 0.0
      %v910 = vmax.f32 %v758, 0.0
      %v911 = vmax.f32 %v761, 0.0
      %v912 = vmax.f32 %v766, 0.0
      %v913 = vmax.f32 %v769, 0.0
      %v914 = vmax.f32 %v774, 0.0
      %v915 = vmax.f32 %v777, 0.0
      %v916 = vmax.f32 %v782, 0.0
      %v917 = vmax.f32 %v785, 0.0
      %v918 = vmax.f32 %v790, 0.0
      %v919 = vmax.f32 %v793, 0.0
      %v920 = vmax.f32 %v798, 0.0
      %v921 = vmax.f32 %v801, 0.0
      %v922 = vmax.f32 %v806, 0.0
      %v923 = vmax.f32 %v809, 0.0
      %v924 = vmax.f32 %v814, 0.0
      %v925 = vmax.f32 %v817, 0.0
      %v926 = vmax.f32 %v822, 0.0
      %v927 = vmax.f32 %v825, 0.0
      %v928 = vmax.f32 %v830, 0.0
      %v929 = vmax.f32 %v833, 0.0
      %v930 = vmax.f32 %v838, 0.0
      %v931 = vmax.f32 %v841, 0.0
      %v932 = vmax.f32 %v846, 0.0
      %v933 = vmax.f32 %v849, 0.0
      %v934 = vmax.f32 %v854, 0.0
      %v935 = vmax.f32 %v857, 0.0
      %v936 = vmax.f32 %v862, 0.0
      %v937 = vmax.f32 %v865, 0.0
      %v938 = vmax.f32 %v870, 0.0
      %v939 = vmax.f32 %v873, 0.0
      %v940 = vpack.c.bf16 %v877, %v876
      %v941 = vpack.c.bf16 %v879, %v878
      %v942 = vpack.c.bf16 %v881, %v880
      %v943 = vpack.c.bf16 %v883, %v882
      %v944 = vpack.c.bf16 %v885, %v884
      %v945 = vpack.c.bf16 %v887, %v886
      %v946 = vpack.c.bf16 %v889, %v888
      %v947 = vpack.c.bf16 %v891, %v890
      %v948 = vpack.c.bf16 %v893, %v892
      %v949 = vpack.c.bf16 %v895, %v894
      %v950 = vpack.c.bf16 %v897, %v896
      %v951 = vpack.c.bf16 %v899, %v898
      %v952 = vpack.c.bf16 %v901, %v900
      %v953 = vpack.c.bf16 %v903, %v902
      %v954 = vpack.c.bf16 %v905, %v904
      %v955 = vpack.c.bf16 %v907, %v906
      %v956 = vpack.c.bf16 %v909, %v908
      %v957 = vpack.c.bf16 %v911, %v910
      %v958 = vpack.c.bf16 %v913, %v912
      %v959 = vpack.c.bf16 %v915, %v914
      %v960 = vpack.c.bf16 %v917, %v916
      %v961 = vpack.c.bf16 %v919, %v918
      %v962 = vpack.c.bf16 %v921, %v920
      %v963 = vpack.c.bf16 %v923, %v922
      %v964 = vpack.c.bf16 %v925, %v924
      %v965 = vpack.c.bf16 %v927, %v926
      %v966 = vpack.c.bf16 %v929, %v928
      %v967 = vpack.c.bf16 %v931, %v930
      %v968 = vpack.c.bf16 %v933, %v932
      %v969 = vpack.c.bf16 %v935, %v934
      %v970 = vpack.c.bf16 %v937, %v936
      %v971 = vpack.c.bf16 %v939, %v938
      %v972 = vld [vmem:[%s4 + $0x1] sm:$0x1]
      %v973 = vld [vmem:[%s2] sm:$0xf]
      %v974 = vld [vmem:[%s2 + $0x4] sm:$0xf]
      %v975 = vld [vmem:[%s2 + $0x8] sm:$0xf]
      %v976 = vld [vmem:[%s2 + $0xc] sm:$0xf]
      %v977 = vld [vmem:[%s2 + $0x10] sm:$0xf]
      %v978 = vld [vmem:[%s2 + $0x14] sm:$0xf]
      %v979 = vld [vmem:[%s2 + $0x18] sm:$0xf]
      %v980 = vld [vmem:[%s2 + $0x1c] sm:$0xf]
      %v981 = vld [vmem:[%s2 + $0x20] sm:$0xf]
      %v982 = vld [vmem:[%s2 + $0x24] sm:$0xf]
      %v983 = vld [vmem:[%s2 + $0x28] sm:$0xf]
      %v984 = vld [vmem:[%s2 + $0x2c] sm:$0xf]
      %v985 = vld [vmem:[%s2 + $0x30] sm:$0xf]
      %v986 = vld [vmem:[%s2 + $0x34] sm:$0xf]
      %v987 = vld [vmem:[%s2 + $0x38] sm:$0xf]
      %v988 = vld [vmem:[%s2 + $0x3c] sm:$0xf]
      %v989 = vlaneseq
      %v990 = vshrl.u32 %v989, 7
      %v991 = vsub.s32 0, %v990
      %v992 = vrot.slane %v972, %v991
      %v1009 = vunpack.c.l.b16 %v973
      %v1010 = vunpack.c.l.b16 %v974
      %v1011 = vunpack.c.l.b16 %v975
      %v1012 = vunpack.c.l.b16 %v976
      %v1013 = vunpack.c.l.b16 %v977
      %v1014 = vunpack.c.l.b16 %v978
      %v1015 = vunpack.c.l.b16 %v979
      %v1016 = vunpack.c.l.b16 %v980
      %v1017 = vunpack.c.l.b16 %v981
      %v1018 = vunpack.c.l.b16 %v982
      %v1019 = vunpack.c.l.b16 %v983
      %v1020 = vunpack.c.l.b16 %v984
      %v1021 = vunpack.c.l.b16 %v985
      %v1022 = vunpack.c.l.b16 %v986
      %v1023 = vunpack.c.l.b16 %v987
      %v1024 = vunpack.c.l.b16 %v988
      %v1025 = vpack.c.b16 %v1010, %v1009
      %v1026 = vpack.c.b16 %v1012, %v1011
      %v1027 = vpack.c.b16 %v1014, %v1013
      %v1028 = vpack.c.b16 %v1016, %v1015
      %v1029 = vpack.c.b16 %v1018, %v1017
      %v1030 = vpack.c.b16 %v1020, %v1019
      %v1031 = vpack.c.b16 %v1022, %v1021
      %v1032 = vpack.c.b16 %v1024, %v1023
      %1041 = vmatprep.subr.bf16.mxu0 0
      %1042 = vmatpush1.bf16.msra.mxu0 %v1032
      %1043 = vmatprep.subr.bf16.mxu0 0
      %1044 = vmatpush1.bf16.msra.mxu0 %v1031
      %1045 = vmatprep.subr.bf16.mxu0 0
      %1046 = vmatpush1.bf16.msra.mxu0 %v1030
      %1047 = vmatprep.subr.bf16.mxu0 0
      %1048 = vmatpush1.bf16.msra.mxu0 %v1029
      %1049 = vmatprep.subr.bf16.mxu0 0
      %1050 = vmatpush1.bf16.msra.mxu0 %v1028
      %1051 = vmatprep.subr.bf16.mxu0 0
      %1052 = vmatpush1.bf16.msra.mxu0 %v1027
      %1053 = vmatprep.subr.bf16.mxu0 0
      %1054 = vmatpush1.bf16.msra.mxu0 %v1026
      %1055 = vmatprep.subr.bf16.mxu0 0
      %1056 = vmatpush1.bf16.msra.mxu0 %v1025
      %1057 = vmatprep.subr.bf16.mxu0 0
      %1058 = vmatpush2.bf16.msra.mxu0 0
      %1059 = vmatprep.subr.bf16.mxu0 0
      %1060 = vmatpush2.bf16.msra.mxu0 0
      %1061 = vmatprep.subr.bf16.mxu0 0
      %1062 = vmatpush2.bf16.msra.mxu0 0
      %1063 = vmatprep.subr.bf16.mxu0 0
      %1064 = vmatpush2.bf16.msra.mxu0 0
      %1065 = vmatprep.subr.bf16.mxu0 0
      %1066 = vmatpush2.bf16.msra.mxu0 0
      %1067 = vmatprep.subr.bf16.mxu0 0
      %1068 = vmatpush2.bf16.msra.mxu0 0
      %1069 = vmatprep.subr.bf16.mxu0 0
      %1070 = vmatpush2.bf16.msra.mxu0 0
      %1071 = vmatprep.subr.bf16.mxu0 0
      %1072 = vmatpush2.bf16.msra.mxu0 0
      %1073 = vmatprep.mubr.bf16.mxu0 0
      %1074 = vmatmul.mubr.bf16.gmra.mxu0 %v940
      %v1075 = vpop.f32.mrf.mxu0
      %v1076 = vadd.f32 %v992, %v1075
      %v1077 = vpop.f32.mrf.mxu0
      %v1078 = vpop.f32.mrf.mxu0
      %v1079 = vadd.f32 %v992, %v1078
      %v1080 = vpop.f32.mrf.mxu0
      %1081 = vmatprep.mubr.bf16.mxu0 0
      %1082 = vmatmul.mubr.bf16.gmra.mxu0 %v941
      %v1083 = vpop.f32.mrf.mxu0
      %v1084 = vadd.f32 %v992, %v1083
      %v1085 = vpop.f32.mrf.mxu0
      %v1086 = vpop.f32.mrf.mxu0
      %v1087 = vadd.f32 %v992, %v1086
      %v1088 = vpop.f32.mrf.mxu0
      %1089 = vmatprep.mubr.bf16.mxu0 0
      %1090 = vmatmul.mubr.bf16.gmra.mxu0 %v942
      %v1091 = vpop.f32.mrf.mxu0
      %v1092 = vadd.f32 %v992, %v1091
      %v1093 = vpop.f32.mrf.mxu0
      %v1094 = vpop.f32.mrf.mxu0
      %v1095 = vadd.f32 %v992, %v1094
      %v1096 = vpop.f32.mrf.mxu0
      %1097 = vmatprep.mubr.bf16.mxu0 0
      %1098 = vmatmul.mubr.bf16.gmra.mxu0 %v943
      %v1099 = vpop.f32.mrf.mxu0
      %v1100 = vadd.f32 %v992, %v1099
      %v1101 = vpop.f32.mrf.mxu0
      %v1102 = vpop.f32.mrf.mxu0
      %v1103 = vadd.f32 %v992, %v1102
      %v1104 = vpop.f32.mrf.mxu0
      %1105 = vmatprep.mubr.bf16.mxu0 0
      %1106 = vmatmul.mubr.bf16.gmra.mxu0 %v944
      %v1107 = vpop.f32.mrf.mxu0
      %v1108 = vadd.f32 %v992, %v1107
      %v1109 = vpop.f32.mrf.mxu0
      %v1110 = vpop.f32.mrf.mxu0
      %v1111 = vadd.f32 %v992, %v1110
      %v1112 = vpop.f32.mrf.mxu0
      %1113 = vmatprep.mubr.bf16.mxu0 0
      %1114 = vmatmul.mubr.bf16.gmra.mxu0 %v945
      %v1115 = vpop.f32.mrf.mxu0
      %v1116 = vadd.f32 %v992, %v1115
      %v1117 = vpop.f32.mrf.mxu0
      %v1118 = vpop.f32.mrf.mxu0
      %v1119 = vadd.f32 %v992, %v1118
      %v1120 = vpop.f32.mrf.mxu0
      %1121 = vmatprep.mubr.bf16.mxu0 0
      %1122 = vmatmul.mubr.bf16.gmra.mxu0 %v946
      %v1123 = vpop.f32.mrf.mxu0
      %v1124 = vadd.f32 %v992, %v1123
      %v1125 = vpop.f32.mrf.mxu0
      %v1126 = vpop.f32.mrf.mxu0
      %v1127 = vadd.f32 %v992, %v1126
      %v1128 = vpop.f32.mrf.mxu0
      %1129 = vmatprep.mubr.bf16.mxu0 0
      %1130 = vmatmul.mubr.bf16.gmra.mxu0 %v947
      %v1131 = vpop.f32.mrf.mxu0
      %v1132 = vadd.f32 %v992, %v1131
      %v1133 = vpop.f32.mrf.mxu0
      %v1134 = vpop.f32.mrf.mxu0
      %v1135 = vadd.f32 %v992, %v1134
      %v1136 = vpop.f32.mrf.mxu0
      %1137 = vmatprep.mubr.bf16.mxu0 0
      %1138 = vmatmul.mubr.bf16.gmra.mxu0 %v948
      %v1139 = vpop.f32.mrf.mxu0
      %v1140 = vadd.f32 %v992, %v1139
      %v1141 = vpop.f32.mrf.mxu0
      %v1142 = vpop.f32.mrf.mxu0
      %v1143 = vadd.f32 %v992, %v1142
      %v1144 = vpop.f32.mrf.mxu0
      %1145 = vmatprep.mubr.bf16.mxu0 0
      %1146 = vmatmul.mubr.bf16.gmra.mxu0 %v949
      %v1147 = vpop.f32.mrf.mxu0
      %v1148 = vadd.f32 %v992, %v1147
      %v1149 = vpop.f32.mrf.mxu0
      %v1150 = vpop.f32.mrf.mxu0
      %v1151 = vadd.f32 %v992, %v1150
      %v1152 = vpop.f32.mrf.mxu0
      %1153 = vmatprep.mubr.bf16.mxu0 0
      %1154 = vmatmul.mubr.bf16.gmra.mxu0 %v950
      %v1155 = vpop.f32.mrf.mxu0
      %v1156 = vadd.f32 %v992, %v1155
      %v1157 = vpop.f32.mrf.mxu0
      %v1158 = vpop.f32.mrf.mxu0
      %v1159 = vadd.f32 %v992, %v1158
      %v1160 = vpop.f32.mrf.mxu0
      %1161 = vmatprep.mubr.bf16.mxu0 0
      %1162 = vmatmul.mubr.bf16.gmra.mxu0 %v951
      %v1163 = vpop.f32.mrf.mxu0
      %v1164 = vadd.f32 %v992, %v1163
      %v1165 = vpop.f32.mrf.mxu0
      %v1166 = vpop.f32.mrf.mxu0
      %v1167 = vadd.f32 %v992, %v1166
      %v1168 = vpop.f32.mrf.mxu0
      %1169 = vmatprep.mubr.bf16.mxu0 0
      %1170 = vmatmul.mubr.bf16.gmra.mxu0 %v952
      %v1171 = vpop.f32.mrf.mxu0
      %v1172 = vadd.f32 %v992, %v1171
      %v1173 = vpop.f32.mrf.mxu0
      %v1174 = vpop.f32.mrf.mxu0
      %v1175 = vadd.f32 %v992, %v1174
      %v1176 = vpop.f32.mrf.mxu0
      %1177 = vmatprep.mubr.bf16.mxu0 0
      %1178 = vmatmul.mubr.bf16.gmra.mxu0 %v953
      %v1179 = vpop.f32.mrf.mxu0
      %v1180 = vadd.f32 %v992, %v1179
      %v1181 = vpop.f32.mrf.mxu0
      %v1182 = vpop.f32.mrf.mxu0
      %v1183 = vadd.f32 %v992, %v1182
      %v1184 = vpop.f32.mrf.mxu0
      %1185 = vmatprep.mubr.bf16.mxu0 0
      %1186 = vmatmul.mubr.bf16.gmra.mxu0 %v954
      %v1187 = vpop.f32.mrf.mxu0
      %v1188 = vadd.f32 %v992, %v1187
      %v1189 = vpop.f32.mrf.mxu0
      %v1190 = vpop.f32.mrf.mxu0
      %v1191 = vadd.f32 %v992, %v1190
      %v1192 = vpop.f32.mrf.mxu0
      %1193 = vmatprep.mubr.bf16.mxu0 0
      %1194 = vmatmul.mubr.bf16.gmra.mxu0 %v955
      %v1195 = vpop.f32.mrf.mxu0
      %v1196 = vadd.f32 %v992, %v1195
      %v1197 = vpop.f32.mrf.mxu0
      %v1198 = vpop.f32.mrf.mxu0
      %v1199 = vadd.f32 %v992, %v1198
      %v1200 = vpop.f32.mrf.mxu0
      %1201 = vmatprep.mubr.bf16.mxu0 0
      %1202 = vmatmul.mubr.bf16.gmra.mxu0 %v956
      %v1203 = vpop.f32.mrf.mxu0
      %v1204 = vadd.f32 %v992, %v1203
      %v1205 = vpop.f32.mrf.mxu0
      %v1206 = vpop.f32.mrf.mxu0
      %v1207 = vadd.f32 %v992, %v1206
      %v1208 = vpop.f32.mrf.mxu0
      %1209 = vmatprep.mubr.bf16.mxu0 0
      %1210 = vmatmul.mubr.bf16.gmra.mxu0 %v957
      %v1211 = vpop.f32.mrf.mxu0
      %v1212 = vadd.f32 %v992, %v1211
      %v1213 = vpop.f32.mrf.mxu0
      %v1214 = vpop.f32.mrf.mxu0
      %v1215 = vadd.f32 %v992, %v1214
      %v1216 = vpop.f32.mrf.mxu0
      %1217 = vmatprep.mubr.bf16.mxu0 0
      %1218 = vmatmul.mubr.bf16.gmra.mxu0 %v958
      %v1219 = vpop.f32.mrf.mxu0
      %v1220 = vadd.f32 %v992, %v1219
      %v1221 = vpop.f32.mrf.mxu0
      %v1222 = vpop.f32.mrf.mxu0
      %v1223 = vadd.f32 %v992, %v1222
      %v1224 = vpop.f32.mrf.mxu0
      %1225 = vmatprep.mubr.bf16.mxu0 0
      %1226 = vmatmul.mubr.bf16.gmra.mxu0 %v959
      %v1227 = vpop.f32.mrf.mxu0
      %v1228 = vadd.f32 %v992, %v1227
      %v1229 = vpop.f32.mrf.mxu0
      %v1230 = vpop.f32.mrf.mxu0
      %v1231 = vadd.f32 %v992, %v1230
      %v1232 = vpop.f32.mrf.mxu0
      %1233 = vmatprep.mubr.bf16.mxu0 0
      %1234 = vmatmul.mubr.bf16.gmra.mxu0 %v960
      %v1235 = vpop.f32.mrf.mxu0
      %v1236 = vadd.f32 %v992, %v1235
      %v1237 = vpop.f32.mrf.mxu0
      %v1238 = vpop.f32.mrf.mxu0
      %v1239 = vadd.f32 %v992, %v1238
      %v1240 = vpop.f32.mrf.mxu0
      %1241 = vmatprep.mubr.bf16.mxu0 0
      %1242 = vmatmul.mubr.bf16.gmra.mxu0 %v961
      %v1243 = vpop.f32.mrf.mxu0
      %v1244 = vadd.f32 %v992, %v1243
      %v1245 = vpop.f32.mrf.mxu0
      %v1246 = vpop.f32.mrf.mxu0
      %v1247 = vadd.f32 %v992, %v1246
      %v1248 = vpop.f32.mrf.mxu0
      %1249 = vmatprep.mubr.bf16.mxu0 0
      %1250 = vmatmul.mubr.bf16.gmra.mxu0 %v962
      %v1251 = vpop.f32.mrf.mxu0
      %v1252 = vadd.f32 %v992, %v1251
      %v1253 = vpop.f32.mrf.mxu0
      %v1254 = vpop.f32.mrf.mxu0
      %v1255 = vadd.f32 %v992, %v1254
      %v1256 = vpop.f32.mrf.mxu0
      %1257 = vmatprep.mubr.bf16.mxu0 0
      %1258 = vmatmul.mubr.bf16.gmra.mxu0 %v963
      %v1259 = vpop.f32.mrf.mxu0
      %v1260 = vadd.f32 %v992, %v1259
      %v1261 = vpop.f32.mrf.mxu0
      %v1262 = vpop.f32.mrf.mxu0
      %v1263 = vadd.f32 %v992, %v1262
      %v1264 = vpop.f32.mrf.mxu0
      %1265 = vmatprep.mubr.bf16.mxu0 0
      %1266 = vmatmul.mubr.bf16.gmra.mxu0 %v964
      %v1267 = vpop.f32.mrf.mxu0
      %v1268 = vadd.f32 %v992, %v1267
      %v1269 = vpop.f32.mrf.mxu0
      %v1270 = vpop.f32.mrf.mxu0
      %v1271 = vadd.f32 %v992, %v1270
      %v1272 = vpop.f32.mrf.mxu0
      %1273 = vmatprep.mubr.bf16.mxu0 0
      %1274 = vmatmul.mubr.bf16.gmra.mxu0 %v965
      %v1275 = vpop.f32.mrf.mxu0
      %v1276 = vadd.f32 %v992, %v1275
      %v1277 = vpop.f32.mrf.mxu0
      %v1278 = vpop.f32.mrf.mxu0
      %v1279 = vadd.f32 %v992, %v1278
      %v1280 = vpop.f32.mrf.mxu0
      %1281 = vmatprep.mubr.bf16.mxu0 0
      %1282 = vmatmul.mubr.bf16.gmra.mxu0 %v966
      %v1283 = vpop.f32.mrf.mxu0
      %v1284 = vadd.f32 %v992, %v1283
      %v1285 = vpop.f32.mrf.mxu0
      %v1286 = vpop.f32.mrf.mxu0
      %v1287 = vadd.f32 %v992, %v1286
      %v1288 = vpop.f32.mrf.mxu0
      %1289 = vmatprep.mubr.bf16.mxu0 0
      %1290 = vmatmul.mubr.bf16.gmra.mxu0 %v967
      %v1291 = vpop.f32.mrf.mxu0
      %v1292 = vadd.f32 %v992, %v1291
      %v1293 = vpop.f32.mrf.mxu0
      %v1294 = vpop.f32.mrf.mxu0
      %v1295 = vadd.f32 %v992, %v1294
      %v1296 = vpop.f32.mrf.mxu0
      %1297 = vmatprep.mubr.bf16.mxu0 0
      %1298 = vmatmul.mubr.bf16.gmra.mxu0 %v968
      %v1299 = vpop.f32.mrf.mxu0
      %v1300 = vadd.f32 %v992, %v1299
      %v1301 = vpop.f32.mrf.mxu0
      %v1302 = vpop.f32.mrf.mxu0
      %v1303 = vadd.f32 %v992, %v1302
      %v1304 = vpop.f32.mrf.mxu0
      %1305 = vmatprep.mubr.bf16.mxu0 0
      %1306 = vmatmul.mubr.bf16.gmra.mxu0 %v969
      %v1307 = vpop.f32.mrf.mxu0
      %v1308 = vadd.f32 %v992, %v1307
      %v1309 = vpop.f32.mrf.mxu0
      %v1310 = vpop.f32.mrf.mxu0
      %v1311 = vadd.f32 %v992, %v1310
      %v1312 = vpop.f32.mrf.mxu0
      %1313 = vmatprep.mubr.bf16.mxu0 0
      %1314 = vmatmul.mubr.bf16.gmra.mxu0 %v970
      %v1315 = vpop.f32.mrf.mxu0
      %v1316 = vadd.f32 %v992, %v1315
      %v1317 = vpop.f32.mrf.mxu0
      %v1318 = vpop.f32.mrf.mxu0
      %v1319 = vadd.f32 %v992, %v1318
      %v1320 = vpop.f32.mrf.mxu0
      %1321 = vmatprep.mubr.bf16.mxu0 0
      %1322 = vmatmul.mubr.bf16.gmra.mxu0 %v971
      %v1323 = vpop.f32.mrf.mxu0
      %v1324 = vadd.f32 %v992, %v1323
      %v1325 = vpop.f32.mrf.mxu0
      %v1326 = vpop.f32.mrf.mxu0
      %v1327 = vadd.f32 %v992, %v1326
      %v1328 = vpop.f32.mrf.mxu0
      %1329 = vdwg.mxu0
      %v1330 = vmax.f32 %v1076, 0.0
      %v1331 = vmax.f32 %v1079, 0.0
      %v1332 = vmax.f32 %v1084, 0.0
      %v1333 = vmax.f32 %v1087, 0.0
      %v1334 = vmax.f32 %v1092, 0.0
      %v1335 = vmax.f32 %v1095, 0.0
      %v1336 = vmax.f32 %v1100, 0.0
      %v1337 = vmax.f32 %v1103, 0.0
      %v1338 = vmax.f32 %v1108, 0.0
      %v1339 = vmax.f32 %v1111, 0.0
      %v1340 = vmax.f32 %v1116, 0.0
      %v1341 = vmax.f32 %v1119, 0.0
      %v1342 = vmax.f32 %v1124, 0.0
      %v1343 = vmax.f32 %v1127, 0.0
      %v1344 = vmax.f32 %v1132, 0.0
      %v1345 = vmax.f32 %v1135, 0.0
      %v1346 = vmax.f32 %v1140, 0.0
      %v1347 = vmax.f32 %v1143, 0.0
      %v1348 = vmax.f32 %v1148, 0.0
      %v1349 = vmax.f32 %v1151, 0.0
      %v1350 = vmax.f32 %v1156, 0.0
      %v1351 = vmax.f32 %v1159, 0.0
      %v1352 = vmax.f32 %v1164, 0.0
      %v1353 = vmax.f32 %v1167, 0.0
      %v1354 = vmax.f32 %v1172, 0.0
      %v1355 = vmax.f32 %v1175, 0.0
      %v1356 = vmax.f32 %v1180, 0.0
      %v1357 = vmax.f32 %v1183, 0.0
      %v1358 = vmax.f32 %v1188, 0.0
      %v1359 = vmax.f32 %v1191, 0.0
      %v1360 = vmax.f32 %v1196, 0.0
      %v1361 = vmax.f32 %v1199, 0.0
      %v1362 = vmax.f32 %v1204, 0.0
      %v1363 = vmax.f32 %v1207, 0.0
      %v1364 = vmax.f32 %v1212, 0.0
      %v1365 = vmax.f32 %v1215, 0.0
      %v1366 = vmax.f32 %v1220, 0.0
      %v1367 = vmax.f32 %v1223, 0.0
      %v1368 = vmax.f32 %v1228, 0.0
      %v1369 = vmax.f32 %v1231, 0.0
      %v1370 = vmax.f32 %v1236, 0.0
      %v1371 = vmax.f32 %v1239, 0.0
      %v1372 = vmax.f32 %v1244, 0.0
      %v1373 = vmax.f32 %v1247, 0.0
      %v1374 = vmax.f32 %v1252, 0.0
      %v1375 = vmax.f32 %v1255, 0.0
      %v1376 = vmax.f32 %v1260, 0.0
      %v1377 = vmax.f32 %v1263, 0.0
      %v1378 = vmax.f32 %v1268, 0.0
      %v1379 = vmax.f32 %v1271, 0.0
      %v1380 = vmax.f32 %v1276, 0.0
      %v1381 = vmax.f32 %v1279, 0.0
      %v1382 = vmax.f32 %v1284, 0.0
      %v1383 = vmax.f32 %v1287, 0.0
      %v1384 = vmax.f32 %v1292, 0.0
      %v1385 = vmax.f32 %v1295, 0.0
      %v1386 = vmax.f32 %v1300, 0.0
      %v1387 = vmax.f32 %v1303, 0.0
      %v1388 = vmax.f32 %v1308, 0.0
      %v1389 = vmax.f32 %v1311, 0.0
      %v1390 = vmax.f32 %v1316, 0.0
      %v1391 = vmax.f32 %v1319, 0.0
      %v1392 = vmax.f32 %v1324, 0.0
      %v1393 = vmax.f32 %v1327, 0.0
      %v1394 = vpack.c.bf16 %v1331, %v1330
      %v1395 = vpack.c.bf16 %v1333, %v1332
      %v1396 = vpack.c.bf16 %v1335, %v1334
      %v1397 = vpack.c.bf16 %v1337, %v1336
      %v1398 = vpack.c.bf16 %v1339, %v1338
      %v1399 = vpack.c.bf16 %v1341, %v1340
      %v1400 = vpack.c.bf16 %v1343, %v1342
      %v1401 = vpack.c.bf16 %v1345, %v1344
      %v1402 = vpack.c.bf16 %v1347, %v1346
      %v1403 = vpack.c.bf16 %v1349, %v1348
      %v1404 = vpack.c.bf16 %v1351, %v1350
      %v1405 = vpack.c.bf16 %v1353, %v1352
      %v1406 = vpack.c.bf16 %v1355, %v1354
      %v1407 = vpack.c.bf16 %v1357, %v1356
      %v1408 = vpack.c.bf16 %v1359, %v1358
      %v1409 = vpack.c.bf16 %v1361, %v1360
      %v1410 = vpack.c.bf16 %v1363, %v1362
      %v1411 = vpack.c.bf16 %v1365, %v1364
      %v1412 = vpack.c.bf16 %v1367, %v1366
      %v1413 = vpack.c.bf16 %v1369, %v1368
      %v1414 = vpack.c.bf16 %v1371, %v1370
      %v1415 = vpack.c.bf16 %v1373, %v1372
      %v1416 = vpack.c.bf16 %v1375, %v1374
      %v1417 = vpack.c.bf16 %v1377, %v1376
      %v1418 = vpack.c.bf16 %v1379, %v1378
      %v1419 = vpack.c.bf16 %v1381, %v1380
      %v1420 = vpack.c.bf16 %v1383, %v1382
      %v1421 = vpack.c.bf16 %v1385, %v1384
      %v1422 = vpack.c.bf16 %v1387, %v1386
      %v1423 = vpack.c.bf16 %v1389, %v1388
      %v1424 = vpack.c.bf16 %v1391, %v1390
      %v1425 = vpack.c.bf16 %v1393, %v1392
      %v1426 = vld [vmem:[%s4 + $0x2] sm:$0x1]
      %s1427 = scalar_lea.vmem %s2, 64
      %v1428 = vld [vmem:[%s1427] sm:$0xf]
      %v1429 = vld [vmem:[%s1427 + $0x4] sm:$0xf]
      %v1430 = vld [vmem:[%s1427 + $0x8] sm:$0xf]
      %v1431 = vld [vmem:[%s1427 + $0xc] sm:$0xf]
      %v1432 = vld [vmem:[%s1427 + $0x10] sm:$0xf]
      %v1433 = vld [vmem:[%s1427 + $0x14] sm:$0xf]
      %v1434 = vld [vmem:[%s1427 + $0x18] sm:$0xf]
      %v1435 = vld [vmem:[%s1427 + $0x1c] sm:$0xf]
      %v1436 = vld [vmem:[%s1427 + $0x20] sm:$0xf]
      %v1437 = vld [vmem:[%s1427 + $0x24] sm:$0xf]
      %v1438 = vld [vmem:[%s1427 + $0x28] sm:$0xf]
      %v1439 = vld [vmem:[%s1427 + $0x2c] sm:$0xf]
      %v1440 = vld [vmem:[%s1427 + $0x30] sm:$0xf]
      %v1441 = vld [vmem:[%s1427 + $0x34] sm:$0xf]
      %v1442 = vld [vmem:[%s1427 + $0x38] sm:$0xf]
      %v1443 = vld [vmem:[%s1427 + $0x3c] sm:$0xf]
      %v1444 = vlaneseq
      %v1445 = vshrl.u32 %v1444, 7
      %v1446 = vsub.s32 0, %v1445
      %v1447 = vrot.slane %v1426, %v1446
      %v1464 = vunpack.c.l.b16 %v1428
      %v1465 = vunpack.c.l.b16 %v1429
      %v1466 = vunpack.c.l.b16 %v1430
      %v1467 = vunpack.c.l.b16 %v1431
      %v1468 = vunpack.c.l.b16 %v1432
      %v1469 = vunpack.c.l.b16 %v1433
      %v1470 = vunpack.c.l.b16 %v1434
      %v1471 = vunpack.c.l.b16 %v1435
      %v1472 = vunpack.c.l.b16 %v1436
      %v1473 = vunpack.c.l.b16 %v1437
      %v1474 = vunpack.c.l.b16 %v1438
      %v1475 = vunpack.c.l.b16 %v1439
      %v1476 = vunpack.c.l.b16 %v1440
      %v1477 = vunpack.c.l.b16 %v1441
      %v1478 = vunpack.c.l.b16 %v1442
      %v1479 = vunpack.c.l.b16 %v1443
      %v1480 = vpack.c.b16 %v1465, %v1464
      %v1481 = vpack.c.b16 %v1467, %v1466
      %v1482 = vpack.c.b16 %v1469, %v1468
      %v1483 = vpack.c.b16 %v1471, %v1470
      %v1484 = vpack.c.b16 %v1473, %v1472
      %v1485 = vpack.c.b16 %v1475, %v1474
      %v1486 = vpack.c.b16 %v1477, %v1476
      %v1487 = vpack.c.b16 %v1479, %v1478
      %1496 = vmatprep.subr.bf16.mxu0 0
      %1497 = vmatpush1.bf16.msra.mxu0 %v1487
      %1498 = vmatprep.subr.bf16.mxu0 0
      %1499 = vmatpush1.bf16.msra.mxu0 %v1486
      %1500 = vmatprep.subr.bf16.mxu0 0
      %1501 = vmatpush1.bf16.msra.mxu0 %v1485
      %1502 = vmatprep.subr.bf16.mxu0 0
      %1503 = vmatpush1.bf16.msra.mxu0 %v1484
      %1504 = vmatprep.subr.bf16.mxu0 0
      %1505 = vmatpush1.bf16.msra.mxu0 %v1483
      %1506 = vmatprep.subr.bf16.mxu0 0
      %1507 = vmatpush1.bf16.msra.mxu0 %v1482
      %1508 = vmatprep.subr.bf16.mxu0 0
      %1509 = vmatpush1.bf16.msra.mxu0 %v1481
      %1510 = vmatprep.subr.bf16.mxu0 0
      %1511 = vmatpush1.bf16.msra.mxu0 %v1480
      %1512 = vmatprep.subr.bf16.mxu0 0
      %1513 = vmatpush2.bf16.msra.mxu0 0
      %1514 = vmatprep.subr.bf16.mxu0 0
      %1515 = vmatpush2.bf16.msra.mxu0 0
      %1516 = vmatprep.subr.bf16.mxu0 0
      %1517 = vmatpush2.bf16.msra.mxu0 0
      %1518 = vmatprep.subr.bf16.mxu0 0
      %1519 = vmatpush2.bf16.msra.mxu0 0
      %1520 = vmatprep.subr.bf16.mxu0 0
      %1521 = vmatpush2.bf16.msra.mxu0 0
      %1522 = vmatprep.subr.bf16.mxu0 0
      %1523 = vmatpush2.bf16.msra.mxu0 0
      %1524 = vmatprep.subr.bf16.mxu0 0
      %1525 = vmatpush2.bf16.msra.mxu0 0
      %1526 = vmatprep.subr.bf16.mxu0 0
      %1527 = vmatpush2.bf16.msra.mxu0 0
      %1528 = vmatprep.mubr.bf16.mxu0 0
      %1529 = vmatmul.mubr.bf16.gmra.mxu0 %v1394
      %v1530 = vpop.f32.mrf.mxu0
      %v1531 = vadd.f32 %v1447, %v1530
      %v1532 = vpop.f32.mrf.mxu0
      %v1533 = vpop.f32.mrf.mxu0
      %v1534 = vadd.f32 %v1447, %v1533
      %v1535 = vpop.f32.mrf.mxu0
      %1536 = vmatprep.mubr.bf16.mxu0 0
      %1537 = vmatmul.mubr.bf16.gmra.mxu0 %v1395
      %v1538 = vpop.f32.mrf.mxu0
      %v1539 = vadd.f32 %v1447, %v1538
      %v1540 = vpop.f32.mrf.mxu0
      %v1541 = vpop.f32.mrf.mxu0
      %v1542 = vadd.f32 %v1447, %v1541
      %v1543 = vpop.f32.mrf.mxu0
      %1544 = vmatprep.mubr.bf16.mxu0 0
      %1545 = vmatmul.mubr.bf16.gmra.mxu0 %v1396
      %v1546 = vpop.f32.mrf.mxu0
      %v1547 = vadd.f32 %v1447, %v1546
      %v1548 = vpop.f32.mrf.mxu0
      %v1549 = vpop.f32.mrf.mxu0
      %v1550 = vadd.f32 %v1447, %v1549
      %v1551 = vpop.f32.mrf.mxu0
      %1552 = vmatprep.mubr.bf16.mxu0 0
      %1553 = vmatmul.mubr.bf16.gmra.mxu0 %v1397
      %v1554 = vpop.f32.mrf.mxu0
      %v1555 = vadd.f32 %v1447, %v1554
      %v1556 = vpop.f32.mrf.mxu0
      %v1557 = vpop.f32.mrf.mxu0
      %v1558 = vadd.f32 %v1447, %v1557
      %v1559 = vpop.f32.mrf.mxu0
      %1560 = vmatprep.mubr.bf16.mxu0 0
      %1561 = vmatmul.mubr.bf16.gmra.mxu0 %v1398
      %v1562 = vpop.f32.mrf.mxu0
      %v1563 = vadd.f32 %v1447, %v1562
      %v1564 = vpop.f32.mrf.mxu0
      %v1565 = vpop.f32.mrf.mxu0
      %v1566 = vadd.f32 %v1447, %v1565
      %v1567 = vpop.f32.mrf.mxu0
      %1568 = vmatprep.mubr.bf16.mxu0 0
      %1569 = vmatmul.mubr.bf16.gmra.mxu0 %v1399
      %v1570 = vpop.f32.mrf.mxu0
      %v1571 = vadd.f32 %v1447, %v1570
      %v1572 = vpop.f32.mrf.mxu0
      %v1573 = vpop.f32.mrf.mxu0
      %v1574 = vadd.f32 %v1447, %v1573
      %v1575 = vpop.f32.mrf.mxu0
      %1576 = vmatprep.mubr.bf16.mxu0 0
      %1577 = vmatmul.mubr.bf16.gmra.mxu0 %v1400
      %v1578 = vpop.f32.mrf.mxu0
      %v1579 = vadd.f32 %v1447, %v1578
      %v1580 = vpop.f32.mrf.mxu0
      %v1581 = vpop.f32.mrf.mxu0
      %v1582 = vadd.f32 %v1447, %v1581
      %v1583 = vpop.f32.mrf.mxu0
      %1584 = vmatprep.mubr.bf16.mxu0 0
      %1585 = vmatmul.mubr.bf16.gmra.mxu0 %v1401
      %v1586 = vpop.f32.mrf.mxu0
      %v1587 = vadd.f32 %v1447, %v1586
      %v1588 = vpop.f32.mrf.mxu0
      %v1589 = vpop.f32.mrf.mxu0
      %v1590 = vadd.f32 %v1447, %v1589
      %v1591 = vpop.f32.mrf.mxu0
      %1592 = vmatprep.mubr.bf16.mxu0 0
      %1593 = vmatmul.mubr.bf16.gmra.mxu0 %v1402
      %v1594 = vpop.f32.mrf.mxu0
      %v1595 = vadd.f32 %v1447, %v1594
      %v1596 = vpop.f32.mrf.mxu0
      %v1597 = vpop.f32.mrf.mxu0
      %v1598 = vadd.f32 %v1447, %v1597
      %v1599 = vpop.f32.mrf.mxu0
      %1600 = vmatprep.mubr.bf16.mxu0 0
      %1601 = vmatmul.mubr.bf16.gmra.mxu0 %v1403
      %v1602 = vpop.f32.mrf.mxu0
      %v1603 = vadd.f32 %v1447, %v1602
      %v1604 = vpop.f32.mrf.mxu0
      %v1605 = vpop.f32.mrf.mxu0
      %v1606 = vadd.f32 %v1447, %v1605
      %v1607 = vpop.f32.mrf.mxu0
      %1608 = vmatprep.mubr.bf16.mxu0 0
      %1609 = vmatmul.mubr.bf16.gmra.mxu0 %v1404
      %v1610 = vpop.f32.mrf.mxu0
      %v1611 = vadd.f32 %v1447, %v1610
      %v1612 = vpop.f32.mrf.mxu0
      %v1613 = vpop.f32.mrf.mxu0
      %v1614 = vadd.f32 %v1447, %v1613
      %v1615 = vpop.f32.mrf.mxu0
      %1616 = vmatprep.mubr.bf16.mxu0 0
      %1617 = vmatmul.mubr.bf16.gmra.mxu0 %v1405
      %v1618 = vpop.f32.mrf.mxu0
      %v1619 = vadd.f32 %v1447, %v1618
      %v1620 = vpop.f32.mrf.mxu0
      %v1621 = vpop.f32.mrf.mxu0
      %v1622 = vadd.f32 %v1447, %v1621
      %v1623 = vpop.f32.mrf.mxu0
      %1624 = vmatprep.mubr.bf16.mxu0 0
      %1625 = vmatmul.mubr.bf16.gmra.mxu0 %v1406
      %v1626 = vpop.f32.mrf.mxu0
      %v1627 = vadd.f32 %v1447, %v1626
      %v1628 = vpop.f32.mrf.mxu0
      %v1629 = vpop.f32.mrf.mxu0
      %v1630 = vadd.f32 %v1447, %v1629
      %v1631 = vpop.f32.mrf.mxu0
      %1632 = vmatprep.mubr.bf16.mxu0 0
      %1633 = vmatmul.mubr.bf16.gmra.mxu0 %v1407
      %v1634 = vpop.f32.mrf.mxu0
      %v1635 = vadd.f32 %v1447, %v1634
      %v1636 = vpop.f32.mrf.mxu0
      %v1637 = vpop.f32.mrf.mxu0
      %v1638 = vadd.f32 %v1447, %v1637
      %v1639 = vpop.f32.mrf.mxu0
      %1640 = vmatprep.mubr.bf16.mxu0 0
      %1641 = vmatmul.mubr.bf16.gmra.mxu0 %v1408
      %v1642 = vpop.f32.mrf.mxu0
      %v1643 = vadd.f32 %v1447, %v1642
      %v1644 = vpop.f32.mrf.mxu0
      %v1645 = vpop.f32.mrf.mxu0
      %v1646 = vadd.f32 %v1447, %v1645
      %v1647 = vpop.f32.mrf.mxu0
      %1648 = vmatprep.mubr.bf16.mxu0 0
      %1649 = vmatmul.mubr.bf16.gmra.mxu0 %v1409
      %v1650 = vpop.f32.mrf.mxu0
      %v1651 = vadd.f32 %v1447, %v1650
      %v1652 = vpop.f32.mrf.mxu0
      %v1653 = vpop.f32.mrf.mxu0
      %v1654 = vadd.f32 %v1447, %v1653
      %v1655 = vpop.f32.mrf.mxu0
      %1656 = vmatprep.mubr.bf16.mxu0 0
      %1657 = vmatmul.mubr.bf16.gmra.mxu0 %v1410
      %v1658 = vpop.f32.mrf.mxu0
      %v1659 = vadd.f32 %v1447, %v1658
      %v1660 = vpop.f32.mrf.mxu0
      %v1661 = vpop.f32.mrf.mxu0
      %v1662 = vadd.f32 %v1447, %v1661
      %v1663 = vpop.f32.mrf.mxu0
      %1664 = vmatprep.mubr.bf16.mxu0 0
      %1665 = vmatmul.mubr.bf16.gmra.mxu0 %v1411
      %v1666 = vpop.f32.mrf.mxu0
      %v1667 = vadd.f32 %v1447, %v1666
      %v1668 = vpop.f32.mrf.mxu0
      %v1669 = vpop.f32.mrf.mxu0
      %v1670 = vadd.f32 %v1447, %v1669
      %v1671 = vpop.f32.mrf.mxu0
      %1672 = vmatprep.mubr.bf16.mxu0 0
      %1673 = vmatmul.mubr.bf16.gmra.mxu0 %v1412
      %v1674 = vpop.f32.mrf.mxu0
      %v1675 = vadd.f32 %v1447, %v1674
      %v1676 = vpop.f32.mrf.mxu0
      %v1677 = vpop.f32.mrf.mxu0
      %v1678 = vadd.f32 %v1447, %v1677
      %v1679 = vpop.f32.mrf.mxu0
      %1680 = vmatprep.mubr.bf16.mxu0 0
      %1681 = vmatmul.mubr.bf16.gmra.mxu0 %v1413
      %v1682 = vpop.f32.mrf.mxu0
      %v1683 = vadd.f32 %v1447, %v1682
      %v1684 = vpop.f32.mrf.mxu0
      %v1685 = vpop.f32.mrf.mxu0
      %v1686 = vadd.f32 %v1447, %v1685
      %v1687 = vpop.f32.mrf.mxu0
      %1688 = vmatprep.mubr.bf16.mxu0 0
      %1689 = vmatmul.mubr.bf16.gmra.mxu0 %v1414
      %v1690 = vpop.f32.mrf.mxu0
      %v1691 = vadd.f32 %v1447, %v1690
      %v1692 = vpop.f32.mrf.mxu0
      %v1693 = vpop.f32.mrf.mxu0
      %v1694 = vadd.f32 %v1447, %v1693
      %v1695 = vpop.f32.mrf.mxu0
      %1696 = vmatprep.mubr.bf16.mxu0 0
      %1697 = vmatmul.mubr.bf16.gmra.mxu0 %v1415
      %v1698 = vpop.f32.mrf.mxu0
      %v1699 = vadd.f32 %v1447, %v1698
      %v1700 = vpop.f32.mrf.mxu0
      %v1701 = vpop.f32.mrf.mxu0
      %v1702 = vadd.f32 %v1447, %v1701
      %v1703 = vpop.f32.mrf.mxu0
      %1704 = vmatprep.mubr.bf16.mxu0 0
      %1705 = vmatmul.mubr.bf16.gmra.mxu0 %v1416
      %v1706 = vpop.f32.mrf.mxu0
      %v1707 = vadd.f32 %v1447, %v1706
      %v1708 = vpop.f32.mrf.mxu0
      %v1709 = vpop.f32.mrf.mxu0
      %v1710 = vadd.f32 %v1447, %v1709
      %v1711 = vpop.f32.mrf.mxu0
      %1712 = vmatprep.mubr.bf16.mxu0 0
      %1713 = vmatmul.mubr.bf16.gmra.mxu0 %v1417
      %v1714 = vpop.f32.mrf.mxu0
      %v1715 = vadd.f32 %v1447, %v1714
      %v1716 = vpop.f32.mrf.mxu0
      %v1717 = vpop.f32.mrf.mxu0
      %v1718 = vadd.f32 %v1447, %v1717
      %v1719 = vpop.f32.mrf.mxu0
      %1720 = vmatprep.mubr.bf16.mxu0 0
      %1721 = vmatmul.mubr.bf16.gmra.mxu0 %v1418
      %v1722 = vpop.f32.mrf.mxu0
      %v1723 = vadd.f32 %v1447, %v1722
      %v1724 = vpop.f32.mrf.mxu0
      %v1725 = vpop.f32.mrf.mxu0
      %v1726 = vadd.f32 %v1447, %v1725
      %v1727 = vpop.f32.mrf.mxu0
      %1728 = vmatprep.mubr.bf16.mxu0 0
      %1729 = vmatmul.mubr.bf16.gmra.mxu0 %v1419
      %v1730 = vpop.f32.mrf.mxu0
      %v1731 = vadd.f32 %v1447, %v1730
      %v1732 = vpop.f32.mrf.mxu0
      %v1733 = vpop.f32.mrf.mxu0
      %v1734 = vadd.f32 %v1447, %v1733
      %v1735 = vpop.f32.mrf.mxu0
      %1736 = vmatprep.mubr.bf16.mxu0 0
      %1737 = vmatmul.mubr.bf16.gmra.mxu0 %v1420
      %v1738 = vpop.f32.mrf.mxu0
      %v1739 = vadd.f32 %v1447, %v1738
      %v1740 = vpop.f32.mrf.mxu0
      %v1741 = vpop.f32.mrf.mxu0
      %v1742 = vadd.f32 %v1447, %v1741
      %v1743 = vpop.f32.mrf.mxu0
      %1744 = vmatprep.mubr.bf16.mxu0 0
      %1745 = vmatmul.mubr.bf16.gmra.mxu0 %v1421
      %v1746 = vpop.f32.mrf.mxu0
      %v1747 = vadd.f32 %v1447, %v1746
      %v1748 = vpop.f32.mrf.mxu0
      %v1749 = vpop.f32.mrf.mxu0
      %v1750 = vadd.f32 %v1447, %v1749
      %v1751 = vpop.f32.mrf.mxu0
      %1752 = vmatprep.mubr.bf16.mxu0 0
      %1753 = vmatmul.mubr.bf16.gmra.mxu0 %v1422
      %v1754 = vpop.f32.mrf.mxu0
      %v1755 = vadd.f32 %v1447, %v1754
      %v1756 = vpop.f32.mrf.mxu0
      %v1757 = vpop.f32.mrf.mxu0
      %v1758 = vadd.f32 %v1447, %v1757
      %v1759 = vpop.f32.mrf.mxu0
      %1760 = vmatprep.mubr.bf16.mxu0 0
      %1761 = vmatmul.mubr.bf16.gmra.mxu0 %v1423
      %v1762 = vpop.f32.mrf.mxu0
      %v1763 = vadd.f32 %v1447, %v1762
      %v1764 = vpop.f32.mrf.mxu0
      %v1765 = vpop.f32.mrf.mxu0
      %v1766 = vadd.f32 %v1447, %v1765
      %v1767 = vpop.f32.mrf.mxu0
      %1768 = vmatprep.mubr.bf16.mxu0 0
      %1769 = vmatmul.mubr.bf16.gmra.mxu0 %v1424
      %v1770 = vpop.f32.mrf.mxu0
      %v1771 = vadd.f32 %v1447, %v1770
      %v1772 = vpop.f32.mrf.mxu0
      %v1773 = vpop.f32.mrf.mxu0
      %v1774 = vadd.f32 %v1447, %v1773
      %v1775 = vpop.f32.mrf.mxu0
      %1776 = vmatprep.mubr.bf16.mxu0 0
      %1777 = vmatmul.mubr.bf16.gmra.mxu0 %v1425
      %v1778 = vpop.f32.mrf.mxu0
      %v1779 = vadd.f32 %v1447, %v1778
      %v1780 = vpop.f32.mrf.mxu0
      %v1781 = vpop.f32.mrf.mxu0
      %v1782 = vadd.f32 %v1447, %v1781
      %v1783 = vpop.f32.mrf.mxu0
      %1784 = vdwg.mxu0
      %v1785 = vmax.f32 %v1531, 0.0
      %v1786 = vmax.f32 %v1534, 0.0
      %v1787 = vmax.f32 %v1539, 0.0
      %v1788 = vmax.f32 %v1542, 0.0
      %v1789 = vmax.f32 %v1547, 0.0
      %v1790 = vmax.f32 %v1550, 0.0
      %v1791 = vmax.f32 %v1555, 0.0
      %v1792 = vmax.f32 %v1558, 0.0
      %v1793 = vmax.f32 %v1563, 0.0
      %v1794 = vmax.f32 %v1566, 0.0
      %v1795 = vmax.f32 %v1571, 0.0
      %v1796 = vmax.f32 %v1574, 0.0
      %v1797 = vmax.f32 %v1579, 0.0
      %v1798 = vmax.f32 %v1582, 0.0
      %v1799 = vmax.f32 %v1587, 0.0
      %v1800 = vmax.f32 %v1590, 0.0
      %v1801 = vmax.f32 %v1595, 0.0
      %v1802 = vmax.f32 %v1598, 0.0
      %v1803 = vmax.f32 %v1603, 0.0
      %v1804 = vmax.f32 %v1606, 0.0
      %v1805 = vmax.f32 %v1611, 0.0
      %v1806 = vmax.f32 %v1614, 0.0
      %v1807 = vmax.f32 %v1619, 0.0
      %v1808 = vmax.f32 %v1622, 0.0
      %v1809 = vmax.f32 %v1627, 0.0
      %v1810 = vmax.f32 %v1630, 0.0
      %v1811 = vmax.f32 %v1635, 0.0
      %v1812 = vmax.f32 %v1638, 0.0
      %v1813 = vmax.f32 %v1643, 0.0
      %v1814 = vmax.f32 %v1646, 0.0
      %v1815 = vmax.f32 %v1651, 0.0
      %v1816 = vmax.f32 %v1654, 0.0
      %v1817 = vmax.f32 %v1659, 0.0
      %v1818 = vmax.f32 %v1662, 0.0
      %v1819 = vmax.f32 %v1667, 0.0
      %v1820 = vmax.f32 %v1670, 0.0
      %v1821 = vmax.f32 %v1675, 0.0
      %v1822 = vmax.f32 %v1678, 0.0
      %v1823 = vmax.f32 %v1683, 0.0
      %v1824 = vmax.f32 %v1686, 0.0
      %v1825 = vmax.f32 %v1691, 0.0
      %v1826 = vmax.f32 %v1694, 0.0
      %v1827 = vmax.f32 %v1699, 0.0
      %v1828 = vmax.f32 %v1702, 0.0
      %v1829 = vmax.f32 %v1707, 0.0
      %v1830 = vmax.f32 %v1710, 0.0
      %v1831 = vmax.f32 %v1715, 0.0
      %v1832 = vmax.f32 %v1718, 0.0
      %v1833 = vmax.f32 %v1723, 0.0
      %v1834 = vmax.f32 %v1726, 0.0
      %v1835 = vmax.f32 %v1731, 0.0
      %v1836 = vmax.f32 %v1734, 0.0
      %v1837 = vmax.f32 %v1739, 0.0
      %v1838 = vmax.f32 %v1742, 0.0
      %v1839 = vmax.f32 %v1747, 0.0
      %v1840 = vmax.f32 %v1750, 0.0
      %v1841 = vmax.f32 %v1755, 0.0
      %v1842 = vmax.f32 %v1758, 0.0
      %v1843 = vmax.f32 %v1763, 0.0
      %v1844 = vmax.f32 %v1766, 0.0
      %v1845 = vmax.f32 %v1771, 0.0
      %v1846 = vmax.f32 %v1774, 0.0
      %v1847 = vmax.f32 %v1779, 0.0
      %v1848 = vmax.f32 %v1782, 0.0
      %v1849 = vpack.c.bf16 %v1786, %v1785
      %v1850 = vpack.c.bf16 %v1788, %v1787
      %v1851 = vpack.c.bf16 %v1790, %v1789
      %v1852 = vpack.c.bf16 %v1792, %v1791
      %v1853 = vpack.c.bf16 %v1794, %v1793
      %v1854 = vpack.c.bf16 %v1796, %v1795
      %v1855 = vpack.c.bf16 %v1798, %v1797
      %v1856 = vpack.c.bf16 %v1800, %v1799
      %v1857 = vpack.c.bf16 %v1802, %v1801
      %v1858 = vpack.c.bf16 %v1804, %v1803
      %v1859 = vpack.c.bf16 %v1806, %v1805
      %v1860 = vpack.c.bf16 %v1808, %v1807
      %v1861 = vpack.c.bf16 %v1810, %v1809
      %v1862 = vpack.c.bf16 %v1812, %v1811
      %v1863 = vpack.c.bf16 %v1814, %v1813
      %v1864 = vpack.c.bf16 %v1816, %v1815
      %v1865 = vpack.c.bf16 %v1818, %v1817
      %v1866 = vpack.c.bf16 %v1820, %v1819
      %v1867 = vpack.c.bf16 %v1822, %v1821
      %v1868 = vpack.c.bf16 %v1824, %v1823
      %v1869 = vpack.c.bf16 %v1826, %v1825
      %v1870 = vpack.c.bf16 %v1828, %v1827
      %v1871 = vpack.c.bf16 %v1830, %v1829
      %v1872 = vpack.c.bf16 %v1832, %v1831
      %v1873 = vpack.c.bf16 %v1834, %v1833
      %v1874 = vpack.c.bf16 %v1836, %v1835
      %v1875 = vpack.c.bf16 %v1838, %v1837
      %v1876 = vpack.c.bf16 %v1840, %v1839
      %v1877 = vpack.c.bf16 %v1842, %v1841
      %v1878 = vpack.c.bf16 %v1844, %v1843
      %v1879 = vpack.c.bf16 %v1846, %v1845
      %v1880 = vpack.c.bf16 %v1848, %v1847
      %v1881 = vld [vmem:[%s4 + $0x3] sm:$0x1]
      %s1882 = scalar_lea.vmem %s2, 128
      %v1883 = vld [vmem:[%s1882] sm:$0xf]
      %v1884 = vld [vmem:[%s1882 + $0x4] sm:$0xf]
      %v1885 = vld [vmem:[%s1882 + $0x8] sm:$0xf]
      %v1886 = vld [vmem:[%s1882 + $0xc] sm:$0xf]
      %v1887 = vld [vmem:[%s1882 + $0x10] sm:$0xf]
      %v1888 = vld [vmem:[%s1882 + $0x14] sm:$0xf]
      %v1889 = vld [vmem:[%s1882 + $0x18] sm:$0xf]
      %v1890 = vld [vmem:[%s1882 + $0x1c] sm:$0xf]
      %v1891 = vld [vmem:[%s1882 + $0x20] sm:$0xf]
      %v1892 = vld [vmem:[%s1882 + $0x24] sm:$0xf]
      %v1893 = vld [vmem:[%s1882 + $0x28] sm:$0xf]
      %v1894 = vld [vmem:[%s1882 + $0x2c] sm:$0xf]
      %v1895 = vld [vmem:[%s1882 + $0x30] sm:$0xf]
      %v1896 = vld [vmem:[%s1882 + $0x34] sm:$0xf]
      %v1897 = vld [vmem:[%s1882 + $0x38] sm:$0xf]
      %v1898 = vld [vmem:[%s1882 + $0x3c] sm:$0xf]
      %v1899 = vlaneseq
      %v1900 = vshrl.u32 %v1899, 7
      %v1901 = vsub.s32 0, %v1900
      %v1902 = vrot.slane %v1881, %v1901
      %v1919 = vunpack.c.l.b16 %v1883
      %v1920 = vunpack.c.l.b16 %v1884
      %v1921 = vunpack.c.l.b16 %v1885
      %v1922 = vunpack.c.l.b16 %v1886
      %v1923 = vunpack.c.l.b16 %v1887
      %v1924 = vunpack.c.l.b16 %v1888
      %v1925 = vunpack.c.l.b16 %v1889
      %v1926 = vunpack.c.l.b16 %v1890
      %v1927 = vunpack.c.l.b16 %v1891
      %v1928 = vunpack.c.l.b16 %v1892
      %v1929 = vunpack.c.l.b16 %v1893
      %v1930 = vunpack.c.l.b16 %v1894
      %v1931 = vunpack.c.l.b16 %v1895
      %v1932 = vunpack.c.l.b16 %v1896
      %v1933 = vunpack.c.l.b16 %v1897
      %v1934 = vunpack.c.l.b16 %v1898
      %v1935 = vpack.c.b16 %v1920, %v1919
      %v1936 = vpack.c.b16 %v1922, %v1921
      %v1937 = vpack.c.b16 %v1924, %v1923
      %v1938 = vpack.c.b16 %v1926, %v1925
      %v1939 = vpack.c.b16 %v1928, %v1927
      %v1940 = vpack.c.b16 %v1930, %v1929
      %v1941 = vpack.c.b16 %v1932, %v1931
      %v1942 = vpack.c.b16 %v1934, %v1933
      %1951 = vmatprep.subr.bf16.mxu0 0
      %1952 = vmatpush1.bf16.msra.mxu0 %v1942
      %1953 = vmatprep.subr.bf16.mxu0 0
      %1954 = vmatpush1.bf16.msra.mxu0 %v1941
      %1955 = vmatprep.subr.bf16.mxu0 0
      %1956 = vmatpush1.bf16.msra.mxu0 %v1940
      %1957 = vmatprep.subr.bf16.mxu0 0
      %1958 = vmatpush1.bf16.msra.mxu0 %v1939
      %1959 = vmatprep.subr.bf16.mxu0 0
      %1960 = vmatpush1.bf16.msra.mxu0 %v1938
      %1961 = vmatprep.subr.bf16.mxu0 0
      %1962 = vmatpush1.bf16.msra.mxu0 %v1937
      %1963 = vmatprep.subr.bf16.mxu0 0
      %1964 = vmatpush1.bf16.msra.mxu0 %v1936
      %1965 = vmatprep.subr.bf16.mxu0 0
      %1966 = vmatpush1.bf16.msra.mxu0 %v1935
      %1967 = vmatprep.subr.bf16.mxu0 0
      %1968 = vmatpush2.bf16.msra.mxu0 0
      %1969 = vmatprep.subr.bf16.mxu0 0
      %1970 = vmatpush2.bf16.msra.mxu0 0
      %1971 = vmatprep.subr.bf16.mxu0 0
      %1972 = vmatpush2.bf16.msra.mxu0 0
      %1973 = vmatprep.subr.bf16.mxu0 0
      %1974 = vmatpush2.bf16.msra.mxu0 0
      %1975 = vmatprep.subr.bf16.mxu0 0
      %1976 = vmatpush2.bf16.msra.mxu0 0
      %1977 = vmatprep.subr.bf16.mxu0 0
      %1978 = vmatpush2.bf16.msra.mxu0 0
      %1979 = vmatprep.subr.bf16.mxu0 0
      %1980 = vmatpush2.bf16.msra.mxu0 0
      %1981 = vmatprep.subr.bf16.mxu0 0
      %1982 = vmatpush2.bf16.msra.mxu0 0
      %1983 = vmatprep.mubr.bf16.mxu0 0
      %1984 = vmatmul.mubr.bf16.gmra.mxu0 %v1849
      %v1985 = vpop.f32.mrf.mxu0
      %v1986 = vadd.f32 %v1902, %v1985
      %v1987 = vpop.f32.mrf.mxu0
      %v1988 = vpop.f32.mrf.mxu0
      %v1989 = vadd.f32 %v1902, %v1988
      %v1990 = vpop.f32.mrf.mxu0
      %1991 = vmatprep.mubr.bf16.mxu0 0
      %1992 = vmatmul.mubr.bf16.gmra.mxu0 %v1850
      %v1993 = vpop.f32.mrf.mxu0
      %v1994 = vadd.f32 %v1902, %v1993
      %v1995 = vpop.f32.mrf.mxu0
      %v1996 = vpop.f32.mrf.mxu0
      %v1997 = vadd.f32 %v1902, %v1996
      %v1998 = vpop.f32.mrf.mxu0
      %1999 = vmatprep.mubr.bf16.mxu0 0
      %2000 = vmatmul.mubr.bf16.gmra.mxu0 %v1851
      %v2001 = vpop.f32.mrf.mxu0
      %v2002 = vadd.f32 %v1902, %v2001
      %v2003 = vpop.f32.mrf.mxu0
      %v2004 = vpop.f32.mrf.mxu0
      %v2005 = vadd.f32 %v1902, %v2004
      %v2006 = vpop.f32.mrf.mxu0
      %2007 = vmatprep.mubr.bf16.mxu0 0
      %2008 = vmatmul.mubr.bf16.gmra.mxu0 %v1852
      %v2009 = vpop.f32.mrf.mxu0
      %v2010 = vadd.f32 %v1902, %v2009
      %v2011 = vpop.f32.mrf.mxu0
      %v2012 = vpop.f32.mrf.mxu0
      %v2013 = vadd.f32 %v1902, %v2012
      %v2014 = vpop.f32.mrf.mxu0
      %2015 = vmatprep.mubr.bf16.mxu0 0
      %2016 = vmatmul.mubr.bf16.gmra.mxu0 %v1853
      %v2017 = vpop.f32.mrf.mxu0
      %v2018 = vadd.f32 %v1902, %v2017
      %v2019 = vpop.f32.mrf.mxu0
      %v2020 = vpop.f32.mrf.mxu0
      %v2021 = vadd.f32 %v1902, %v2020
      %v2022 = vpop.f32.mrf.mxu0
      %2023 = vmatprep.mubr.bf16.mxu0 0
      %2024 = vmatmul.mubr.bf16.gmra.mxu0 %v1854
      %v2025 = vpop.f32.mrf.mxu0
      %v2026 = vadd.f32 %v1902, %v2025
      %v2027 = vpop.f32.mrf.mxu0
      %v2028 = vpop.f32.mrf.mxu0
      %v2029 = vadd.f32 %v1902, %v2028
      %v2030 = vpop.f32.mrf.mxu0
      %2031 = vmatprep.mubr.bf16.mxu0 0
      %2032 = vmatmul.mubr.bf16.gmra.mxu0 %v1855
      %v2033 = vpop.f32.mrf.mxu0
      %v2034 = vadd.f32 %v1902, %v2033
      %v2035 = vpop.f32.mrf.mxu0
      %v2036 = vpop.f32.mrf.mxu0
      %v2037 = vadd.f32 %v1902, %v2036
      %v2038 = vpop.f32.mrf.mxu0
      %2039 = vmatprep.mubr.bf16.mxu0 0
      %2040 = vmatmul.mubr.bf16.gmra.mxu0 %v1856
      %v2041 = vpop.f32.mrf.mxu0
      %v2042 = vadd.f32 %v1902, %v2041
      %v2043 = vpop.f32.mrf.mxu0
      %v2044 = vpop.f32.mrf.mxu0
      %v2045 = vadd.f32 %v1902, %v2044
      %v2046 = vpop.f32.mrf.mxu0
      %2047 = vmatprep.mubr.bf16.mxu0 0
      %2048 = vmatmul.mubr.bf16.gmra.mxu0 %v1857
      %v2049 = vpop.f32.mrf.mxu0
      %v2050 = vadd.f32 %v1902, %v2049
      %v2051 = vpop.f32.mrf.mxu0
      %v2052 = vpop.f32.mrf.mxu0
      %v2053 = vadd.f32 %v1902, %v2052
      %v2054 = vpop.f32.mrf.mxu0
      %2055 = vmatprep.mubr.bf16.mxu0 0
      %2056 = vmatmul.mubr.bf16.gmra.mxu0 %v1858
      %v2057 = vpop.f32.mrf.mxu0
      %v2058 = vadd.f32 %v1902, %v2057
      %v2059 = vpop.f32.mrf.mxu0
      %v2060 = vpop.f32.mrf.mxu0
      %v2061 = vadd.f32 %v1902, %v2060
      %v2062 = vpop.f32.mrf.mxu0
      %2063 = vmatprep.mubr.bf16.mxu0 0
      %2064 = vmatmul.mubr.bf16.gmra.mxu0 %v1859
      %v2065 = vpop.f32.mrf.mxu0
      %v2066 = vadd.f32 %v1902, %v2065
      %v2067 = vpop.f32.mrf.mxu0
      %v2068 = vpop.f32.mrf.mxu0
      %v2069 = vadd.f32 %v1902, %v2068
      %v2070 = vpop.f32.mrf.mxu0
      %2071 = vmatprep.mubr.bf16.mxu0 0
      %2072 = vmatmul.mubr.bf16.gmra.mxu0 %v1860
      %v2073 = vpop.f32.mrf.mxu0
      %v2074 = vadd.f32 %v1902, %v2073
      %v2075 = vpop.f32.mrf.mxu0
      %v2076 = vpop.f32.mrf.mxu0
      %v2077 = vadd.f32 %v1902, %v2076
      %v2078 = vpop.f32.mrf.mxu0
      %2079 = vmatprep.mubr.bf16.mxu0 0
      %2080 = vmatmul.mubr.bf16.gmra.mxu0 %v1861
      %v2081 = vpop.f32.mrf.mxu0
      %v2082 = vadd.f32 %v1902, %v2081
      %v2083 = vpop.f32.mrf.mxu0
      %v2084 = vpop.f32.mrf.mxu0
      %v2085 = vadd.f32 %v1902, %v2084
      %v2086 = vpop.f32.mrf.mxu0
      %2087 = vmatprep.mubr.bf16.mxu0 0
      %2088 = vmatmul.mubr.bf16.gmra.mxu0 %v1862
      %v2089 = vpop.f32.mrf.mxu0
      %v2090 = vadd.f32 %v1902, %v2089
      %v2091 = vpop.f32.mrf.mxu0
      %v2092 = vpop.f32.mrf.mxu0
      %v2093 = vadd.f32 %v1902, %v2092
      %v2094 = vpop.f32.mrf.mxu0
      %2095 = vmatprep.mubr.bf16.mxu0 0
      %2096 = vmatmul.mubr.bf16.gmra.mxu0 %v1863
      %v2097 = vpop.f32.mrf.mxu0
      %v2098 = vadd.f32 %v1902, %v2097
      %v2099 = vpop.f32.mrf.mxu0
      %v2100 = vpop.f32.mrf.mxu0
      %v2101 = vadd.f32 %v1902, %v2100
      %v2102 = vpop.f32.mrf.mxu0
      %2103 = vmatprep.mubr.bf16.mxu0 0
      %2104 = vmatmul.mubr.bf16.gmra.mxu0 %v1864
      %v2105 = vpop.f32.mrf.mxu0
      %v2106 = vadd.f32 %v1902, %v2105
      %v2107 = vpop.f32.mrf.mxu0
      %v2108 = vpop.f32.mrf.mxu0
      %v2109 = vadd.f32 %v1902, %v2108
      %v2110 = vpop.f32.mrf.mxu0
      %2111 = vmatprep.mubr.bf16.mxu0 0
      %2112 = vmatmul.mubr.bf16.gmra.mxu0 %v1865
      %v2113 = vpop.f32.mrf.mxu0
      %v2114 = vadd.f32 %v1902, %v2113
      %v2115 = vpop.f32.mrf.mxu0
      %v2116 = vpop.f32.mrf.mxu0
      %v2117 = vadd.f32 %v1902, %v2116
      %v2118 = vpop.f32.mrf.mxu0
      %2119 = vmatprep.mubr.bf16.mxu0 0
      %2120 = vmatmul.mubr.bf16.gmra.mxu0 %v1866
      %v2121 = vpop.f32.mrf.mxu0
      %v2122 = vadd.f32 %v1902, %v2121
      %v2123 = vpop.f32.mrf.mxu0
      %v2124 = vpop.f32.mrf.mxu0
      %v2125 = vadd.f32 %v1902, %v2124
      %v2126 = vpop.f32.mrf.mxu0
      %2127 = vmatprep.mubr.bf16.mxu0 0
      %2128 = vmatmul.mubr.bf16.gmra.mxu0 %v1867
      %v2129 = vpop.f32.mrf.mxu0
      %v2130 = vadd.f32 %v1902, %v2129
      %v2131 = vpop.f32.mrf.mxu0
      %v2132 = vpop.f32.mrf.mxu0
      %v2133 = vadd.f32 %v1902, %v2132
      %v2134 = vpop.f32.mrf.mxu0
      %2135 = vmatprep.mubr.bf16.mxu0 0
      %2136 = vmatmul.mubr.bf16.gmra.mxu0 %v1868
      %v2137 = vpop.f32.mrf.mxu0
      %v2138 = vadd.f32 %v1902, %v2137
      %v2139 = vpop.f32.mrf.mxu0
      %v2140 = vpop.f32.mrf.mxu0
      %v2141 = vadd.f32 %v1902, %v2140
      %v2142 = vpop.f32.mrf.mxu0
      %2143 = vmatprep.mubr.bf16.mxu0 0
      %2144 = vmatmul.mubr.bf16.gmra.mxu0 %v1869
      %v2145 = vpop.f32.mrf.mxu0
      %v2146 = vadd.f32 %v1902, %v2145
      %v2147 = vpop.f32.mrf.mxu0
      %v2148 = vpop.f32.mrf.mxu0
      %v2149 = vadd.f32 %v1902, %v2148
      %v2150 = vpop.f32.mrf.mxu0
      %2151 = vmatprep.mubr.bf16.mxu0 0
      %2152 = vmatmul.mubr.bf16.gmra.mxu0 %v1870
      %v2153 = vpop.f32.mrf.mxu0
      %v2154 = vadd.f32 %v1902, %v2153
      %v2155 = vpop.f32.mrf.mxu0
      %v2156 = vpop.f32.mrf.mxu0
      %v2157 = vadd.f32 %v1902, %v2156
      %v2158 = vpop.f32.mrf.mxu0
      %2159 = vmatprep.mubr.bf16.mxu0 0
      %2160 = vmatmul.mubr.bf16.gmra.mxu0 %v1871
      %v2161 = vpop.f32.mrf.mxu0
      %v2162 = vadd.f32 %v1902, %v2161
      %v2163 = vpop.f32.mrf.mxu0
      %v2164 = vpop.f32.mrf.mxu0
      %v2165 = vadd.f32 %v1902, %v2164
      %v2166 = vpop.f32.mrf.mxu0
      %2167 = vmatprep.mubr.bf16.mxu0 0
      %2168 = vmatmul.mubr.bf16.gmra.mxu0 %v1872
      %v2169 = vpop.f32.mrf.mxu0
      %v2170 = vadd.f32 %v1902, %v2169
      %v2171 = vpop.f32.mrf.mxu0
      %v2172 = vpop.f32.mrf.mxu0
      %v2173 = vadd.f32 %v1902, %v2172
      %v2174 = vpop.f32.mrf.mxu0
      %2175 = vmatprep.mubr.bf16.mxu0 0
      %2176 = vmatmul.mubr.bf16.gmra.mxu0 %v1873
      %v2177 = vpop.f32.mrf.mxu0
      %v2178 = vadd.f32 %v1902, %v2177
      %v2179 = vpop.f32.mrf.mxu0
      %v2180 = vpop.f32.mrf.mxu0
      %v2181 = vadd.f32 %v1902, %v2180
      %v2182 = vpop.f32.mrf.mxu0
      %2183 = vmatprep.mubr.bf16.mxu0 0
      %2184 = vmatmul.mubr.bf16.gmra.mxu0 %v1874
      %v2185 = vpop.f32.mrf.mxu0
      %v2186 = vadd.f32 %v1902, %v2185
      %v2187 = vpop.f32.mrf.mxu0
      %v2188 = vpop.f32.mrf.mxu0
      %v2189 = vadd.f32 %v1902, %v2188
      %v2190 = vpop.f32.mrf.mxu0
      %2191 = vmatprep.mubr.bf16.mxu0 0
      %2192 = vmatmul.mubr.bf16.gmra.mxu0 %v1875
      %v2193 = vpop.f32.mrf.mxu0
      %v2194 = vadd.f32 %v1902, %v2193
      %v2195 = vpop.f32.mrf.mxu0
      %v2196 = vpop.f32.mrf.mxu0
      %v2197 = vadd.f32 %v1902, %v2196
      %v2198 = vpop.f32.mrf.mxu0
      %2199 = vmatprep.mubr.bf16.mxu0 0
      %2200 = vmatmul.mubr.bf16.gmra.mxu0 %v1876
      %v2201 = vpop.f32.mrf.mxu0
      %v2202 = vadd.f32 %v1902, %v2201
      %v2203 = vpop.f32.mrf.mxu0
      %v2204 = vpop.f32.mrf.mxu0
      %v2205 = vadd.f32 %v1902, %v2204
      %v2206 = vpop.f32.mrf.mxu0
      %2207 = vmatprep.mubr.bf16.mxu0 0
      %2208 = vmatmul.mubr.bf16.gmra.mxu0 %v1877
      %v2209 = vpop.f32.mrf.mxu0
      %v2210 = vadd.f32 %v1902, %v2209
      %v2211 = vpop.f32.mrf.mxu0
      %v2212 = vpop.f32.mrf.mxu0
      %v2213 = vadd.f32 %v1902, %v2212
      %v2214 = vpop.f32.mrf.mxu0
      %2215 = vmatprep.mubr.bf16.mxu0 0
      %2216 = vmatmul.mubr.bf16.gmra.mxu0 %v1878
      %v2217 = vpop.f32.mrf.mxu0
      %v2218 = vadd.f32 %v1902, %v2217
      %v2219 = vpop.f32.mrf.mxu0
      %v2220 = vpop.f32.mrf.mxu0
      %v2221 = vadd.f32 %v1902, %v2220
      %v2222 = vpop.f32.mrf.mxu0
      %2223 = vmatprep.mubr.bf16.mxu0 0
      %2224 = vmatmul.mubr.bf16.gmra.mxu0 %v1879
      %v2225 = vpop.f32.mrf.mxu0
      %v2226 = vadd.f32 %v1902, %v2225
      %v2227 = vpop.f32.mrf.mxu0
      %v2228 = vpop.f32.mrf.mxu0
      %v2229 = vadd.f32 %v1902, %v2228
      %v2230 = vpop.f32.mrf.mxu0
      %2231 = vmatprep.mubr.bf16.mxu0 0
      %2232 = vmatmul.mubr.bf16.gmra.mxu0 %v1880
      %v2233 = vpop.f32.mrf.mxu0
      %v2234 = vadd.f32 %v1902, %v2233
      %v2235 = vpop.f32.mrf.mxu0
      %v2236 = vpop.f32.mrf.mxu0
      %v2237 = vadd.f32 %v1902, %v2236
      %v2238 = vpop.f32.mrf.mxu0
      %2239 = vdwg.mxu0
      %v2240 = vmax.f32 %v1986, 0.0
      %v2241 = vmax.f32 %v1989, 0.0
      %v2242 = vmax.f32 %v1994, 0.0
      %v2243 = vmax.f32 %v1997, 0.0
      %v2244 = vmax.f32 %v2002, 0.0
      %v2245 = vmax.f32 %v2005, 0.0
      %v2246 = vmax.f32 %v2010, 0.0
      %v2247 = vmax.f32 %v2013, 0.0
      %v2248 = vmax.f32 %v2018, 0.0
      %v2249 = vmax.f32 %v2021, 0.0
      %v2250 = vmax.f32 %v2026, 0.0
      %v2251 = vmax.f32 %v2029, 0.0
      %v2252 = vmax.f32 %v2034, 0.0
      %v2253 = vmax.f32 %v2037, 0.0
      %v2254 = vmax.f32 %v2042, 0.0
      %v2255 = vmax.f32 %v2045, 0.0
      %v2256 = vmax.f32 %v2050, 0.0
      %v2257 = vmax.f32 %v2053, 0.0
      %v2258 = vmax.f32 %v2058, 0.0
      %v2259 = vmax.f32 %v2061, 0.0
      %v2260 = vmax.f32 %v2066, 0.0
      %v2261 = vmax.f32 %v2069, 0.0
      %v2262 = vmax.f32 %v2074, 0.0
      %v2263 = vmax.f32 %v2077, 0.0
      %v2264 = vmax.f32 %v2082, 0.0
      %v2265 = vmax.f32 %v2085, 0.0
      %v2266 = vmax.f32 %v2090, 0.0
      %v2267 = vmax.f32 %v2093, 0.0
      %v2268 = vmax.f32 %v2098, 0.0
      %v2269 = vmax.f32 %v2101, 0.0
      %v2270 = vmax.f32 %v2106, 0.0
      %v2271 = vmax.f32 %v2109, 0.0
      %v2272 = vmax.f32 %v2114, 0.0
      %v2273 = vmax.f32 %v2117, 0.0
      %v2274 = vmax.f32 %v2122, 0.0
      %v2275 = vmax.f32 %v2125, 0.0
      %v2276 = vmax.f32 %v2130, 0.0
      %v2277 = vmax.f32 %v2133, 0.0
      %v2278 = vmax.f32 %v2138, 0.0
      %v2279 = vmax.f32 %v2141, 0.0
      %v2280 = vmax.f32 %v2146, 0.0
      %v2281 = vmax.f32 %v2149, 0.0
      %v2282 = vmax.f32 %v2154, 0.0
      %v2283 = vmax.f32 %v2157, 0.0
      %v2284 = vmax.f32 %v2162, 0.0
      %v2285 = vmax.f32 %v2165, 0.0
      %v2286 = vmax.f32 %v2170, 0.0
      %v2287 = vmax.f32 %v2173, 0.0
      %v2288 = vmax.f32 %v2178, 0.0
      %v2289 = vmax.f32 %v2181, 0.0
      %v2290 = vmax.f32 %v2186, 0.0
      %v2291 = vmax.f32 %v2189, 0.0
      %v2292 = vmax.f32 %v2194, 0.0
      %v2293 = vmax.f32 %v2197, 0.0
      %v2294 = vmax.f32 %v2202, 0.0
      %v2295 = vmax.f32 %v2205, 0.0
      %v2296 = vmax.f32 %v2210, 0.0
      %v2297 = vmax.f32 %v2213, 0.0
      %v2298 = vmax.f32 %v2218, 0.0
      %v2299 = vmax.f32 %v2221, 0.0
      %v2300 = vmax.f32 %v2226, 0.0
      %v2301 = vmax.f32 %v2229, 0.0
      %v2302 = vmax.f32 %v2234, 0.0
      %v2303 = vmax.f32 %v2237, 0.0
      %v2304 = vpack.c.bf16 %v2241, %v2240
      %v2305 = vpack.c.bf16 %v2243, %v2242
      %v2306 = vpack.c.bf16 %v2245, %v2244
      %v2307 = vpack.c.bf16 %v2247, %v2246
      %v2308 = vpack.c.bf16 %v2249, %v2248
      %v2309 = vpack.c.bf16 %v2251, %v2250
      %v2310 = vpack.c.bf16 %v2253, %v2252
      %v2311 = vpack.c.bf16 %v2255, %v2254
      %v2312 = vpack.c.bf16 %v2257, %v2256
      %v2313 = vpack.c.bf16 %v2259, %v2258
      %v2314 = vpack.c.bf16 %v2261, %v2260
      %v2315 = vpack.c.bf16 %v2263, %v2262
      %v2316 = vpack.c.bf16 %v2265, %v2264
      %v2317 = vpack.c.bf16 %v2267, %v2266
      %v2318 = vpack.c.bf16 %v2269, %v2268
      %v2319 = vpack.c.bf16 %v2271, %v2270
      %v2320 = vpack.c.bf16 %v2273, %v2272
      %v2321 = vpack.c.bf16 %v2275, %v2274
      %v2322 = vpack.c.bf16 %v2277, %v2276
      %v2323 = vpack.c.bf16 %v2279, %v2278
      %v2324 = vpack.c.bf16 %v2281, %v2280
      %v2325 = vpack.c.bf16 %v2283, %v2282
      %v2326 = vpack.c.bf16 %v2285, %v2284
      %v2327 = vpack.c.bf16 %v2287, %v2286
      %v2328 = vpack.c.bf16 %v2289, %v2288
      %v2329 = vpack.c.bf16 %v2291, %v2290
      %v2330 = vpack.c.bf16 %v2293, %v2292
      %v2331 = vpack.c.bf16 %v2295, %v2294
      %v2332 = vpack.c.bf16 %v2297, %v2296
      %v2333 = vpack.c.bf16 %v2299, %v2298
      %v2334 = vpack.c.bf16 %v2301, %v2300
      %v2335 = vpack.c.bf16 %v2303, %v2302
      %v2336 = vld [vmem:[%s4 + $0x4] sm:$0x1]
      %s2337 = scalar_lea.vmem %s2, 192
      %v2338 = vld [vmem:[%s2337] sm:$0xf]
      %v2339 = vld [vmem:[%s2337 + $0x4] sm:$0xf]
      %v2340 = vld [vmem:[%s2337 + $0x8] sm:$0xf]
      %v2341 = vld [vmem:[%s2337 + $0xc] sm:$0xf]
      %v2342 = vld [vmem:[%s2337 + $0x10] sm:$0xf]
      %v2343 = vld [vmem:[%s2337 + $0x14] sm:$0xf]
      %v2344 = vld [vmem:[%s2337 + $0x18] sm:$0xf]
      %v2345 = vld [vmem:[%s2337 + $0x1c] sm:$0xf]
      %v2346 = vld [vmem:[%s2337 + $0x20] sm:$0xf]
      %v2347 = vld [vmem:[%s2337 + $0x24] sm:$0xf]
      %v2348 = vld [vmem:[%s2337 + $0x28] sm:$0xf]
      %v2349 = vld [vmem:[%s2337 + $0x2c] sm:$0xf]
      %v2350 = vld [vmem:[%s2337 + $0x30] sm:$0xf]
      %v2351 = vld [vmem:[%s2337 + $0x34] sm:$0xf]
      %v2352 = vld [vmem:[%s2337 + $0x38] sm:$0xf]
      %v2353 = vld [vmem:[%s2337 + $0x3c] sm:$0xf]
      %v2354 = vlaneseq
      %v2355 = vshrl.u32 %v2354, 7
      %v2356 = vsub.s32 0, %v2355
      %v2357 = vrot.slane %v2336, %v2356
      %v2374 = vunpack.c.l.b16 %v2338
      %v2375 = vunpack.c.l.b16 %v2339
      %v2376 = vunpack.c.l.b16 %v2340
      %v2377 = vunpack.c.l.b16 %v2341
      %v2378 = vunpack.c.l.b16 %v2342
      %v2379 = vunpack.c.l.b16 %v2343
      %v2380 = vunpack.c.l.b16 %v2344
      %v2381 = vunpack.c.l.b16 %v2345
      %v2382 = vunpack.c.l.b16 %v2346
      %v2383 = vunpack.c.l.b16 %v2347
      %v2384 = vunpack.c.l.b16 %v2348
      %v2385 = vunpack.c.l.b16 %v2349
      %v2386 = vunpack.c.l.b16 %v2350
      %v2387 = vunpack.c.l.b16 %v2351
      %v2388 = vunpack.c.l.b16 %v2352
      %v2389 = vunpack.c.l.b16 %v2353
      %v2390 = vpack.c.b16 %v2375, %v2374
      %v2391 = vpack.c.b16 %v2377, %v2376
      %v2392 = vpack.c.b16 %v2379, %v2378
      %v2393 = vpack.c.b16 %v2381, %v2380
      %v2394 = vpack.c.b16 %v2383, %v2382
      %v2395 = vpack.c.b16 %v2385, %v2384
      %v2396 = vpack.c.b16 %v2387, %v2386
      %v2397 = vpack.c.b16 %v2389, %v2388
      %2406 = vmatprep.subr.bf16.mxu0 0
      %2407 = vmatpush1.bf16.msra.mxu0 %v2397
      %2408 = vmatprep.subr.bf16.mxu0 0
      %2409 = vmatpush1.bf16.msra.mxu0 %v2396
      %2410 = vmatprep.subr.bf16.mxu0 0
      %2411 = vmatpush1.bf16.msra.mxu0 %v2395
      %2412 = vmatprep.subr.bf16.mxu0 0
      %2413 = vmatpush1.bf16.msra.mxu0 %v2394
      %2414 = vmatprep.subr.bf16.mxu0 0
      %2415 = vmatpush1.bf16.msra.mxu0 %v2393
      %2416 = vmatprep.subr.bf16.mxu0 0
      %2417 = vmatpush1.bf16.msra.mxu0 %v2392
      %2418 = vmatprep.subr.bf16.mxu0 0
      %2419 = vmatpush1.bf16.msra.mxu0 %v2391
      %2420 = vmatprep.subr.bf16.mxu0 0
      %2421 = vmatpush1.bf16.msra.mxu0 %v2390
      %2422 = vmatprep.subr.bf16.mxu0 0
      %2423 = vmatpush2.bf16.msra.mxu0 0
      %2424 = vmatprep.subr.bf16.mxu0 0
      %2425 = vmatpush2.bf16.msra.mxu0 0
      %2426 = vmatprep.subr.bf16.mxu0 0
      %2427 = vmatpush2.bf16.msra.mxu0 0
      %2428 = vmatprep.subr.bf16.mxu0 0
      %2429 = vmatpush2.bf16.msra.mxu0 0
      %2430 = vmatprep.subr.bf16.mxu0 0
      %2431 = vmatpush2.bf16.msra.mxu0 0
      %2432 = vmatprep.subr.bf16.mxu0 0
      %2433 = vmatpush2.bf16.msra.mxu0 0
      %2434 = vmatprep.subr.bf16.mxu0 0
      %2435 = vmatpush2.bf16.msra.mxu0 0
      %2436 = vmatprep.subr.bf16.mxu0 0
      %2437 = vmatpush2.bf16.msra.mxu0 0
      %2438 = vmatprep.mubr.bf16.mxu0 0
      %2439 = vmatmul.mubr.bf16.gmra.mxu0 %v2304
      %v2440 = vpop.f32.mrf.mxu0
      %v2441 = vadd.f32 %v2357, %v2440
      %v2442 = vpop.f32.mrf.mxu0
      %v2443 = vpop.f32.mrf.mxu0
      %v2444 = vadd.f32 %v2357, %v2443
      %v2445 = vpop.f32.mrf.mxu0
      %2446 = vmatprep.mubr.bf16.mxu0 0
      %2447 = vmatmul.mubr.bf16.gmra.mxu0 %v2305
      %v2448 = vpop.f32.mrf.mxu0
      %v2449 = vadd.f32 %v2357, %v2448
      %v2450 = vpop.f32.mrf.mxu0
      %v2451 = vpop.f32.mrf.mxu0
      %v2452 = vadd.f32 %v2357, %v2451
      %v2453 = vpop.f32.mrf.mxu0
      %2454 = vmatprep.mubr.bf16.mxu0 0
      %2455 = vmatmul.mubr.bf16.gmra.mxu0 %v2306
      %v2456 = vpop.f32.mrf.mxu0
      %v2457 = vadd.f32 %v2357, %v2456
      %v2458 = vpop.f32.mrf.mxu0
      %v2459 = vpop.f32.mrf.mxu0
      %v2460 = vadd.f32 %v2357, %v2459
      %v2461 = vpop.f32.mrf.mxu0
      %2462 = vmatprep.mubr.bf16.mxu0 0
      %2463 = vmatmul.mubr.bf16.gmra.mxu0 %v2307
      %v2464 = vpop.f32.mrf.mxu0
      %v2465 = vadd.f32 %v2357, %v2464
      %v2466 = vpop.f32.mrf.mxu0
      %v2467 = vpop.f32.mrf.mxu0
      %v2468 = vadd.f32 %v2357, %v2467
      %v2469 = vpop.f32.mrf.mxu0
      %2470 = vmatprep.mubr.bf16.mxu0 0
      %2471 = vmatmul.mubr.bf16.gmra.mxu0 %v2308
      %v2472 = vpop.f32.mrf.mxu0
      %v2473 = vadd.f32 %v2357, %v2472
      %v2474 = vpop.f32.mrf.mxu0
      %v2475 = vpop.f32.mrf.mxu0
      %v2476 = vadd.f32 %v2357, %v2475
      %v2477 = vpop.f32.mrf.mxu0
      %2478 = vmatprep.mubr.bf16.mxu0 0
      %2479 = vmatmul.mubr.bf16.gmra.mxu0 %v2309
      %v2480 = vpop.f32.mrf.mxu0
      %v2481 = vadd.f32 %v2357, %v2480
      %v2482 = vpop.f32.mrf.mxu0
      %v2483 = vpop.f32.mrf.mxu0
      %v2484 = vadd.f32 %v2357, %v2483
      %v2485 = vpop.f32.mrf.mxu0
      %2486 = vmatprep.mubr.bf16.mxu0 0
      %2487 = vmatmul.mubr.bf16.gmra.mxu0 %v2310
      %v2488 = vpop.f32.mrf.mxu0
      %v2489 = vadd.f32 %v2357, %v2488
      %v2490 = vpop.f32.mrf.mxu0
      %v2491 = vpop.f32.mrf.mxu0
      %v2492 = vadd.f32 %v2357, %v2491
      %v2493 = vpop.f32.mrf.mxu0
      %2494 = vmatprep.mubr.bf16.mxu0 0
      %2495 = vmatmul.mubr.bf16.gmra.mxu0 %v2311
      %v2496 = vpop.f32.mrf.mxu0
      %v2497 = vadd.f32 %v2357, %v2496
      %v2498 = vpop.f32.mrf.mxu0
      %v2499 = vpop.f32.mrf.mxu0
      %v2500 = vadd.f32 %v2357, %v2499
      %v2501 = vpop.f32.mrf.mxu0
      %2502 = vmatprep.mubr.bf16.mxu0 0
      %2503 = vmatmul.mubr.bf16.gmra.mxu0 %v2312
      %v2504 = vpop.f32.mrf.mxu0
      %v2505 = vadd.f32 %v2357, %v2504
      %v2506 = vpop.f32.mrf.mxu0
      %v2507 = vpop.f32.mrf.mxu0
      %v2508 = vadd.f32 %v2357, %v2507
      %v2509 = vpop.f32.mrf.mxu0
      %2510 = vmatprep.mubr.bf16.mxu0 0
      %2511 = vmatmul.mubr.bf16.gmra.mxu0 %v2313
      %v2512 = vpop.f32.mrf.mxu0
      %v2513 = vadd.f32 %v2357, %v2512
      %v2514 = vpop.f32.mrf.mxu0
      %v2515 = vpop.f32.mrf.mxu0
      %v2516 = vadd.f32 %v2357, %v2515
      %v2517 = vpop.f32.mrf.mxu0
      %2518 = vmatprep.mubr.bf16.mxu0 0
      %2519 = vmatmul.mubr.bf16.gmra.mxu0 %v2314
      %v2520 = vpop.f32.mrf.mxu0
      %v2521 = vadd.f32 %v2357, %v2520
      %v2522 = vpop.f32.mrf.mxu0
      %v2523 = vpop.f32.mrf.mxu0
      %v2524 = vadd.f32 %v2357, %v2523
      %v2525 = vpop.f32.mrf.mxu0
      %2526 = vmatprep.mubr.bf16.mxu0 0
      %2527 = vmatmul.mubr.bf16.gmra.mxu0 %v2315
      %v2528 = vpop.f32.mrf.mxu0
      %v2529 = vadd.f32 %v2357, %v2528
      %v2530 = vpop.f32.mrf.mxu0
      %v2531 = vpop.f32.mrf.mxu0
      %v2532 = vadd.f32 %v2357, %v2531
      %v2533 = vpop.f32.mrf.mxu0
      %2534 = vmatprep.mubr.bf16.mxu0 0
      %2535 = vmatmul.mubr.bf16.gmra.mxu0 %v2316
      %v2536 = vpop.f32.mrf.mxu0
      %v2537 = vadd.f32 %v2357, %v2536
      %v2538 = vpop.f32.mrf.mxu0
      %v2539 = vpop.f32.mrf.mxu0
      %v2540 = vadd.f32 %v2357, %v2539
      %v2541 = vpop.f32.mrf.mxu0
      %2542 = vmatprep.mubr.bf16.mxu0 0
      %2543 = vmatmul.mubr.bf16.gmra.mxu0 %v2317
      %v2544 = vpop.f32.mrf.mxu0
      %v2545 = vadd.f32 %v2357, %v2544
      %v2546 = vpop.f32.mrf.mxu0
      %v2547 = vpop.f32.mrf.mxu0
      %v2548 = vadd.f32 %v2357, %v2547
      %v2549 = vpop.f32.mrf.mxu0
      %2550 = vmatprep.mubr.bf16.mxu0 0
      %2551 = vmatmul.mubr.bf16.gmra.mxu0 %v2318
      %v2552 = vpop.f32.mrf.mxu0
      %v2553 = vadd.f32 %v2357, %v2552
      %v2554 = vpop.f32.mrf.mxu0
      %v2555 = vpop.f32.mrf.mxu0
      %v2556 = vadd.f32 %v2357, %v2555
      %v2557 = vpop.f32.mrf.mxu0
      %2558 = vmatprep.mubr.bf16.mxu0 0
      %2559 = vmatmul.mubr.bf16.gmra.mxu0 %v2319
      %v2560 = vpop.f32.mrf.mxu0
      %v2561 = vadd.f32 %v2357, %v2560
      %v2562 = vpop.f32.mrf.mxu0
      %v2563 = vpop.f32.mrf.mxu0
      %v2564 = vadd.f32 %v2357, %v2563
      %v2565 = vpop.f32.mrf.mxu0
      %2566 = vmatprep.mubr.bf16.mxu0 0
      %2567 = vmatmul.mubr.bf16.gmra.mxu0 %v2320
      %v2568 = vpop.f32.mrf.mxu0
      %v2569 = vadd.f32 %v2357, %v2568
      %v2570 = vpop.f32.mrf.mxu0
      %v2571 = vpop.f32.mrf.mxu0
      %v2572 = vadd.f32 %v2357, %v2571
      %v2573 = vpop.f32.mrf.mxu0
      %2574 = vmatprep.mubr.bf16.mxu0 0
      %2575 = vmatmul.mubr.bf16.gmra.mxu0 %v2321
      %v2576 = vpop.f32.mrf.mxu0
      %v2577 = vadd.f32 %v2357, %v2576
      %v2578 = vpop.f32.mrf.mxu0
      %v2579 = vpop.f32.mrf.mxu0
      %v2580 = vadd.f32 %v2357, %v2579
      %v2581 = vpop.f32.mrf.mxu0
      %2582 = vmatprep.mubr.bf16.mxu0 0
      %2583 = vmatmul.mubr.bf16.gmra.mxu0 %v2322
      %v2584 = vpop.f32.mrf.mxu0
      %v2585 = vadd.f32 %v2357, %v2584
      %v2586 = vpop.f32.mrf.mxu0
      %v2587 = vpop.f32.mrf.mxu0
      %v2588 = vadd.f32 %v2357, %v2587
      %v2589 = vpop.f32.mrf.mxu0
      %2590 = vmatprep.mubr.bf16.mxu0 0
      %2591 = vmatmul.mubr.bf16.gmra.mxu0 %v2323
      %v2592 = vpop.f32.mrf.mxu0
      %v2593 = vadd.f32 %v2357, %v2592
      %v2594 = vpop.f32.mrf.mxu0
      %v2595 = vpop.f32.mrf.mxu0
      %v2596 = vadd.f32 %v2357, %v2595
      %v2597 = vpop.f32.mrf.mxu0
      %2598 = vmatprep.mubr.bf16.mxu0 0
      %2599 = vmatmul.mubr.bf16.gmra.mxu0 %v2324
      %v2600 = vpop.f32.mrf.mxu0
      %v2601 = vadd.f32 %v2357, %v2600
      %v2602 = vpop.f32.mrf.mxu0
      %v2603 = vpop.f32.mrf.mxu0
      %v2604 = vadd.f32 %v2357, %v2603
      %v2605 = vpop.f32.mrf.mxu0
      %2606 = vmatprep.mubr.bf16.mxu0 0
      %2607 = vmatmul.mubr.bf16.gmra.mxu0 %v2325
      %v2608 = vpop.f32.mrf.mxu0
      %v2609 = vadd.f32 %v2357, %v2608
      %v2610 = vpop.f32.mrf.mxu0
      %v2611 = vpop.f32.mrf.mxu0
      %v2612 = vadd.f32 %v2357, %v2611
      %v2613 = vpop.f32.mrf.mxu0
      %2614 = vmatprep.mubr.bf16.mxu0 0
      %2615 = vmatmul.mubr.bf16.gmra.mxu0 %v2326
      %v2616 = vpop.f32.mrf.mxu0
      %v2617 = vadd.f32 %v2357, %v2616
      %v2618 = vpop.f32.mrf.mxu0
      %v2619 = vpop.f32.mrf.mxu0
      %v2620 = vadd.f32 %v2357, %v2619
      %v2621 = vpop.f32.mrf.mxu0
      %2622 = vmatprep.mubr.bf16.mxu0 0
      %2623 = vmatmul.mubr.bf16.gmra.mxu0 %v2327
      %v2624 = vpop.f32.mrf.mxu0
      %v2625 = vadd.f32 %v2357, %v2624
      %v2626 = vpop.f32.mrf.mxu0
      %v2627 = vpop.f32.mrf.mxu0
      %v2628 = vadd.f32 %v2357, %v2627
      %v2629 = vpop.f32.mrf.mxu0
      %2630 = vmatprep.mubr.bf16.mxu0 0
      %2631 = vmatmul.mubr.bf16.gmra.mxu0 %v2328
      %v2632 = vpop.f32.mrf.mxu0
      %v2633 = vadd.f32 %v2357, %v2632
      %v2634 = vpop.f32.mrf.mxu0
      %v2635 = vpop.f32.mrf.mxu0
      %v2636 = vadd.f32 %v2357, %v2635
      %v2637 = vpop.f32.mrf.mxu0
      %2638 = vmatprep.mubr.bf16.mxu0 0
      %2639 = vmatmul.mubr.bf16.gmra.mxu0 %v2329
      %v2640 = vpop.f32.mrf.mxu0
      %v2641 = vadd.f32 %v2357, %v2640
      %v2642 = vpop.f32.mrf.mxu0
      %v2643 = vpop.f32.mrf.mxu0
      %v2644 = vadd.f32 %v2357, %v2643
      %v2645 = vpop.f32.mrf.mxu0
      %2646 = vmatprep.mubr.bf16.mxu0 0
      %2647 = vmatmul.mubr.bf16.gmra.mxu0 %v2330
      %v2648 = vpop.f32.mrf.mxu0
      %v2649 = vadd.f32 %v2357, %v2648
      %v2650 = vpop.f32.mrf.mxu0
      %v2651 = vpop.f32.mrf.mxu0
      %v2652 = vadd.f32 %v2357, %v2651
      %v2653 = vpop.f32.mrf.mxu0
      %2654 = vmatprep.mubr.bf16.mxu0 0
      %2655 = vmatmul.mubr.bf16.gmra.mxu0 %v2331
      %v2656 = vpop.f32.mrf.mxu0
      %v2657 = vadd.f32 %v2357, %v2656
      %v2658 = vpop.f32.mrf.mxu0
      %v2659 = vpop.f32.mrf.mxu0
      %v2660 = vadd.f32 %v2357, %v2659
      %v2661 = vpop.f32.mrf.mxu0
      %2662 = vmatprep.mubr.bf16.mxu0 0
      %2663 = vmatmul.mubr.bf16.gmra.mxu0 %v2332
      %v2664 = vpop.f32.mrf.mxu0
      %v2665 = vadd.f32 %v2357, %v2664
      %v2666 = vpop.f32.mrf.mxu0
      %v2667 = vpop.f32.mrf.mxu0
      %v2668 = vadd.f32 %v2357, %v2667
      %v2669 = vpop.f32.mrf.mxu0
      %2670 = vmatprep.mubr.bf16.mxu0 0
      %2671 = vmatmul.mubr.bf16.gmra.mxu0 %v2333
      %v2672 = vpop.f32.mrf.mxu0
      %v2673 = vadd.f32 %v2357, %v2672
      %v2674 = vpop.f32.mrf.mxu0
      %v2675 = vpop.f32.mrf.mxu0
      %v2676 = vadd.f32 %v2357, %v2675
      %v2677 = vpop.f32.mrf.mxu0
      %2678 = vmatprep.mubr.bf16.mxu0 0
      %2679 = vmatmul.mubr.bf16.gmra.mxu0 %v2334
      %v2680 = vpop.f32.mrf.mxu0
      %v2681 = vadd.f32 %v2357, %v2680
      %v2682 = vpop.f32.mrf.mxu0
      %v2683 = vpop.f32.mrf.mxu0
      %v2684 = vadd.f32 %v2357, %v2683
      %v2685 = vpop.f32.mrf.mxu0
      %2686 = vmatprep.mubr.bf16.mxu0 0
      %2687 = vmatmul.mubr.bf16.gmra.mxu0 %v2335
      %v2688 = vpop.f32.mrf.mxu0
      %v2689 = vadd.f32 %v2357, %v2688
      %v2690 = vpop.f32.mrf.mxu0
      %v2691 = vpop.f32.mrf.mxu0
      %v2692 = vadd.f32 %v2357, %v2691
      %v2693 = vpop.f32.mrf.mxu0
      %2694 = vdwg.mxu0
      %v2695 = vmax.f32 %v2441, 0.0
      %v2696 = vmax.f32 %v2444, 0.0
      %v2697 = vmax.f32 %v2449, 0.0
      %v2698 = vmax.f32 %v2452, 0.0
      %v2699 = vmax.f32 %v2457, 0.0
      %v2700 = vmax.f32 %v2460, 0.0
      %v2701 = vmax.f32 %v2465, 0.0
      %v2702 = vmax.f32 %v2468, 0.0
      %v2703 = vmax.f32 %v2473, 0.0
      %v2704 = vmax.f32 %v2476, 0.0
      %v2705 = vmax.f32 %v2481, 0.0
      %v2706 = vmax.f32 %v2484, 0.0
      %v2707 = vmax.f32 %v2489, 0.0
      %v2708 = vmax.f32 %v2492, 0.0
      %v2709 = vmax.f32 %v2497, 0.0
      %v2710 = vmax.f32 %v2500, 0.0
      %v2711 = vmax.f32 %v2505, 0.0
      %v2712 = vmax.f32 %v2508, 0.0
      %v2713 = vmax.f32 %v2513, 0.0
      %v2714 = vmax.f32 %v2516, 0.0
      %v2715 = vmax.f32 %v2521, 0.0
      %v2716 = vmax.f32 %v2524, 0.0
      %v2717 = vmax.f32 %v2529, 0.0
      %v2718 = vmax.f32 %v2532, 0.0
      %v2719 = vmax.f32 %v2537, 0.0
      %v2720 = vmax.f32 %v2540, 0.0
      %v2721 = vmax.f32 %v2545, 0.0
      %v2722 = vmax.f32 %v2548, 0.0
      %v2723 = vmax.f32 %v2553, 0.0
      %v2724 = vmax.f32 %v2556, 0.0
      %v2725 = vmax.f32 %v2561, 0.0
      %v2726 = vmax.f32 %v2564, 0.0
      %v2727 = vmax.f32 %v2569, 0.0
      %v2728 = vmax.f32 %v2572, 0.0
      %v2729 = vmax.f32 %v2577, 0.0
      %v2730 = vmax.f32 %v2580, 0.0
      %v2731 = vmax.f32 %v2585, 0.0
      %v2732 = vmax.f32 %v2588, 0.0
      %v2733 = vmax.f32 %v2593, 0.0
      %v2734 = vmax.f32 %v2596, 0.0
      %v2735 = vmax.f32 %v2601, 0.0
      %v2736 = vmax.f32 %v2604, 0.0
      %v2737 = vmax.f32 %v2609, 0.0
      %v2738 = vmax.f32 %v2612, 0.0
      %v2739 = vmax.f32 %v2617, 0.0
      %v2740 = vmax.f32 %v2620, 0.0
      %v2741 = vmax.f32 %v2625, 0.0
      %v2742 = vmax.f32 %v2628, 0.0
      %v2743 = vmax.f32 %v2633, 0.0
      %v2744 = vmax.f32 %v2636, 0.0
      %v2745 = vmax.f32 %v2641, 0.0
      %v2746 = vmax.f32 %v2644, 0.0
      %v2747 = vmax.f32 %v2649, 0.0
      %v2748 = vmax.f32 %v2652, 0.0
      %v2749 = vmax.f32 %v2657, 0.0
      %v2750 = vmax.f32 %v2660, 0.0
      %v2751 = vmax.f32 %v2665, 0.0
      %v2752 = vmax.f32 %v2668, 0.0
      %v2753 = vmax.f32 %v2673, 0.0
      %v2754 = vmax.f32 %v2676, 0.0
      %v2755 = vmax.f32 %v2681, 0.0
      %v2756 = vmax.f32 %v2684, 0.0
      %v2757 = vmax.f32 %v2689, 0.0
      %v2758 = vmax.f32 %v2692, 0.0
      %v2759 = vpack.c.bf16 %v2696, %v2695
      %v2760 = vpack.c.bf16 %v2698, %v2697
      %v2761 = vpack.c.bf16 %v2700, %v2699
      %v2762 = vpack.c.bf16 %v2702, %v2701
      %v2763 = vpack.c.bf16 %v2704, %v2703
      %v2764 = vpack.c.bf16 %v2706, %v2705
      %v2765 = vpack.c.bf16 %v2708, %v2707
      %v2766 = vpack.c.bf16 %v2710, %v2709
      %v2767 = vpack.c.bf16 %v2712, %v2711
      %v2768 = vpack.c.bf16 %v2714, %v2713
      %v2769 = vpack.c.bf16 %v2716, %v2715
      %v2770 = vpack.c.bf16 %v2718, %v2717
      %v2771 = vpack.c.bf16 %v2720, %v2719
      %v2772 = vpack.c.bf16 %v2722, %v2721
      %v2773 = vpack.c.bf16 %v2724, %v2723
      %v2774 = vpack.c.bf16 %v2726, %v2725
      %v2775 = vpack.c.bf16 %v2728, %v2727
      %v2776 = vpack.c.bf16 %v2730, %v2729
      %v2777 = vpack.c.bf16 %v2732, %v2731
      %v2778 = vpack.c.bf16 %v2734, %v2733
      %v2779 = vpack.c.bf16 %v2736, %v2735
      %v2780 = vpack.c.bf16 %v2738, %v2737
      %v2781 = vpack.c.bf16 %v2740, %v2739
      %v2782 = vpack.c.bf16 %v2742, %v2741
      %v2783 = vpack.c.bf16 %v2744, %v2743
      %v2784 = vpack.c.bf16 %v2746, %v2745
      %v2785 = vpack.c.bf16 %v2748, %v2747
      %v2786 = vpack.c.bf16 %v2750, %v2749
      %v2787 = vpack.c.bf16 %v2752, %v2751
      %v2788 = vpack.c.bf16 %v2754, %v2753
      %v2789 = vpack.c.bf16 %v2756, %v2755
      %v2790 = vpack.c.bf16 %v2758, %v2757
      %v2791 = vld [vmem:[%s4 + $0x5] sm:$0x1]
      %s2792 = scalar_lea.vmem %s1, 4
      %v2793 = vld [vmem:[%s2792] sm:$0xf]
      %s2794 = scalar_lea.vmem %s2, 256
      %v2795 = vld [vmem:[%s2794] sm:$0xf]
      %v2796 = vld [vmem:[%s2794 + $0x4] sm:$0xf]
      %v2797 = vld [vmem:[%s2794 + $0x8] sm:$0xf]
      %v2798 = vld [vmem:[%s2794 + $0xc] sm:$0xf]
      %v2799 = vld [vmem:[%s2794 + $0x10] sm:$0xf]
      %v2800 = vld [vmem:[%s2794 + $0x14] sm:$0xf]
      %v2801 = vld [vmem:[%s2794 + $0x18] sm:$0xf]
      %v2802 = vld [vmem:[%s2794 + $0x1c] sm:$0xf]
      %v2803 = vld [vmem:[%s2794 + $0x20] sm:$0xf]
      %v2804 = vld [vmem:[%s2794 + $0x24] sm:$0xf]
      %v2805 = vld [vmem:[%s2794 + $0x28] sm:$0xf]
      %v2806 = vld [vmem:[%s2794 + $0x2c] sm:$0xf]
      %v2807 = vld [vmem:[%s2794 + $0x30] sm:$0xf]
      %v2808 = vld [vmem:[%s2794 + $0x34] sm:$0xf]
      %v2809 = vld [vmem:[%s2794 + $0x38] sm:$0xf]
      %v2810 = vld [vmem:[%s2794 + $0x3c] sm:$0xf]
      %v2827 = vunpack.c.l.b16 %v2795
      %v2828 = vunpack.c.l.b16 %v2796
      %v2829 = vunpack.c.l.b16 %v2797
      %v2830 = vunpack.c.l.b16 %v2798
      %v2831 = vunpack.c.l.b16 %v2799
      %v2832 = vunpack.c.l.b16 %v2800
      %v2833 = vunpack.c.l.b16 %v2801
      %v2834 = vunpack.c.l.b16 %v2802
      %v2835 = vunpack.c.l.b16 %v2803
      %v2836 = vunpack.c.l.b16 %v2804
      %v2837 = vunpack.c.l.b16 %v2805
      %v2838 = vunpack.c.l.b16 %v2806
      %v2839 = vunpack.c.l.b16 %v2807
      %v2840 = vunpack.c.l.b16 %v2808
      %v2841 = vunpack.c.l.b16 %v2809
      %v2842 = vunpack.c.l.b16 %v2810
      %v2843 = vpack.c.b16 %v2828, %v2827
      %v2844 = vpack.c.b16 %v2830, %v2829
      %v2845 = vpack.c.b16 %v2832, %v2831
      %v2846 = vpack.c.b16 %v2834, %v2833
      %v2847 = vpack.c.b16 %v2836, %v2835
      %v2848 = vpack.c.b16 %v2838, %v2837
      %v2849 = vpack.c.b16 %v2840, %v2839
      %v2850 = vpack.c.b16 %v2842, %v2841
      %2859 = vmatprep.subr.bf16.mxu0 0
      %2860 = vmatpush1.bf16.msra.mxu0 %v2850
      %2861 = vmatprep.subr.bf16.mxu0 0
      %2862 = vmatpush1.bf16.msra.mxu0 %v2849
      %2863 = vmatprep.subr.bf16.mxu0 0
      %2864 = vmatpush1.bf16.msra.mxu0 %v2848
      %2865 = vmatprep.subr.bf16.mxu0 0
      %2866 = vmatpush1.bf16.msra.mxu0 %v2847
      %2867 = vmatprep.subr.bf16.mxu0 0
      %2868 = vmatpush1.bf16.msra.mxu0 %v2846
      %2869 = vmatprep.subr.bf16.mxu0 0
      %2870 = vmatpush1.bf16.msra.mxu0 %v2845
      %2871 = vmatprep.subr.bf16.mxu0 0
      %2872 = vmatpush1.bf16.msra.mxu0 %v2844
      %2873 = vmatprep.subr.bf16.mxu0 0
      %2874 = vmatpush1.bf16.msra.mxu0 %v2843
      %2875 = vmatprep.subr.bf16.mxu0 0
      %2876 = vmatpush2.bf16.msra.mxu0 0
      %2877 = vmatprep.subr.bf16.mxu0 0
      %2878 = vmatpush2.bf16.msra.mxu0 0
      %2879 = vmatprep.subr.bf16.mxu0 0
      %2880 = vmatpush2.bf16.msra.mxu0 0
      %2881 = vmatprep.subr.bf16.mxu0 0
      %2882 = vmatpush2.bf16.msra.mxu0 0
      %2883 = vmatprep.subr.bf16.mxu0 0
      %2884 = vmatpush2.bf16.msra.mxu0 0
      %2885 = vmatprep.subr.bf16.mxu0 0
      %2886 = vmatpush2.bf16.msra.mxu0 0
      %2887 = vmatprep.subr.bf16.mxu0 0
      %2888 = vmatpush2.bf16.msra.mxu0 0
      %2889 = vmatprep.subr.bf16.mxu0 0
      %2890 = vmatpush2.bf16.msra.mxu0 0
      %2891 = vmatprep.mubr.bf16.mxu0 0
      %2892 = vmatmul.mubr.bf16.gmra.mxu0 %v2759
      %v2893 = vpop.f32.mrf.mxu0
      %v2894 = vadd.f32 0.0, %v2893
      %v2895 = vpop.f32.mrf.mxu0
      %v2896 = vpop.f32.mrf.mxu0
      %v2897 = vadd.f32 0.0, %v2896
      %v2898 = vpop.f32.mrf.mxu0
      %2899 = vmatprep.mubr.bf16.mxu0 0
      %2900 = vmatmul.mubr.bf16.gmra.mxu0 %v2760
      %v2901 = vpop.f32.mrf.mxu0
      %v2902 = vadd.f32 0.0, %v2901
      %v2903 = vpop.f32.mrf.mxu0
      %v2904 = vpop.f32.mrf.mxu0
      %v2905 = vadd.f32 0.0, %v2904
      %v2906 = vpop.f32.mrf.mxu0
      %2907 = vmatprep.mubr.bf16.mxu0 0
      %2908 = vmatmul.mubr.bf16.gmra.mxu0 %v2761
      %v2909 = vpop.f32.mrf.mxu0
      %v2910 = vadd.f32 0.0, %v2909
      %v2911 = vpop.f32.mrf.mxu0
      %v2912 = vpop.f32.mrf.mxu0
      %v2913 = vadd.f32 0.0, %v2912
      %v2914 = vpop.f32.mrf.mxu0
      %2915 = vmatprep.mubr.bf16.mxu0 0
      %2916 = vmatmul.mubr.bf16.gmra.mxu0 %v2762
      %v2917 = vpop.f32.mrf.mxu0
      %v2918 = vadd.f32 0.0, %v2917
      %v2919 = vpop.f32.mrf.mxu0
      %v2920 = vpop.f32.mrf.mxu0
      %v2921 = vadd.f32 0.0, %v2920
      %v2922 = vpop.f32.mrf.mxu0
      %2923 = vmatprep.mubr.bf16.mxu0 0
      %2924 = vmatmul.mubr.bf16.gmra.mxu0 %v2763
      %v2925 = vpop.f32.mrf.mxu0
      %v2926 = vadd.f32 0.0, %v2925
      %v2927 = vpop.f32.mrf.mxu0
      %v2928 = vpop.f32.mrf.mxu0
      %v2929 = vadd.f32 0.0, %v2928
      %v2930 = vpop.f32.mrf.mxu0
      %2931 = vmatprep.mubr.bf16.mxu0 0
      %2932 = vmatmul.mubr.bf16.gmra.mxu0 %v2764
      %v2933 = vpop.f32.mrf.mxu0
      %v2934 = vadd.f32 0.0, %v2933
      %v2935 = vpop.f32.mrf.mxu0
      %v2936 = vpop.f32.mrf.mxu0
      %v2937 = vadd.f32 0.0, %v2936
      %v2938 = vpop.f32.mrf.mxu0
      %2939 = vmatprep.mubr.bf16.mxu0 0
      %2940 = vmatmul.mubr.bf16.gmra.mxu0 %v2765
      %v2941 = vpop.f32.mrf.mxu0
      %v2942 = vadd.f32 0.0, %v2941
      %v2943 = vpop.f32.mrf.mxu0
      %v2944 = vpop.f32.mrf.mxu0
      %v2945 = vadd.f32 0.0, %v2944
      %v2946 = vpop.f32.mrf.mxu0
      %2947 = vmatprep.mubr.bf16.mxu0 0
      %2948 = vmatmul.mubr.bf16.gmra.mxu0 %v2766
      %v2949 = vpop.f32.mrf.mxu0
      %v2950 = vadd.f32 0.0, %v2949
      %v2951 = vpop.f32.mrf.mxu0
      %v2952 = vpop.f32.mrf.mxu0
      %v2953 = vadd.f32 0.0, %v2952
      %v2954 = vpop.f32.mrf.mxu0
      %2955 = vmatprep.mubr.bf16.mxu0 0
      %2956 = vmatmul.mubr.bf16.gmra.mxu0 %v2767
      %v2957 = vpop.f32.mrf.mxu0
      %v2958 = vadd.f32 0.0, %v2957
      %v2959 = vpop.f32.mrf.mxu0
      %v2960 = vpop.f32.mrf.mxu0
      %v2961 = vadd.f32 0.0, %v2960
      %v2962 = vpop.f32.mrf.mxu0
      %2963 = vmatprep.mubr.bf16.mxu0 0
      %2964 = vmatmul.mubr.bf16.gmra.mxu0 %v2768
      %v2965 = vpop.f32.mrf.mxu0
      %v2966 = vadd.f32 0.0, %v2965
      %v2967 = vpop.f32.mrf.mxu0
      %v2968 = vpop.f32.mrf.mxu0
      %v2969 = vadd.f32 0.0, %v2968
      %v2970 = vpop.f32.mrf.mxu0
      %2971 = vmatprep.mubr.bf16.mxu0 0
      %2972 = vmatmul.mubr.bf16.gmra.mxu0 %v2769
      %v2973 = vpop.f32.mrf.mxu0
      %v2974 = vadd.f32 0.0, %v2973
      %v2975 = vpop.f32.mrf.mxu0
      %v2976 = vpop.f32.mrf.mxu0
      %v2977 = vadd.f32 0.0, %v2976
      %v2978 = vpop.f32.mrf.mxu0
      %2979 = vmatprep.mubr.bf16.mxu0 0
      %2980 = vmatmul.mubr.bf16.gmra.mxu0 %v2770
      %v2981 = vpop.f32.mrf.mxu0
      %v2982 = vadd.f32 0.0, %v2981
      %v2983 = vpop.f32.mrf.mxu0
      %v2984 = vpop.f32.mrf.mxu0
      %v2985 = vadd.f32 0.0, %v2984
      %v2986 = vpop.f32.mrf.mxu0
      %2987 = vmatprep.mubr.bf16.mxu0 0
      %2988 = vmatmul.mubr.bf16.gmra.mxu0 %v2771
      %v2989 = vpop.f32.mrf.mxu0
      %v2990 = vadd.f32 0.0, %v2989
      %v2991 = vpop.f32.mrf.mxu0
      %v2992 = vpop.f32.mrf.mxu0
      %v2993 = vadd.f32 0.0, %v2992
      %v2994 = vpop.f32.mrf.mxu0
      %2995 = vmatprep.mubr.bf16.mxu0 0
      %2996 = vmatmul.mubr.bf16.gmra.mxu0 %v2772
      %v2997 = vpop.f32.mrf.mxu0
      %v2998 = vadd.f32 0.0, %v2997
      %v2999 = vpop.f32.mrf.mxu0
      %v3000 = vpop.f32.mrf.mxu0
      %v3001 = vadd.f32 0.0, %v3000
      %v3002 = vpop.f32.mrf.mxu0
      %3003 = vmatprep.mubr.bf16.mxu0 0
      %3004 = vmatmul.mubr.bf16.gmra.mxu0 %v2773
      %v3005 = vpop.f32.mrf.mxu0
      %v3006 = vadd.f32 0.0, %v3005
      %v3007 = vpop.f32.mrf.mxu0
      %v3008 = vpop.f32.mrf.mxu0
      %v3009 = vadd.f32 0.0, %v3008
      %v3010 = vpop.f32.mrf.mxu0
      %3011 = vmatprep.mubr.bf16.mxu0 0
      %3012 = vmatmul.mubr.bf16.gmra.mxu0 %v2774
      %v3013 = vpop.f32.mrf.mxu0
      %v3014 = vadd.f32 0.0, %v3013
      %v3015 = vpop.f32.mrf.mxu0
      %v3016 = vpop.f32.mrf.mxu0
      %v3017 = vadd.f32 0.0, %v3016
      %v3018 = vpop.f32.mrf.mxu0
      %3019 = vmatprep.mubr.bf16.mxu0 0
      %3020 = vmatmul.mubr.bf16.gmra.mxu0 %v2775
      %v3021 = vpop.f32.mrf.mxu0
      %v3022 = vadd.f32 0.0, %v3021
      %v3023 = vpop.f32.mrf.mxu0
      %v3024 = vpop.f32.mrf.mxu0
      %v3025 = vadd.f32 0.0, %v3024
      %v3026 = vpop.f32.mrf.mxu0
      %3027 = vmatprep.mubr.bf16.mxu0 0
      %3028 = vmatmul.mubr.bf16.gmra.mxu0 %v2776
      %v3029 = vpop.f32.mrf.mxu0
      %v3030 = vadd.f32 0.0, %v3029
      %v3031 = vpop.f32.mrf.mxu0
      %v3032 = vpop.f32.mrf.mxu0
      %v3033 = vadd.f32 0.0, %v3032
      %v3034 = vpop.f32.mrf.mxu0
      %3035 = vmatprep.mubr.bf16.mxu0 0
      %3036 = vmatmul.mubr.bf16.gmra.mxu0 %v2777
      %v3037 = vpop.f32.mrf.mxu0
      %v3038 = vadd.f32 0.0, %v3037
      %v3039 = vpop.f32.mrf.mxu0
      %v3040 = vpop.f32.mrf.mxu0
      %v3041 = vadd.f32 0.0, %v3040
      %v3042 = vpop.f32.mrf.mxu0
      %3043 = vmatprep.mubr.bf16.mxu0 0
      %3044 = vmatmul.mubr.bf16.gmra.mxu0 %v2778
      %v3045 = vpop.f32.mrf.mxu0
      %v3046 = vadd.f32 0.0, %v3045
      %v3047 = vpop.f32.mrf.mxu0
      %v3048 = vpop.f32.mrf.mxu0
      %v3049 = vadd.f32 0.0, %v3048
      %v3050 = vpop.f32.mrf.mxu0
      %3051 = vmatprep.mubr.bf16.mxu0 0
      %3052 = vmatmul.mubr.bf16.gmra.mxu0 %v2779
      %v3053 = vpop.f32.mrf.mxu0
      %v3054 = vadd.f32 0.0, %v3053
      %v3055 = vpop.f32.mrf.mxu0
      %v3056 = vpop.f32.mrf.mxu0
      %v3057 = vadd.f32 0.0, %v3056
      %v3058 = vpop.f32.mrf.mxu0
      %3059 = vmatprep.mubr.bf16.mxu0 0
      %3060 = vmatmul.mubr.bf16.gmra.mxu0 %v2780
      %v3061 = vpop.f32.mrf.mxu0
      %v3062 = vadd.f32 0.0, %v3061
      %v3063 = vpop.f32.mrf.mxu0
      %v3064 = vpop.f32.mrf.mxu0
      %v3065 = vadd.f32 0.0, %v3064
      %v3066 = vpop.f32.mrf.mxu0
      %3067 = vmatprep.mubr.bf16.mxu0 0
      %3068 = vmatmul.mubr.bf16.gmra.mxu0 %v2781
      %v3069 = vpop.f32.mrf.mxu0
      %v3070 = vadd.f32 0.0, %v3069
      %v3071 = vpop.f32.mrf.mxu0
      %v3072 = vpop.f32.mrf.mxu0
      %v3073 = vadd.f32 0.0, %v3072
      %v3074 = vpop.f32.mrf.mxu0
      %3075 = vmatprep.mubr.bf16.mxu0 0
      %3076 = vmatmul.mubr.bf16.gmra.mxu0 %v2782
      %v3077 = vpop.f32.mrf.mxu0
      %v3078 = vadd.f32 0.0, %v3077
      %v3079 = vpop.f32.mrf.mxu0
      %v3080 = vpop.f32.mrf.mxu0
      %v3081 = vadd.f32 0.0, %v3080
      %v3082 = vpop.f32.mrf.mxu0
      %3083 = vmatprep.mubr.bf16.mxu0 0
      %3084 = vmatmul.mubr.bf16.gmra.mxu0 %v2783
      %v3085 = vpop.f32.mrf.mxu0
      %v3086 = vadd.f32 0.0, %v3085
      %v3087 = vpop.f32.mrf.mxu0
      %v3088 = vpop.f32.mrf.mxu0
      %v3089 = vadd.f32 0.0, %v3088
      %v3090 = vpop.f32.mrf.mxu0
      %3091 = vmatprep.mubr.bf16.mxu0 0
      %3092 = vmatmul.mubr.bf16.gmra.mxu0 %v2784
      %v3093 = vpop.f32.mrf.mxu0
      %v3094 = vadd.f32 0.0, %v3093
      %v3095 = vpop.f32.mrf.mxu0
      %v3096 = vpop.f32.mrf.mxu0
      %v3097 = vadd.f32 0.0, %v3096
      %v3098 = vpop.f32.mrf.mxu0
      %3099 = vmatprep.mubr.bf16.mxu0 0
      %3100 = vmatmul.mubr.bf16.gmra.mxu0 %v2785
      %v3101 = vpop.f32.mrf.mxu0
      %v3102 = vadd.f32 0.0, %v3101
      %v3103 = vpop.f32.mrf.mxu0
      %v3104 = vpop.f32.mrf.mxu0
      %v3105 = vadd.f32 0.0, %v3104
      %v3106 = vpop.f32.mrf.mxu0
      %3107 = vmatprep.mubr.bf16.mxu0 0
      %3108 = vmatmul.mubr.bf16.gmra.mxu0 %v2786
      %v3109 = vpop.f32.mrf.mxu0
      %v3110 = vadd.f32 0.0, %v3109
      %v3111 = vpop.f32.mrf.mxu0
      %v3112 = vpop.f32.mrf.mxu0
      %v3113 = vadd.f32 0.0, %v3112
      %v3114 = vpop.f32.mrf.mxu0
      %3115 = vmatprep.mubr.bf16.mxu0 0
      %3116 = vmatmul.mubr.bf16.gmra.mxu0 %v2787
      %v3117 = vpop.f32.mrf.mxu0
      %v3118 = vadd.f32 0.0, %v3117
      %v3119 = vpop.f32.mrf.mxu0
      %v3120 = vpop.f32.mrf.mxu0
      %v3121 = vadd.f32 0.0, %v3120
      %v3122 = vpop.f32.mrf.mxu0
      %3123 = vmatprep.mubr.bf16.mxu0 0
      %3124 = vmatmul.mubr.bf16.gmra.mxu0 %v2788
      %v3125 = vpop.f32.mrf.mxu0
      %v3126 = vadd.f32 0.0, %v3125
      %v3127 = vpop.f32.mrf.mxu0
      %v3128 = vpop.f32.mrf.mxu0
      %v3129 = vadd.f32 0.0, %v3128
      %v3130 = vpop.f32.mrf.mxu0
      %3131 = vmatprep.mubr.bf16.mxu0 0
      %3132 = vmatmul.mubr.bf16.gmra.mxu0 %v2789
      %v3133 = vpop.f32.mrf.mxu0
      %v3134 = vadd.f32 0.0, %v3133
      %v3135 = vpop.f32.mrf.mxu0
      %v3136 = vpop.f32.mrf.mxu0
      %v3137 = vadd.f32 0.0, %v3136
      %v3138 = vpop.f32.mrf.mxu0
      %3139 = vmatprep.mubr.bf16.mxu0 0
      %3140 = vmatmul.mubr.bf16.gmra.mxu0 %v2790
      %v3141 = vpop.f32.mrf.mxu0
      %v3142 = vadd.f32 0.0, %v3141
      %v3143 = vpop.f32.mrf.mxu0
      %v3144 = vpop.f32.mrf.mxu0
      %v3145 = vadd.f32 0.0, %v3144
      %v3146 = vpop.f32.mrf.mxu0
      %3147 = vdwg.mxu0
      %v3149 = vsel %vm583, %v2793, 0
      %3151 = vmatprep.subr.bf16.mxu0 0
      %3152 = vmatpush1.bf16.msra.mxu0 0
      %3153 = vmatprep.subr.bf16.mxu0 0
      %3154 = vmatpush1.bf16.msra.mxu0 0
      %3155 = vmatprep.subr.bf16.mxu0 0
      %3156 = vmatpush1.bf16.msra.mxu0 0
      %3157 = vmatprep.subr.bf16.mxu0 0
      %3158 = vmatpush1.bf16.msra.mxu0 0
      %3159 = vmatprep.subr.bf16.mxu0 0
      %3160 = vmatpush1.bf16.msra.mxu0 0
      %3161 = vmatprep.subr.bf16.mxu0 0
      %3162 = vmatpush1.bf16.msra.mxu0 0
      %3163 = vmatprep.subr.bf16.mxu0 0
      %3164 = vmatpush1.bf16.msra.mxu0 0
      %3165 = vmatprep.subr.bf16.mxu0 0
      %3166 = vmatpush1.bf16.msra.mxu0 %v3149
      %3167 = vmatprep.subr.bf16.mxu0 0
      %3168 = vmatpush2.bf16.msra.mxu0 0
      %3169 = vmatprep.subr.bf16.mxu0 0
      %3170 = vmatpush2.bf16.msra.mxu0 0
      %3171 = vmatprep.subr.bf16.mxu0 0
      %3172 = vmatpush2.bf16.msra.mxu0 0
      %3173 = vmatprep.subr.bf16.mxu0 0
      %3174 = vmatpush2.bf16.msra.mxu0 0
      %3175 = vmatprep.subr.bf16.mxu0 0
      %3176 = vmatpush2.bf16.msra.mxu0 0
      %3177 = vmatprep.subr.bf16.mxu0 0
      %3178 = vmatpush2.bf16.msra.mxu0 0
      %3179 = vmatprep.subr.bf16.mxu0 0
      %3180 = vmatpush2.bf16.msra.mxu0 0
      %3181 = vmatprep.subr.bf16.mxu0 0
      %3182 = vmatpush2.bf16.msra.mxu0 0
      %3183 = vmatprep.mubr.bf16.mxu0 0
      %3184 = vmatmul.mubr.bf16.gmra.mxu0 %v488
      %v3185 = vpop.f32.mrf.mxu0
      %v3186 = vadd.f32 %v2894, %v3185
      %v3187 = vpop.f32.mrf.mxu0
      %v3188 = vpop.f32.mrf.mxu0
      %v3189 = vadd.f32 %v2897, %v3188
      %v3190 = vpop.f32.mrf.mxu0
      %3191 = vmatprep.mubr.bf16.mxu0 0
      %3192 = vmatmul.mubr.bf16.gmra.mxu0 %v491
      %v3193 = vpop.f32.mrf.mxu0
      %v3194 = vadd.f32 %v2902, %v3193
      %v3195 = vpop.f32.mrf.mxu0
      %v3196 = vpop.f32.mrf.mxu0
      %v3197 = vadd.f32 %v2905, %v3196
      %v3198 = vpop.f32.mrf.mxu0
      %3199 = vmatprep.mubr.bf16.mxu0 0
      %3200 = vmatmul.mubr.bf16.gmra.mxu0 %v494
      %v3201 = vpop.f32.mrf.mxu0
      %v3202 = vadd.f32 %v2910, %v3201
      %v3203 = vpop.f32.mrf.mxu0
      %v3204 = vpop.f32.mrf.mxu0
      %v3205 = vadd.f32 %v2913, %v3204
      %v3206 = vpop.f32.mrf.mxu0
      %3207 = vmatprep.mubr.bf16.mxu0 0
      %3208 = vmatmul.mubr.bf16.gmra.mxu0 %v497
      %v3209 = vpop.f32.mrf.mxu0
      %v3210 = vadd.f32 %v2918, %v3209
      %v3211 = vpop.f32.mrf.mxu0
      %v3212 = vpop.f32.mrf.mxu0
      %v3213 = vadd.f32 %v2921, %v3212
      %v3214 = vpop.f32.mrf.mxu0
      %3215 = vmatprep.mubr.bf16.mxu0 0
      %3216 = vmatmul.mubr.bf16.gmra.mxu0 %v500
      %v3217 = vpop.f32.mrf.mxu0
      %v3218 = vadd.f32 %v2926, %v3217
      %v3219 = vpop.f32.mrf.mxu0
      %v3220 = vpop.f32.mrf.mxu0
      %v3221 = vadd.f32 %v2929, %v3220
      %v3222 = vpop.f32.mrf.mxu0
      %3223 = vmatprep.mubr.bf16.mxu0 0
      %3224 = vmatmul.mubr.bf16.gmra.mxu0 %v503
      %v3225 = vpop.f32.mrf.mxu0
      %v3226 = vadd.f32 %v2934, %v3225
      %v3227 = vpop.f32.mrf.mxu0
      %v3228 = vpop.f32.mrf.mxu0
      %v3229 = vadd.f32 %v2937, %v3228
      %v3230 = vpop.f32.mrf.mxu0
      %3231 = vmatprep.mubr.bf16.mxu0 0
      %3232 = vmatmul.mubr.bf16.gmra.mxu0 %v506
      %v3233 = vpop.f32.mrf.mxu0
      %v3234 = vadd.f32 %v2942, %v3233
      %v3235 = vpop.f32.mrf.mxu0
      %v3236 = vpop.f32.mrf.mxu0
      %v3237 = vadd.f32 %v2945, %v3236
      %v3238 = vpop.f32.mrf.mxu0
      %3239 = vmatprep.mubr.bf16.mxu0 0
      %3240 = vmatmul.mubr.bf16.gmra.mxu0 %v509
      %v3241 = vpop.f32.mrf.mxu0
      %v3242 = vadd.f32 %v2950, %v3241
      %v3243 = vpop.f32.mrf.mxu0
      %v3244 = vpop.f32.mrf.mxu0
      %v3245 = vadd.f32 %v2953, %v3244
      %v3246 = vpop.f32.mrf.mxu0
      %3247 = vmatprep.mubr.bf16.mxu0 0
      %3248 = vmatmul.mubr.bf16.gmra.mxu0 %v512
      %v3249 = vpop.f32.mrf.mxu0
      %v3250 = vadd.f32 %v2958, %v3249
      %v3251 = vpop.f32.mrf.mxu0
      %v3252 = vpop.f32.mrf.mxu0
      %v3253 = vadd.f32 %v2961, %v3252
      %v3254 = vpop.f32.mrf.mxu0
      %3255 = vmatprep.mubr.bf16.mxu0 0
      %3256 = vmatmul.mubr.bf16.gmra.mxu0 %v515
      %v3257 = vpop.f32.mrf.mxu0
      %v3258 = vadd.f32 %v2966, %v3257
      %v3259 = vpop.f32.mrf.mxu0
      %v3260 = vpop.f32.mrf.mxu0
      %v3261 = vadd.f32 %v2969, %v3260
      %v3262 = vpop.f32.mrf.mxu0
      %3263 = vmatprep.mubr.bf16.mxu0 0
      %3264 = vmatmul.mubr.bf16.gmra.mxu0 %v518
      %v3265 = vpop.f32.mrf.mxu0
      %v3266 = vadd.f32 %v2974, %v3265
      %v3267 = vpop.f32.mrf.mxu0
      %v3268 = vpop.f32.mrf.mxu0
      %v3269 = vadd.f32 %v2977, %v3268
      %v3270 = vpop.f32.mrf.mxu0
      %3271 = vmatprep.mubr.bf16.mxu0 0
      %3272 = vmatmul.mubr.bf16.gmra.mxu0 %v521
      %v3273 = vpop.f32.mrf.mxu0
      %v3274 = vadd.f32 %v2982, %v3273
      %v3275 = vpop.f32.mrf.mxu0
      %v3276 = vpop.f32.mrf.mxu0
      %v3277 = vadd.f32 %v2985, %v3276
      %v3278 = vpop.f32.mrf.mxu0
      %3279 = vmatprep.mubr.bf16.mxu0 0
      %3280 = vmatmul.mubr.bf16.gmra.mxu0 %v524
      %v3281 = vpop.f32.mrf.mxu0
      %v3282 = vadd.f32 %v2990, %v3281
      %v3283 = vpop.f32.mrf.mxu0
      %v3284 = vpop.f32.mrf.mxu0
      %v3285 = vadd.f32 %v2993, %v3284
      %v3286 = vpop.f32.mrf.mxu0
      %3287 = vmatprep.mubr.bf16.mxu0 0
      %3288 = vmatmul.mubr.bf16.gmra.mxu0 %v527
      %v3289 = vpop.f32.mrf.mxu0
      %v3290 = vadd.f32 %v2998, %v3289
      %v3291 = vpop.f32.mrf.mxu0
      %v3292 = vpop.f32.mrf.mxu0
      %v3293 = vadd.f32 %v3001, %v3292
      %v3294 = vpop.f32.mrf.mxu0
      %3295 = vmatprep.mubr.bf16.mxu0 0
      %3296 = vmatmul.mubr.bf16.gmra.mxu0 %v530
      %v3297 = vpop.f32.mrf.mxu0
      %v3298 = vadd.f32 %v3006, %v3297
      %v3299 = vpop.f32.mrf.mxu0
      %v3300 = vpop.f32.mrf.mxu0
      %v3301 = vadd.f32 %v3009, %v3300
      %v3302 = vpop.f32.mrf.mxu0
      %3303 = vmatprep.mubr.bf16.mxu0 0
      %3304 = vmatmul.mubr.bf16.gmra.mxu0 %v533
      %v3305 = vpop.f32.mrf.mxu0
      %v3306 = vadd.f32 %v3014, %v3305
      %v3307 = vpop.f32.mrf.mxu0
      %v3308 = vpop.f32.mrf.mxu0
      %v3309 = vadd.f32 %v3017, %v3308
      %v3310 = vpop.f32.mrf.mxu0
      %3311 = vmatprep.mubr.bf16.mxu0 0
      %3312 = vmatmul.mubr.bf16.gmra.mxu0 %v536
      %v3313 = vpop.f32.mrf.mxu0
      %v3314 = vadd.f32 %v3022, %v3313
      %v3315 = vpop.f32.mrf.mxu0
      %v3316 = vpop.f32.mrf.mxu0
      %v3317 = vadd.f32 %v3025, %v3316
      %v3318 = vpop.f32.mrf.mxu0
      %3319 = vmatprep.mubr.bf16.mxu0 0
      %3320 = vmatmul.mubr.bf16.gmra.mxu0 %v539
      %v3321 = vpop.f32.mrf.mxu0
      %v3322 = vadd.f32 %v3030, %v3321
      %v3323 = vpop.f32.mrf.mxu0
      %v3324 = vpop.f32.mrf.mxu0
      %v3325 = vadd.f32 %v3033, %v3324
      %v3326 = vpop.f32.mrf.mxu0
      %3327 = vmatprep.mubr.bf16.mxu0 0
      %3328 = vmatmul.mubr.bf16.gmra.mxu0 %v542
      %v3329 = vpop.f32.mrf.mxu0
      %v3330 = vadd.f32 %v3038, %v3329
      %v3331 = vpop.f32.mrf.mxu0
      %v3332 = vpop.f32.mrf.mxu0
      %v3333 = vadd.f32 %v3041, %v3332
      %v3334 = vpop.f32.mrf.mxu0
      %3335 = vmatprep.mubr.bf16.mxu0 0
      %3336 = vmatmul.mubr.bf16.gmra.mxu0 %v545
      %v3337 = vpop.f32.mrf.mxu0
      %v3338 = vadd.f32 %v3046, %v3337
      %v3339 = vpop.f32.mrf.mxu0
      %v3340 = vpop.f32.mrf.mxu0
      %v3341 = vadd.f32 %v3049, %v3340
      %v3342 = vpop.f32.mrf.mxu0
      %3343 = vmatprep.mubr.bf16.mxu0 0
      %3344 = vmatmul.mubr.bf16.gmra.mxu0 %v548
      %v3345 = vpop.f32.mrf.mxu0
      %v3346 = vadd.f32 %v3054, %v3345
      %v3347 = vpop.f32.mrf.mxu0
      %v3348 = vpop.f32.mrf.mxu0
      %v3349 = vadd.f32 %v3057, %v3348
      %v3350 = vpop.f32.mrf.mxu0
      %3351 = vmatprep.mubr.bf16.mxu0 0
      %3352 = vmatmul.mubr.bf16.gmra.mxu0 %v551
      %v3353 = vpop.f32.mrf.mxu0
      %v3354 = vadd.f32 %v3062, %v3353
      %v3355 = vpop.f32.mrf.mxu0
      %v3356 = vpop.f32.mrf.mxu0
      %v3357 = vadd.f32 %v3065, %v3356
      %v3358 = vpop.f32.mrf.mxu0
      %3359 = vmatprep.mubr.bf16.mxu0 0
      %3360 = vmatmul.mubr.bf16.gmra.mxu0 %v554
      %v3361 = vpop.f32.mrf.mxu0
      %v3362 = vadd.f32 %v3070, %v3361
      %v3363 = vpop.f32.mrf.mxu0
      %v3364 = vpop.f32.mrf.mxu0
      %v3365 = vadd.f32 %v3073, %v3364
      %v3366 = vpop.f32.mrf.mxu0
      %3367 = vmatprep.mubr.bf16.mxu0 0
      %3368 = vmatmul.mubr.bf16.gmra.mxu0 %v557
      %v3369 = vpop.f32.mrf.mxu0
      %v3370 = vadd.f32 %v3078, %v3369
      %v3371 = vpop.f32.mrf.mxu0
      %v3372 = vpop.f32.mrf.mxu0
      %v3373 = vadd.f32 %v3081, %v3372
      %v3374 = vpop.f32.mrf.mxu0
      %3375 = vmatprep.mubr.bf16.mxu0 0
      %3376 = vmatmul.mubr.bf16.gmra.mxu0 %v560
      %v3377 = vpop.f32.mrf.mxu0
      %v3378 = vadd.f32 %v3086, %v3377
      %v3379 = vpop.f32.mrf.mxu0
      %v3380 = vpop.f32.mrf.mxu0
      %v3381 = vadd.f32 %v3089, %v3380
      %v3382 = vpop.f32.mrf.mxu0
      %3383 = vmatprep.mubr.bf16.mxu0 0
      %3384 = vmatmul.mubr.bf16.gmra.mxu0 %v563
      %v3385 = vpop.f32.mrf.mxu0
      %v3386 = vadd.f32 %v3094, %v3385
      %v3387 = vpop.f32.mrf.mxu0
      %v3388 = vpop.f32.mrf.mxu0
      %v3389 = vadd.f32 %v3097, %v3388
      %v3390 = vpop.f32.mrf.mxu0
      %3391 = vmatprep.mubr.bf16.mxu0 0
      %3392 = vmatmul.mubr.bf16.gmra.mxu0 %v566
      %v3393 = vpop.f32.mrf.mxu0
      %v3394 = vadd.f32 %v3102, %v3393
      %v3395 = vpop.f32.mrf.mxu0
      %v3396 = vpop.f32.mrf.mxu0
      %v3397 = vadd.f32 %v3105, %v3396
      %v3398 = vpop.f32.mrf.mxu0
      %3399 = vmatprep.mubr.bf16.mxu0 0
      %3400 = vmatmul.mubr.bf16.gmra.mxu0 %v569
      %v3401 = vpop.f32.mrf.mxu0
      %v3402 = vadd.f32 %v3110, %v3401
      %v3403 = vpop.f32.mrf.mxu0
      %v3404 = vpop.f32.mrf.mxu0
      %v3405 = vadd.f32 %v3113, %v3404
      %v3406 = vpop.f32.mrf.mxu0
      %3407 = vmatprep.mubr.bf16.mxu0 0
      %3408 = vmatmul.mubr.bf16.gmra.mxu0 %v572
      %v3409 = vpop.f32.mrf.mxu0
      %v3410 = vadd.f32 %v3118, %v3409
      %v3411 = vpop.f32.mrf.mxu0
      %v3412 = vpop.f32.mrf.mxu0
      %v3413 = vadd.f32 %v3121, %v3412
      %v3414 = vpop.f32.mrf.mxu0
      %3415 = vmatprep.mubr.bf16.mxu0 0
      %3416 = vmatmul.mubr.bf16.gmra.mxu0 %v575
      %v3417 = vpop.f32.mrf.mxu0
      %v3418 = vadd.f32 %v3126, %v3417
      %v3419 = vpop.f32.mrf.mxu0
      %v3420 = vpop.f32.mrf.mxu0
      %v3421 = vadd.f32 %v3129, %v3420
      %v3422 = vpop.f32.mrf.mxu0
      %3423 = vmatprep.mubr.bf16.mxu0 0
      %3424 = vmatmul.mubr.bf16.gmra.mxu0 %v578
      %v3425 = vpop.f32.mrf.mxu0
      %v3426 = vadd.f32 %v3134, %v3425
      %v3427 = vpop.f32.mrf.mxu0
      %v3428 = vpop.f32.mrf.mxu0
      %v3429 = vadd.f32 %v3137, %v3428
      %v3430 = vpop.f32.mrf.mxu0
      %3431 = vmatprep.mubr.bf16.mxu0 0
      %3432 = vmatmul.mubr.bf16.gmra.mxu0 %v581
      %v3433 = vpop.f32.mrf.mxu0
      %v3434 = vadd.f32 %v3142, %v3433
      %v3435 = vpop.f32.mrf.mxu0
      %v3436 = vpop.f32.mrf.mxu0
      %v3437 = vadd.f32 %v3145, %v3436
      %v3438 = vpop.f32.mrf.mxu0
      %3439 = vdwg.mxu0
      %v3440 = vlaneseq
      %v3441 = vshrl.u32 %v3440, 7
      %v3442 = vsub.s32 0, %v3441
      %v3443 = vrot.slane %v2791, %v3442
      %v3444 = vadd.f32 %v3186, %v3443
      %v3445 = vadd.f32 %v3189, %v3443
      %v3446 = vadd.f32 %v3194, %v3443
      %v3447 = vadd.f32 %v3197, %v3443
      %v3448 = vadd.f32 %v3202, %v3443
      %v3449 = vadd.f32 %v3205, %v3443
      %v3450 = vadd.f32 %v3210, %v3443
      %v3451 = vadd.f32 %v3213, %v3443
      %v3452 = vadd.f32 %v3218, %v3443
      %v3453 = vadd.f32 %v3221, %v3443
      %v3454 = vadd.f32 %v3226, %v3443
      %v3455 = vadd.f32 %v3229, %v3443
      %v3456 = vadd.f32 %v3234, %v3443
      %v3457 = vadd.f32 %v3237, %v3443
      %v3458 = vadd.f32 %v3242, %v3443
      %v3459 = vadd.f32 %v3245, %v3443
      %v3460 = vadd.f32 %v3250, %v3443
      %v3461 = vadd.f32 %v3253, %v3443
      %v3462 = vadd.f32 %v3258, %v3443
      %v3463 = vadd.f32 %v3261, %v3443
      %v3464 = vadd.f32 %v3266, %v3443
      %v3465 = vadd.f32 %v3269, %v3443
      %v3466 = vadd.f32 %v3274, %v3443
      %v3467 = vadd.f32 %v3277, %v3443
      %v3468 = vadd.f32 %v3282, %v3443
      %v3469 = vadd.f32 %v3285, %v3443
      %v3470 = vadd.f32 %v3290, %v3443
      %v3471 = vadd.f32 %v3293, %v3443
      %v3472 = vadd.f32 %v3298, %v3443
      %v3473 = vadd.f32 %v3301, %v3443
      %v3474 = vadd.f32 %v3306, %v3443
      %v3475 = vadd.f32 %v3309, %v3443
      %v3476 = vadd.f32 %v3314, %v3443
      %v3477 = vadd.f32 %v3317, %v3443
      %v3478 = vadd.f32 %v3322, %v3443
      %v3479 = vadd.f32 %v3325, %v3443
      %v3480 = vadd.f32 %v3330, %v3443
      %v3481 = vadd.f32 %v3333, %v3443
      %v3482 = vadd.f32 %v3338, %v3443
      %v3483 = vadd.f32 %v3341, %v3443
      %v3484 = vadd.f32 %v3346, %v3443
      %v3485 = vadd.f32 %v3349, %v3443
      %v3486 = vadd.f32 %v3354, %v3443
      %v3487 = vadd.f32 %v3357, %v3443
      %v3488 = vadd.f32 %v3362, %v3443
      %v3489 = vadd.f32 %v3365, %v3443
      %v3490 = vadd.f32 %v3370, %v3443
      %v3491 = vadd.f32 %v3373, %v3443
      %v3492 = vadd.f32 %v3378, %v3443
      %v3493 = vadd.f32 %v3381, %v3443
      %v3494 = vadd.f32 %v3386, %v3443
      %v3495 = vadd.f32 %v3389, %v3443
      %v3496 = vadd.f32 %v3394, %v3443
      %v3497 = vadd.f32 %v3397, %v3443
      %v3498 = vadd.f32 %v3402, %v3443
      %v3499 = vadd.f32 %v3405, %v3443
      %v3500 = vadd.f32 %v3410, %v3443
      %v3501 = vadd.f32 %v3413, %v3443
      %v3502 = vadd.f32 %v3418, %v3443
      %v3503 = vadd.f32 %v3421, %v3443
      %v3504 = vadd.f32 %v3426, %v3443
      %v3505 = vadd.f32 %v3429, %v3443
      %v3506 = vadd.f32 %v3434, %v3443
      %v3507 = vadd.f32 %v3437, %v3443
      %v3508 = vmax.f32 %v3444, 0.0
      %v3509 = vmax.f32 %v3445, 0.0
      %v3510 = vmax.f32 %v3446, 0.0
      %v3511 = vmax.f32 %v3447, 0.0
      %v3512 = vmax.f32 %v3448, 0.0
      %v3513 = vmax.f32 %v3449, 0.0
      %v3514 = vmax.f32 %v3450, 0.0
      %v3515 = vmax.f32 %v3451, 0.0
      %v3516 = vmax.f32 %v3452, 0.0
      %v3517 = vmax.f32 %v3453, 0.0
      %v3518 = vmax.f32 %v3454, 0.0
      %v3519 = vmax.f32 %v3455, 0.0
      %v3520 = vmax.f32 %v3456, 0.0
      %v3521 = vmax.f32 %v3457, 0.0
      %v3522 = vmax.f32 %v3458, 0.0
      %v3523 = vmax.f32 %v3459, 0.0
      %v3524 = vmax.f32 %v3460, 0.0
      %v3525 = vmax.f32 %v3461, 0.0
      %v3526 = vmax.f32 %v3462, 0.0
      %v3527 = vmax.f32 %v3463, 0.0
      %v3528 = vmax.f32 %v3464, 0.0
      %v3529 = vmax.f32 %v3465, 0.0
      %v3530 = vmax.f32 %v3466, 0.0
      %v3531 = vmax.f32 %v3467, 0.0
      %v3532 = vmax.f32 %v3468, 0.0
      %v3533 = vmax.f32 %v3469, 0.0
      %v3534 = vmax.f32 %v3470, 0.0
      %v3535 = vmax.f32 %v3471, 0.0
      %v3536 = vmax.f32 %v3472, 0.0
      %v3537 = vmax.f32 %v3473, 0.0
      %v3538 = vmax.f32 %v3474, 0.0
      %v3539 = vmax.f32 %v3475, 0.0
      %v3540 = vmax.f32 %v3476, 0.0
      %v3541 = vmax.f32 %v3477, 0.0
      %v3542 = vmax.f32 %v3478, 0.0
      %v3543 = vmax.f32 %v3479, 0.0
      %v3544 = vmax.f32 %v3480, 0.0
      %v3545 = vmax.f32 %v3481, 0.0
      %v3546 = vmax.f32 %v3482, 0.0
      %v3547 = vmax.f32 %v3483, 0.0
      %v3548 = vmax.f32 %v3484, 0.0
      %v3549 = vmax.f32 %v3485, 0.0
      %v3550 = vmax.f32 %v3486, 0.0
      %v3551 = vmax.f32 %v3487, 0.0
      %v3552 = vmax.f32 %v3488, 0.0
      %v3553 = vmax.f32 %v3489, 0.0
      %v3554 = vmax.f32 %v3490, 0.0
      %v3555 = vmax.f32 %v3491, 0.0
      %v3556 = vmax.f32 %v3492, 0.0
      %v3557 = vmax.f32 %v3493, 0.0
      %v3558 = vmax.f32 %v3494, 0.0
      %v3559 = vmax.f32 %v3495, 0.0
      %v3560 = vmax.f32 %v3496, 0.0
      %v3561 = vmax.f32 %v3497, 0.0
      %v3562 = vmax.f32 %v3498, 0.0
      %v3563 = vmax.f32 %v3499, 0.0
      %v3564 = vmax.f32 %v3500, 0.0
      %v3565 = vmax.f32 %v3501, 0.0
      %v3566 = vmax.f32 %v3502, 0.0
      %v3567 = vmax.f32 %v3503, 0.0
      %v3568 = vmax.f32 %v3504, 0.0
      %v3569 = vmax.f32 %v3505, 0.0
      %v3570 = vmax.f32 %v3506, 0.0
      %v3571 = vmax.f32 %v3507, 0.0
      %v3572 = vpack.c.bf16 %v3509, %v3508
      %v3573 = vpack.c.bf16 %v3511, %v3510
      %v3574 = vpack.c.bf16 %v3513, %v3512
      %v3575 = vpack.c.bf16 %v3515, %v3514
      %v3576 = vpack.c.bf16 %v3517, %v3516
      %v3577 = vpack.c.bf16 %v3519, %v3518
      %v3578 = vpack.c.bf16 %v3521, %v3520
      %v3579 = vpack.c.bf16 %v3523, %v3522
      %v3580 = vpack.c.bf16 %v3525, %v3524
      %v3581 = vpack.c.bf16 %v3527, %v3526
      %v3582 = vpack.c.bf16 %v3529, %v3528
      %v3583 = vpack.c.bf16 %v3531, %v3530
      %v3584 = vpack.c.bf16 %v3533, %v3532
      %v3585 = vpack.c.bf16 %v3535, %v3534
      %v3586 = vpack.c.bf16 %v3537, %v3536
      %v3587 = vpack.c.bf16 %v3539, %v3538
      %v3588 = vpack.c.bf16 %v3541, %v3540
      %v3589 = vpack.c.bf16 %v3543, %v3542
      %v3590 = vpack.c.bf16 %v3545, %v3544
      %v3591 = vpack.c.bf16 %v3547, %v3546
      %v3592 = vpack.c.bf16 %v3549, %v3548
      %v3593 = vpack.c.bf16 %v3551, %v3550
      %v3594 = vpack.c.bf16 %v3553, %v3552
      %v3595 = vpack.c.bf16 %v3555, %v3554
      %v3596 = vpack.c.bf16 %v3557, %v3556
      %v3597 = vpack.c.bf16 %v3559, %v3558
      %v3598 = vpack.c.bf16 %v3561, %v3560
      %v3599 = vpack.c.bf16 %v3563, %v3562
      %v3600 = vpack.c.bf16 %v3565, %v3564
      %v3601 = vpack.c.bf16 %v3567, %v3566
      %v3602 = vpack.c.bf16 %v3569, %v3568
      %v3603 = vpack.c.bf16 %v3571, %v3570
      %v3604 = vld [vmem:[%s4 + $0x6] sm:$0x1]
      %s3605 = scalar_lea.vmem %s2, 320
      %v3606 = vld [vmem:[%s3605] sm:$0xf]
      %v3607 = vld [vmem:[%s3605 + $0x4] sm:$0xf]
      %v3608 = vld [vmem:[%s3605 + $0x8] sm:$0xf]
      %v3609 = vld [vmem:[%s3605 + $0xc] sm:$0xf]
      %v3610 = vld [vmem:[%s3605 + $0x10] sm:$0xf]
      %v3611 = vld [vmem:[%s3605 + $0x14] sm:$0xf]
      %v3612 = vld [vmem:[%s3605 + $0x18] sm:$0xf]
      %v3613 = vld [vmem:[%s3605 + $0x1c] sm:$0xf]
      %v3614 = vld [vmem:[%s3605 + $0x20] sm:$0xf]
      %v3615 = vld [vmem:[%s3605 + $0x24] sm:$0xf]
      %v3616 = vld [vmem:[%s3605 + $0x28] sm:$0xf]
      %v3617 = vld [vmem:[%s3605 + $0x2c] sm:$0xf]
      %v3618 = vld [vmem:[%s3605 + $0x30] sm:$0xf]
      %v3619 = vld [vmem:[%s3605 + $0x34] sm:$0xf]
      %v3620 = vld [vmem:[%s3605 + $0x38] sm:$0xf]
      %v3621 = vld [vmem:[%s3605 + $0x3c] sm:$0xf]
      %v3622 = vlaneseq
      %v3623 = vshrl.u32 %v3622, 7
      %v3624 = vsub.s32 0, %v3623
      %v3625 = vrot.slane %v3604, %v3624
      %v3642 = vunpack.c.l.b16 %v3606
      %v3643 = vunpack.c.l.b16 %v3607
      %v3644 = vunpack.c.l.b16 %v3608
      %v3645 = vunpack.c.l.b16 %v3609
      %v3646 = vunpack.c.l.b16 %v3610
      %v3647 = vunpack.c.l.b16 %v3611
      %v3648 = vunpack.c.l.b16 %v3612
      %v3649 = vunpack.c.l.b16 %v3613
      %v3650 = vunpack.c.l.b16 %v3614
      %v3651 = vunpack.c.l.b16 %v3615
      %v3652 = vunpack.c.l.b16 %v3616
      %v3653 = vunpack.c.l.b16 %v3617
      %v3654 = vunpack.c.l.b16 %v3618
      %v3655 = vunpack.c.l.b16 %v3619
      %v3656 = vunpack.c.l.b16 %v3620
      %v3657 = vunpack.c.l.b16 %v3621
      %v3658 = vpack.c.b16 %v3643, %v3642
      %v3659 = vpack.c.b16 %v3645, %v3644
      %v3660 = vpack.c.b16 %v3647, %v3646
      %v3661 = vpack.c.b16 %v3649, %v3648
      %v3662 = vpack.c.b16 %v3651, %v3650
      %v3663 = vpack.c.b16 %v3653, %v3652
      %v3664 = vpack.c.b16 %v3655, %v3654
      %v3665 = vpack.c.b16 %v3657, %v3656
      %3674 = vmatprep.subr.bf16.mxu0 0
      %3675 = vmatpush1.bf16.msra.mxu0 %v3665
      %3676 = vmatprep.subr.bf16.mxu0 0
      %3677 = vmatpush1.bf16.msra.mxu0 %v3664
      %3678 = vmatprep.subr.bf16.mxu0 0
      %3679 = vmatpush1.bf16.msra.mxu0 %v3663
      %3680 = vmatprep.subr.bf16.mxu0 0
      %3681 = vmatpush1.bf16.msra.mxu0 %v3662
      %3682 = vmatprep.subr.bf16.mxu0 0
      %3683 = vmatpush1.bf16.msra.mxu0 %v3661
      %3684 = vmatprep.subr.bf16.mxu0 0
      %3685 = vmatpush1.bf16.msra.mxu0 %v3660
      %3686 = vmatprep.subr.bf16.mxu0 0
      %3687 = vmatpush1.bf16.msra.mxu0 %v3659
      %3688 = vmatprep.subr.bf16.mxu0 0
      %3689 = vmatpush1.bf16.msra.mxu0 %v3658
      %3690 = vmatprep.subr.bf16.mxu0 0
      %3691 = vmatpush2.bf16.msra.mxu0 0
      %3692 = vmatprep.subr.bf16.mxu0 0
      %3693 = vmatpush2.bf16.msra.mxu0 0
      %3694 = vmatprep.subr.bf16.mxu0 0
      %3695 = vmatpush2.bf16.msra.mxu0 0
      %3696 = vmatprep.subr.bf16.mxu0 0
      %3697 = vmatpush2.bf16.msra.mxu0 0
      %3698 = vmatprep.subr.bf16.mxu0 0
      %3699 = vmatpush2.bf16.msra.mxu0 0
      %3700 = vmatprep.subr.bf16.mxu0 0
      %3701 = vmatpush2.bf16.msra.mxu0 0
      %3702 = vmatprep.subr.bf16.mxu0 0
      %3703 = vmatpush2.bf16.msra.mxu0 0
      %3704 = vmatprep.subr.bf16.mxu0 0
      %3705 = vmatpush2.bf16.msra.mxu0 0
      %3706 = vmatprep.mubr.bf16.mxu0 0
      %3707 = vmatmul.mubr.bf16.gmra.mxu0 %v3572
      %v3708 = vpop.f32.mrf.mxu0
      %v3709 = vadd.f32 %v3625, %v3708
      %v3710 = vpop.f32.mrf.mxu0
      %v3711 = vpop.f32.mrf.mxu0
      %v3712 = vadd.f32 %v3625, %v3711
      %v3713 = vpop.f32.mrf.mxu0
      %3714 = vmatprep.mubr.bf16.mxu0 0
      %3715 = vmatmul.mubr.bf16.gmra.mxu0 %v3573
      %v3716 = vpop.f32.mrf.mxu0
      %v3717 = vadd.f32 %v3625, %v3716
      %v3718 = vpop.f32.mrf.mxu0
      %v3719 = vpop.f32.mrf.mxu0
      %v3720 = vadd.f32 %v3625, %v3719
      %v3721 = vpop.f32.mrf.mxu0
      %3722 = vmatprep.mubr.bf16.mxu0 0
      %3723 = vmatmul.mubr.bf16.gmra.mxu0 %v3574
      %v3724 = vpop.f32.mrf.mxu0
      %v3725 = vadd.f32 %v3625, %v3724
      %v3726 = vpop.f32.mrf.mxu0
      %v3727 = vpop.f32.mrf.mxu0
      %v3728 = vadd.f32 %v3625, %v3727
      %v3729 = vpop.f32.mrf.mxu0
      %3730 = vmatprep.mubr.bf16.mxu0 0
      %3731 = vmatmul.mubr.bf16.gmra.mxu0 %v3575
      %v3732 = vpop.f32.mrf.mxu0
      %v3733 = vadd.f32 %v3625, %v3732
      %v3734 = vpop.f32.mrf.mxu0
      %v3735 = vpop.f32.mrf.mxu0
      %v3736 = vadd.f32 %v3625, %v3735
      %v3737 = vpop.f32.mrf.mxu0
      %3738 = vmatprep.mubr.bf16.mxu0 0
      %3739 = vmatmul.mubr.bf16.gmra.mxu0 %v3576
      %v3740 = vpop.f32.mrf.mxu0
      %v3741 = vadd.f32 %v3625, %v3740
      %v3742 = vpop.f32.mrf.mxu0
      %v3743 = vpop.f32.mrf.mxu0
      %v3744 = vadd.f32 %v3625, %v3743
      %v3745 = vpop.f32.mrf.mxu0
      %3746 = vmatprep.mubr.bf16.mxu0 0
      %3747 = vmatmul.mubr.bf16.gmra.mxu0 %v3577
      %v3748 = vpop.f32.mrf.mxu0
      %v3749 = vadd.f32 %v3625, %v3748
      %v3750 = vpop.f32.mrf.mxu0
      %v3751 = vpop.f32.mrf.mxu0
      %v3752 = vadd.f32 %v3625, %v3751
      %v3753 = vpop.f32.mrf.mxu0
      %3754 = vmatprep.mubr.bf16.mxu0 0
      %3755 = vmatmul.mubr.bf16.gmra.mxu0 %v3578
      %v3756 = vpop.f32.mrf.mxu0
      %v3757 = vadd.f32 %v3625, %v3756
      %v3758 = vpop.f32.mrf.mxu0
      %v3759 = vpop.f32.mrf.mxu0
      %v3760 = vadd.f32 %v3625, %v3759
      %v3761 = vpop.f32.mrf.mxu0
      %3762 = vmatprep.mubr.bf16.mxu0 0
      %3763 = vmatmul.mubr.bf16.gmra.mxu0 %v3579
      %v3764 = vpop.f32.mrf.mxu0
      %v3765 = vadd.f32 %v3625, %v3764
      %v3766 = vpop.f32.mrf.mxu0
      %v3767 = vpop.f32.mrf.mxu0
      %v3768 = vadd.f32 %v3625, %v3767
      %v3769 = vpop.f32.mrf.mxu0
      %3770 = vmatprep.mubr.bf16.mxu0 0
      %3771 = vmatmul.mubr.bf16.gmra.mxu0 %v3580
      %v3772 = vpop.f32.mrf.mxu0
      %v3773 = vadd.f32 %v3625, %v3772
      %v3774 = vpop.f32.mrf.mxu0
      %v3775 = vpop.f32.mrf.mxu0
      %v3776 = vadd.f32 %v3625, %v3775
      %v3777 = vpop.f32.mrf.mxu0
      %3778 = vmatprep.mubr.bf16.mxu0 0
      %3779 = vmatmul.mubr.bf16.gmra.mxu0 %v3581
      %v3780 = vpop.f32.mrf.mxu0
      %v3781 = vadd.f32 %v3625, %v3780
      %v3782 = vpop.f32.mrf.mxu0
      %v3783 = vpop.f32.mrf.mxu0
      %v3784 = vadd.f32 %v3625, %v3783
      %v3785 = vpop.f32.mrf.mxu0
      %3786 = vmatprep.mubr.bf16.mxu0 0
      %3787 = vmatmul.mubr.bf16.gmra.mxu0 %v3582
      %v3788 = vpop.f32.mrf.mxu0
      %v3789 = vadd.f32 %v3625, %v3788
      %v3790 = vpop.f32.mrf.mxu0
      %v3791 = vpop.f32.mrf.mxu0
      %v3792 = vadd.f32 %v3625, %v3791
      %v3793 = vpop.f32.mrf.mxu0
      %3794 = vmatprep.mubr.bf16.mxu0 0
      %3795 = vmatmul.mubr.bf16.gmra.mxu0 %v3583
      %v3796 = vpop.f32.mrf.mxu0
      %v3797 = vadd.f32 %v3625, %v3796
      %v3798 = vpop.f32.mrf.mxu0
      %v3799 = vpop.f32.mrf.mxu0
      %v3800 = vadd.f32 %v3625, %v3799
      %v3801 = vpop.f32.mrf.mxu0
      %3802 = vmatprep.mubr.bf16.mxu0 0
      %3803 = vmatmul.mubr.bf16.gmra.mxu0 %v3584
      %v3804 = vpop.f32.mrf.mxu0
      %v3805 = vadd.f32 %v3625, %v3804
      %v3806 = vpop.f32.mrf.mxu0
      %v3807 = vpop.f32.mrf.mxu0
      %v3808 = vadd.f32 %v3625, %v3807
      %v3809 = vpop.f32.mrf.mxu0
      %3810 = vmatprep.mubr.bf16.mxu0 0
      %3811 = vmatmul.mubr.bf16.gmra.mxu0 %v3585
      %v3812 = vpop.f32.mrf.mxu0
      %v3813 = vadd.f32 %v3625, %v3812
      %v3814 = vpop.f32.mrf.mxu0
      %v3815 = vpop.f32.mrf.mxu0
      %v3816 = vadd.f32 %v3625, %v3815
      %v3817 = vpop.f32.mrf.mxu0
      %3818 = vmatprep.mubr.bf16.mxu0 0
      %3819 = vmatmul.mubr.bf16.gmra.mxu0 %v3586
      %v3820 = vpop.f32.mrf.mxu0
      %v3821 = vadd.f32 %v3625, %v3820
      %v3822 = vpop.f32.mrf.mxu0
      %v3823 = vpop.f32.mrf.mxu0
      %v3824 = vadd.f32 %v3625, %v3823
      %v3825 = vpop.f32.mrf.mxu0
      %3826 = vmatprep.mubr.bf16.mxu0 0
      %3827 = vmatmul.mubr.bf16.gmra.mxu0 %v3587
      %v3828 = vpop.f32.mrf.mxu0
      %v3829 = vadd.f32 %v3625, %v3828
      %v3830 = vpop.f32.mrf.mxu0
      %v3831 = vpop.f32.mrf.mxu0
      %v3832 = vadd.f32 %v3625, %v3831
      %v3833 = vpop.f32.mrf.mxu0
      %3834 = vmatprep.mubr.bf16.mxu0 0
      %3835 = vmatmul.mubr.bf16.gmra.mxu0 %v3588
      %v3836 = vpop.f32.mrf.mxu0
      %v3837 = vadd.f32 %v3625, %v3836
      %v3838 = vpop.f32.mrf.mxu0
      %v3839 = vpop.f32.mrf.mxu0
      %v3840 = vadd.f32 %v3625, %v3839
      %v3841 = vpop.f32.mrf.mxu0
      %3842 = vmatprep.mubr.bf16.mxu0 0
      %3843 = vmatmul.mubr.bf16.gmra.mxu0 %v3589
      %v3844 = vpop.f32.mrf.mxu0
      %v3845 = vadd.f32 %v3625, %v3844
      %v3846 = vpop.f32.mrf.mxu0
      %v3847 = vpop.f32.mrf.mxu0
      %v3848 = vadd.f32 %v3625, %v3847
      %v3849 = vpop.f32.mrf.mxu0
      %3850 = vmatprep.mubr.bf16.mxu0 0
      %3851 = vmatmul.mubr.bf16.gmra.mxu0 %v3590
      %v3852 = vpop.f32.mrf.mxu0
      %v3853 = vadd.f32 %v3625, %v3852
      %v3854 = vpop.f32.mrf.mxu0
      %v3855 = vpop.f32.mrf.mxu0
      %v3856 = vadd.f32 %v3625, %v3855
      %v3857 = vpop.f32.mrf.mxu0
      %3858 = vmatprep.mubr.bf16.mxu0 0
      %3859 = vmatmul.mubr.bf16.gmra.mxu0 %v3591
      %v3860 = vpop.f32.mrf.mxu0
      %v3861 = vadd.f32 %v3625, %v3860
      %v3862 = vpop.f32.mrf.mxu0
      %v3863 = vpop.f32.mrf.mxu0
      %v3864 = vadd.f32 %v3625, %v3863
      %v3865 = vpop.f32.mrf.mxu0
      %3866 = vmatprep.mubr.bf16.mxu0 0
      %3867 = vmatmul.mubr.bf16.gmra.mxu0 %v3592
      %v3868 = vpop.f32.mrf.mxu0
      %v3869 = vadd.f32 %v3625, %v3868
      %v3870 = vpop.f32.mrf.mxu0
      %v3871 = vpop.f32.mrf.mxu0
      %v3872 = vadd.f32 %v3625, %v3871
      %v3873 = vpop.f32.mrf.mxu0
      %3874 = vmatprep.mubr.bf16.mxu0 0
      %3875 = vmatmul.mubr.bf16.gmra.mxu0 %v3593
      %v3876 = vpop.f32.mrf.mxu0
      %v3877 = vadd.f32 %v3625, %v3876
      %v3878 = vpop.f32.mrf.mxu0
      %v3879 = vpop.f32.mrf.mxu0
      %v3880 = vadd.f32 %v3625, %v3879
      %v3881 = vpop.f32.mrf.mxu0
      %3882 = vmatprep.mubr.bf16.mxu0 0
      %3883 = vmatmul.mubr.bf16.gmra.mxu0 %v3594
      %v3884 = vpop.f32.mrf.mxu0
      %v3885 = vadd.f32 %v3625, %v3884
      %v3886 = vpop.f32.mrf.mxu0
      %v3887 = vpop.f32.mrf.mxu0
      %v3888 = vadd.f32 %v3625, %v3887
      %v3889 = vpop.f32.mrf.mxu0
      %3890 = vmatprep.mubr.bf16.mxu0 0
      %3891 = vmatmul.mubr.bf16.gmra.mxu0 %v3595
      %v3892 = vpop.f32.mrf.mxu0
      %v3893 = vadd.f32 %v3625, %v3892
      %v3894 = vpop.f32.mrf.mxu0
      %v3895 = vpop.f32.mrf.mxu0
      %v3896 = vadd.f32 %v3625, %v3895
      %v3897 = vpop.f32.mrf.mxu0
      %3898 = vmatprep.mubr.bf16.mxu0 0
      %3899 = vmatmul.mubr.bf16.gmra.mxu0 %v3596
      %v3900 = vpop.f32.mrf.mxu0
      %v3901 = vadd.f32 %v3625, %v3900
      %v3902 = vpop.f32.mrf.mxu0
      %v3903 = vpop.f32.mrf.mxu0
      %v3904 = vadd.f32 %v3625, %v3903
      %v3905 = vpop.f32.mrf.mxu0
      %3906 = vmatprep.mubr.bf16.mxu0 0
      %3907 = vmatmul.mubr.bf16.gmra.mxu0 %v3597
      %v3908 = vpop.f32.mrf.mxu0
      %v3909 = vadd.f32 %v3625, %v3908
      %v3910 = vpop.f32.mrf.mxu0
      %v3911 = vpop.f32.mrf.mxu0
      %v3912 = vadd.f32 %v3625, %v3911
      %v3913 = vpop.f32.mrf.mxu0
      %3914 = vmatprep.mubr.bf16.mxu0 0
      %3915 = vmatmul.mubr.bf16.gmra.mxu0 %v3598
      %v3916 = vpop.f32.mrf.mxu0
      %v3917 = vadd.f32 %v3625, %v3916
      %v3918 = vpop.f32.mrf.mxu0
      %v3919 = vpop.f32.mrf.mxu0
      %v3920 = vadd.f32 %v3625, %v3919
      %v3921 = vpop.f32.mrf.mxu0
      %3922 = vmatprep.mubr.bf16.mxu0 0
      %3923 = vmatmul.mubr.bf16.gmra.mxu0 %v3599
      %v3924 = vpop.f32.mrf.mxu0
      %v3925 = vadd.f32 %v3625, %v3924
      %v3926 = vpop.f32.mrf.mxu0
      %v3927 = vpop.f32.mrf.mxu0
      %v3928 = vadd.f32 %v3625, %v3927
      %v3929 = vpop.f32.mrf.mxu0
      %3930 = vmatprep.mubr.bf16.mxu0 0
      %3931 = vmatmul.mubr.bf16.gmra.mxu0 %v3600
      %v3932 = vpop.f32.mrf.mxu0
      %v3933 = vadd.f32 %v3625, %v3932
      %v3934 = vpop.f32.mrf.mxu0
      %v3935 = vpop.f32.mrf.mxu0
      %v3936 = vadd.f32 %v3625, %v3935
      %v3937 = vpop.f32.mrf.mxu0
      %3938 = vmatprep.mubr.bf16.mxu0 0
      %3939 = vmatmul.mubr.bf16.gmra.mxu0 %v3601
      %v3940 = vpop.f32.mrf.mxu0
      %v3941 = vadd.f32 %v3625, %v3940
      %v3942 = vpop.f32.mrf.mxu0
      %v3943 = vpop.f32.mrf.mxu0
      %v3944 = vadd.f32 %v3625, %v3943
      %v3945 = vpop.f32.mrf.mxu0
      %3946 = vmatprep.mubr.bf16.mxu0 0
      %3947 = vmatmul.mubr.bf16.gmra.mxu0 %v3602
      %v3948 = vpop.f32.mrf.mxu0
      %v3949 = vadd.f32 %v3625, %v3948
      %v3950 = vpop.f32.mrf.mxu0
      %v3951 = vpop.f32.mrf.mxu0
      %v3952 = vadd.f32 %v3625, %v3951
      %v3953 = vpop.f32.mrf.mxu0
      %3954 = vmatprep.mubr.bf16.mxu0 0
      %3955 = vmatmul.mubr.bf16.gmra.mxu0 %v3603
      %v3956 = vpop.f32.mrf.mxu0
      %v3957 = vadd.f32 %v3625, %v3956
      %v3958 = vpop.f32.mrf.mxu0
      %v3959 = vpop.f32.mrf.mxu0
      %v3960 = vadd.f32 %v3625, %v3959
      %v3961 = vpop.f32.mrf.mxu0
      %3962 = vdwg.mxu0
      %v3963 = vmax.f32 %v3709, 0.0
      %v3964 = vmax.f32 %v3712, 0.0
      %v3965 = vmax.f32 %v3717, 0.0
      %v3966 = vmax.f32 %v3720, 0.0
      %v3967 = vmax.f32 %v3725, 0.0
      %v3968 = vmax.f32 %v3728, 0.0
      %v3969 = vmax.f32 %v3733, 0.0
      %v3970 = vmax.f32 %v3736, 0.0
      %v3971 = vmax.f32 %v3741, 0.0
      %v3972 = vmax.f32 %v3744, 0.0
      %v3973 = vmax.f32 %v3749, 0.0
      %v3974 = vmax.f32 %v3752, 0.0
      %v3975 = vmax.f32 %v3757, 0.0
      %v3976 = vmax.f32 %v3760, 0.0
      %v3977 = vmax.f32 %v3765, 0.0
      %v3978 = vmax.f32 %v3768, 0.0
      %v3979 = vmax.f32 %v3773, 0.0
      %v3980 = vmax.f32 %v3776, 0.0
      %v3981 = vmax.f32 %v3781, 0.0
      %v3982 = vmax.f32 %v3784, 0.0
      %v3983 = vmax.f32 %v3789, 0.0
      %v3984 = vmax.f32 %v3792, 0.0
      %v3985 = vmax.f32 %v3797, 0.0
      %v3986 = vmax.f32 %v3800, 0.0
      %v3987 = vmax.f32 %v3805, 0.0
      %v3988 = vmax.f32 %v3808, 0.0
      %v3989 = vmax.f32 %v3813, 0.0
      %v3990 = vmax.f32 %v3816, 0.0
      %v3991 = vmax.f32 %v3821, 0.0
      %v3992 = vmax.f32 %v3824, 0.0
      %v3993 = vmax.f32 %v3829, 0.0
      %v3994 = vmax.f32 %v3832, 0.0
      %v3995 = vmax.f32 %v3837, 0.0
      %v3996 = vmax.f32 %v3840, 0.0
      %v3997 = vmax.f32 %v3845, 0.0
      %v3998 = vmax.f32 %v3848, 0.0
      %v3999 = vmax.f32 %v3853, 0.0
      %v4000 = vmax.f32 %v3856, 0.0
      %v4001 = vmax.f32 %v3861, 0.0
      %v4002 = vmax.f32 %v3864, 0.0
      %v4003 = vmax.f32 %v3869, 0.0
      %v4004 = vmax.f32 %v3872, 0.0
      %v4005 = vmax.f32 %v3877, 0.0
      %v4006 = vmax.f32 %v3880, 0.0
      %v4007 = vmax.f32 %v3885, 0.0
      %v4008 = vmax.f32 %v3888, 0.0
      %v4009 = vmax.f32 %v3893, 0.0
      %v4010 = vmax.f32 %v3896, 0.0
      %v4011 = vmax.f32 %v3901, 0.0
      %v4012 = vmax.f32 %v3904, 0.0
      %v4013 = vmax.f32 %v3909, 0.0
      %v4014 = vmax.f32 %v3912, 0.0
      %v4015 = vmax.f32 %v3917, 0.0
      %v4016 = vmax.f32 %v3920, 0.0
      %v4017 = vmax.f32 %v3925, 0.0
      %v4018 = vmax.f32 %v3928, 0.0
      %v4019 = vmax.f32 %v3933, 0.0
      %v4020 = vmax.f32 %v3936, 0.0
      %v4021 = vmax.f32 %v3941, 0.0
      %v4022 = vmax.f32 %v3944, 0.0
      %v4023 = vmax.f32 %v3949, 0.0
      %v4024 = vmax.f32 %v3952, 0.0
      %v4025 = vmax.f32 %v3957, 0.0
      %v4026 = vmax.f32 %v3960, 0.0
      %v4027 = vpack.c.bf16 %v3964, %v3963
      %v4028 = vpack.c.bf16 %v3966, %v3965
      %v4029 = vpack.c.bf16 %v3968, %v3967
      %v4030 = vpack.c.bf16 %v3970, %v3969
      %v4031 = vpack.c.bf16 %v3972, %v3971
      %v4032 = vpack.c.bf16 %v3974, %v3973
      %v4033 = vpack.c.bf16 %v3976, %v3975
      %v4034 = vpack.c.bf16 %v3978, %v3977
      %v4035 = vpack.c.bf16 %v3980, %v3979
      %v4036 = vpack.c.bf16 %v3982, %v3981
      %v4037 = vpack.c.bf16 %v3984, %v3983
      %v4038 = vpack.c.bf16 %v3986, %v3985
      %v4039 = vpack.c.bf16 %v3988, %v3987
      %v4040 = vpack.c.bf16 %v3990, %v3989
      %v4041 = vpack.c.bf16 %v3992, %v3991
      %v4042 = vpack.c.bf16 %v3994, %v3993
      %v4043 = vpack.c.bf16 %v3996, %v3995
      %v4044 = vpack.c.bf16 %v3998, %v3997
      %v4045 = vpack.c.bf16 %v4000, %v3999
      %v4046 = vpack.c.bf16 %v4002, %v4001
      %v4047 = vpack.c.bf16 %v4004, %v4003
      %v4048 = vpack.c.bf16 %v4006, %v4005
      %v4049 = vpack.c.bf16 %v4008, %v4007
      %v4050 = vpack.c.bf16 %v4010, %v4009
      %v4051 = vpack.c.bf16 %v4012, %v4011
      %v4052 = vpack.c.bf16 %v4014, %v4013
      %v4053 = vpack.c.bf16 %v4016, %v4015
      %v4054 = vpack.c.bf16 %v4018, %v4017
      %v4055 = vpack.c.bf16 %v4020, %v4019
      %v4056 = vpack.c.bf16 %v4022, %v4021
      %v4057 = vpack.c.bf16 %v4024, %v4023
      %v4058 = vpack.c.bf16 %v4026, %v4025
      %v4059 = vld [vmem:[%s4 + $0x7] sm:$0x1]
      %s4060 = scalar_lea.vmem %s2, 384
      %v4061 = vld [vmem:[%s4060] sm:$0xf]
      %v4062 = vld [vmem:[%s4060 + $0x4] sm:$0xf]
      %v4063 = vld [vmem:[%s4060 + $0x8] sm:$0xf]
      %v4064 = vld [vmem:[%s4060 + $0xc] sm:$0xf]
      %v4065 = vld [vmem:[%s4060 + $0x10] sm:$0xf]
      %v4066 = vld [vmem:[%s4060 + $0x14] sm:$0xf]
      %v4067 = vld [vmem:[%s4060 + $0x18] sm:$0xf]
      %v4068 = vld [vmem:[%s4060 + $0x1c] sm:$0xf]
      %v4069 = vld [vmem:[%s4060 + $0x20] sm:$0xf]
      %v4070 = vld [vmem:[%s4060 + $0x24] sm:$0xf]
      %v4071 = vld [vmem:[%s4060 + $0x28] sm:$0xf]
      %v4072 = vld [vmem:[%s4060 + $0x2c] sm:$0xf]
      %v4073 = vld [vmem:[%s4060 + $0x30] sm:$0xf]
      %v4074 = vld [vmem:[%s4060 + $0x34] sm:$0xf]
      %v4075 = vld [vmem:[%s4060 + $0x38] sm:$0xf]
      %v4076 = vld [vmem:[%s4060 + $0x3c] sm:$0xf]
      %v4077 = vlaneseq
      %v4078 = vshrl.u32 %v4077, 7
      %v4079 = vsub.s32 0, %v4078
      %v4080 = vrot.slane %v4059, %v4079
      %v4097 = vunpack.c.l.b16 %v4061
      %v4098 = vunpack.c.l.b16 %v4062
      %v4099 = vunpack.c.l.b16 %v4063
      %v4100 = vunpack.c.l.b16 %v4064
      %v4101 = vunpack.c.l.b16 %v4065
      %v4102 = vunpack.c.l.b16 %v4066
      %v4103 = vunpack.c.l.b16 %v4067
      %v4104 = vunpack.c.l.b16 %v4068
      %v4105 = vunpack.c.l.b16 %v4069
      %v4106 = vunpack.c.l.b16 %v4070
      %v4107 = vunpack.c.l.b16 %v4071
      %v4108 = vunpack.c.l.b16 %v4072
      %v4109 = vunpack.c.l.b16 %v4073
      %v4110 = vunpack.c.l.b16 %v4074
      %v4111 = vunpack.c.l.b16 %v4075
      %v4112 = vunpack.c.l.b16 %v4076
      %v4113 = vpack.c.b16 %v4098, %v4097
      %v4114 = vpack.c.b16 %v4100, %v4099
      %v4115 = vpack.c.b16 %v4102, %v4101
      %v4116 = vpack.c.b16 %v4104, %v4103
      %v4117 = vpack.c.b16 %v4106, %v4105
      %v4118 = vpack.c.b16 %v4108, %v4107
      %v4119 = vpack.c.b16 %v4110, %v4109
      %v4120 = vpack.c.b16 %v4112, %v4111
      %4129 = vmatprep.subr.bf16.mxu0 0
      %4130 = vmatpush1.bf16.msra.mxu0 %v4120
      %4131 = vmatprep.subr.bf16.mxu0 0
      %4132 = vmatpush1.bf16.msra.mxu0 %v4119
      %4133 = vmatprep.subr.bf16.mxu0 0
      %4134 = vmatpush1.bf16.msra.mxu0 %v4118
      %4135 = vmatprep.subr.bf16.mxu0 0
      %4136 = vmatpush1.bf16.msra.mxu0 %v4117
      %4137 = vmatprep.subr.bf16.mxu0 0
      %4138 = vmatpush1.bf16.msra.mxu0 %v4116
      %4139 = vmatprep.subr.bf16.mxu0 0
      %4140 = vmatpush1.bf16.msra.mxu0 %v4115
      %4141 = vmatprep.subr.bf16.mxu0 0
      %4142 = vmatpush1.bf16.msra.mxu0 %v4114
      %4143 = vmatprep.subr.bf16.mxu0 0
      %4144 = vmatpush1.bf16.msra.mxu0 %v4113
      %4145 = vmatprep.subr.bf16.mxu0 0
      %4146 = vmatpush2.bf16.msra.mxu0 0
      %4147 = vmatprep.subr.bf16.mxu0 0
      %4148 = vmatpush2.bf16.msra.mxu0 0
      %4149 = vmatprep.subr.bf16.mxu0 0
      %4150 = vmatpush2.bf16.msra.mxu0 0
      %4151 = vmatprep.subr.bf16.mxu0 0
      %4152 = vmatpush2.bf16.msra.mxu0 0
      %4153 = vmatprep.subr.bf16.mxu0 0
      %4154 = vmatpush2.bf16.msra.mxu0 0
      %4155 = vmatprep.subr.bf16.mxu0 0
      %4156 = vmatpush2.bf16.msra.mxu0 0
      %4157 = vmatprep.subr.bf16.mxu0 0
      %4158 = vmatpush2.bf16.msra.mxu0 0
      %4159 = vmatprep.subr.bf16.mxu0 0
      %4160 = vmatpush2.bf16.msra.mxu0 0
      %4161 = vmatprep.mubr.bf16.mxu0 0
      %4162 = vmatmul.mubr.bf16.gmra.mxu0 %v4027
      %v4163 = vpop.f32.mrf.mxu0
      %v4164 = vadd.f32 %v4080, %v4163
      %v4165 = vpop.f32.mrf.mxu0
      %v4166 = vpop.f32.mrf.mxu0
      %v4167 = vadd.f32 %v4080, %v4166
      %v4168 = vpop.f32.mrf.mxu0
      %4169 = vmatprep.mubr.bf16.mxu0 0
      %4170 = vmatmul.mubr.bf16.gmra.mxu0 %v4028
      %v4171 = vpop.f32.mrf.mxu0
      %v4172 = vadd.f32 %v4080, %v4171
      %v4173 = vpop.f32.mrf.mxu0
      %v4174 = vpop.f32.mrf.mxu0
      %v4175 = vadd.f32 %v4080, %v4174
      %v4176 = vpop.f32.mrf.mxu0
      %4177 = vmatprep.mubr.bf16.mxu0 0
      %4178 = vmatmul.mubr.bf16.gmra.mxu0 %v4029
      %v4179 = vpop.f32.mrf.mxu0
      %v4180 = vadd.f32 %v4080, %v4179
      %v4181 = vpop.f32.mrf.mxu0
      %v4182 = vpop.f32.mrf.mxu0
      %v4183 = vadd.f32 %v4080, %v4182
      %v4184 = vpop.f32.mrf.mxu0
      %4185 = vmatprep.mubr.bf16.mxu0 0
      %4186 = vmatmul.mubr.bf16.gmra.mxu0 %v4030
      %v4187 = vpop.f32.mrf.mxu0
      %v4188 = vadd.f32 %v4080, %v4187
      %v4189 = vpop.f32.mrf.mxu0
      %v4190 = vpop.f32.mrf.mxu0
      %v4191 = vadd.f32 %v4080, %v4190
      %v4192 = vpop.f32.mrf.mxu0
      %4193 = vmatprep.mubr.bf16.mxu0 0
      %4194 = vmatmul.mubr.bf16.gmra.mxu0 %v4031
      %v4195 = vpop.f32.mrf.mxu0
      %v4196 = vadd.f32 %v4080, %v4195
      %v4197 = vpop.f32.mrf.mxu0
      %v4198 = vpop.f32.mrf.mxu0
      %v4199 = vadd.f32 %v4080, %v4198
      %v4200 = vpop.f32.mrf.mxu0
      %4201 = vmatprep.mubr.bf16.mxu0 0
      %4202 = vmatmul.mubr.bf16.gmra.mxu0 %v4032
      %v4203 = vpop.f32.mrf.mxu0
      %v4204 = vadd.f32 %v4080, %v4203
      %v4205 = vpop.f32.mrf.mxu0
      %v4206 = vpop.f32.mrf.mxu0
      %v4207 = vadd.f32 %v4080, %v4206
      %v4208 = vpop.f32.mrf.mxu0
      %4209 = vmatprep.mubr.bf16.mxu0 0
      %4210 = vmatmul.mubr.bf16.gmra.mxu0 %v4033
      %v4211 = vpop.f32.mrf.mxu0
      %v4212 = vadd.f32 %v4080, %v4211
      %v4213 = vpop.f32.mrf.mxu0
      %v4214 = vpop.f32.mrf.mxu0
      %v4215 = vadd.f32 %v4080, %v4214
      %v4216 = vpop.f32.mrf.mxu0
      %4217 = vmatprep.mubr.bf16.mxu0 0
      %4218 = vmatmul.mubr.bf16.gmra.mxu0 %v4034
      %v4219 = vpop.f32.mrf.mxu0
      %v4220 = vadd.f32 %v4080, %v4219
      %v4221 = vpop.f32.mrf.mxu0
      %v4222 = vpop.f32.mrf.mxu0
      %v4223 = vadd.f32 %v4080, %v4222
      %v4224 = vpop.f32.mrf.mxu0
      %4225 = vmatprep.mubr.bf16.mxu0 0
      %4226 = vmatmul.mubr.bf16.gmra.mxu0 %v4035
      %v4227 = vpop.f32.mrf.mxu0
      %v4228 = vadd.f32 %v4080, %v4227
      %v4229 = vpop.f32.mrf.mxu0
      %v4230 = vpop.f32.mrf.mxu0
      %v4231 = vadd.f32 %v4080, %v4230
      %v4232 = vpop.f32.mrf.mxu0
      %4233 = vmatprep.mubr.bf16.mxu0 0
      %4234 = vmatmul.mubr.bf16.gmra.mxu0 %v4036
      %v4235 = vpop.f32.mrf.mxu0
      %v4236 = vadd.f32 %v4080, %v4235
      %v4237 = vpop.f32.mrf.mxu0
      %v4238 = vpop.f32.mrf.mxu0
      %v4239 = vadd.f32 %v4080, %v4238
      %v4240 = vpop.f32.mrf.mxu0
      %4241 = vmatprep.mubr.bf16.mxu0 0
      %4242 = vmatmul.mubr.bf16.gmra.mxu0 %v4037
      %v4243 = vpop.f32.mrf.mxu0
      %v4244 = vadd.f32 %v4080, %v4243
      %v4245 = vpop.f32.mrf.mxu0
      %v4246 = vpop.f32.mrf.mxu0
      %v4247 = vadd.f32 %v4080, %v4246
      %v4248 = vpop.f32.mrf.mxu0
      %4249 = vmatprep.mubr.bf16.mxu0 0
      %4250 = vmatmul.mubr.bf16.gmra.mxu0 %v4038
      %v4251 = vpop.f32.mrf.mxu0
      %v4252 = vadd.f32 %v4080, %v4251
      %v4253 = vpop.f32.mrf.mxu0
      %v4254 = vpop.f32.mrf.mxu0
      %v4255 = vadd.f32 %v4080, %v4254
      %v4256 = vpop.f32.mrf.mxu0
      %4257 = vmatprep.mubr.bf16.mxu0 0
      %4258 = vmatmul.mubr.bf16.gmra.mxu0 %v4039
      %v4259 = vpop.f32.mrf.mxu0
      %v4260 = vadd.f32 %v4080, %v4259
      %v4261 = vpop.f32.mrf.mxu0
      %v4262 = vpop.f32.mrf.mxu0
      %v4263 = vadd.f32 %v4080, %v4262
      %v4264 = vpop.f32.mrf.mxu0
      %4265 = vmatprep.mubr.bf16.mxu0 0
      %4266 = vmatmul.mubr.bf16.gmra.mxu0 %v4040
      %v4267 = vpop.f32.mrf.mxu0
      %v4268 = vadd.f32 %v4080, %v4267
      %v4269 = vpop.f32.mrf.mxu0
      %v4270 = vpop.f32.mrf.mxu0
      %v4271 = vadd.f32 %v4080, %v4270
      %v4272 = vpop.f32.mrf.mxu0
      %4273 = vmatprep.mubr.bf16.mxu0 0
      %4274 = vmatmul.mubr.bf16.gmra.mxu0 %v4041
      %v4275 = vpop.f32.mrf.mxu0
      %v4276 = vadd.f32 %v4080, %v4275
      %v4277 = vpop.f32.mrf.mxu0
      %v4278 = vpop.f32.mrf.mxu0
      %v4279 = vadd.f32 %v4080, %v4278
      %v4280 = vpop.f32.mrf.mxu0
      %4281 = vmatprep.mubr.bf16.mxu0 0
      %4282 = vmatmul.mubr.bf16.gmra.mxu0 %v4042
      %v4283 = vpop.f32.mrf.mxu0
      %v4284 = vadd.f32 %v4080, %v4283
      %v4285 = vpop.f32.mrf.mxu0
      %v4286 = vpop.f32.mrf.mxu0
      %v4287 = vadd.f32 %v4080, %v4286
      %v4288 = vpop.f32.mrf.mxu0
      %4289 = vmatprep.mubr.bf16.mxu0 0
      %4290 = vmatmul.mubr.bf16.gmra.mxu0 %v4043
      %v4291 = vpop.f32.mrf.mxu0
      %v4292 = vadd.f32 %v4080, %v4291
      %v4293 = vpop.f32.mrf.mxu0
      %v4294 = vpop.f32.mrf.mxu0
      %v4295 = vadd.f32 %v4080, %v4294
      %v4296 = vpop.f32.mrf.mxu0
      %4297 = vmatprep.mubr.bf16.mxu0 0
      %4298 = vmatmul.mubr.bf16.gmra.mxu0 %v4044
      %v4299 = vpop.f32.mrf.mxu0
      %v4300 = vadd.f32 %v4080, %v4299
      %v4301 = vpop.f32.mrf.mxu0
      %v4302 = vpop.f32.mrf.mxu0
      %v4303 = vadd.f32 %v4080, %v4302
      %v4304 = vpop.f32.mrf.mxu0
      %4305 = vmatprep.mubr.bf16.mxu0 0
      %4306 = vmatmul.mubr.bf16.gmra.mxu0 %v4045
      %v4307 = vpop.f32.mrf.mxu0
      %v4308 = vadd.f32 %v4080, %v4307
      %v4309 = vpop.f32.mrf.mxu0
      %v4310 = vpop.f32.mrf.mxu0
      %v4311 = vadd.f32 %v4080, %v4310
      %v4312 = vpop.f32.mrf.mxu0
      %4313 = vmatprep.mubr.bf16.mxu0 0
      %4314 = vmatmul.mubr.bf16.gmra.mxu0 %v4046
      %v4315 = vpop.f32.mrf.mxu0
      %v4316 = vadd.f32 %v4080, %v4315
      %v4317 = vpop.f32.mrf.mxu0
      %v4318 = vpop.f32.mrf.mxu0
      %v4319 = vadd.f32 %v4080, %v4318
      %v4320 = vpop.f32.mrf.mxu0
      %4321 = vmatprep.mubr.bf16.mxu0 0
      %4322 = vmatmul.mubr.bf16.gmra.mxu0 %v4047
      %v4323 = vpop.f32.mrf.mxu0
      %v4324 = vadd.f32 %v4080, %v4323
      %v4325 = vpop.f32.mrf.mxu0
      %v4326 = vpop.f32.mrf.mxu0
      %v4327 = vadd.f32 %v4080, %v4326
      %v4328 = vpop.f32.mrf.mxu0
      %4329 = vmatprep.mubr.bf16.mxu0 0
      %4330 = vmatmul.mubr.bf16.gmra.mxu0 %v4048
      %v4331 = vpop.f32.mrf.mxu0
      %v4332 = vadd.f32 %v4080, %v4331
      %v4333 = vpop.f32.mrf.mxu0
      %v4334 = vpop.f32.mrf.mxu0
      %v4335 = vadd.f32 %v4080, %v4334
      %v4336 = vpop.f32.mrf.mxu0
      %4337 = vmatprep.mubr.bf16.mxu0 0
      %4338 = vmatmul.mubr.bf16.gmra.mxu0 %v4049
      %v4339 = vpop.f32.mrf.mxu0
      %v4340 = vadd.f32 %v4080, %v4339
      %v4341 = vpop.f32.mrf.mxu0
      %v4342 = vpop.f32.mrf.mxu0
      %v4343 = vadd.f32 %v4080, %v4342
      %v4344 = vpop.f32.mrf.mxu0
      %4345 = vmatprep.mubr.bf16.mxu0 0
      %4346 = vmatmul.mubr.bf16.gmra.mxu0 %v4050
      %v4347 = vpop.f32.mrf.mxu0
      %v4348 = vadd.f32 %v4080, %v4347
      %v4349 = vpop.f32.mrf.mxu0
      %v4350 = vpop.f32.mrf.mxu0
      %v4351 = vadd.f32 %v4080, %v4350
      %v4352 = vpop.f32.mrf.mxu0
      %4353 = vmatprep.mubr.bf16.mxu0 0
      %4354 = vmatmul.mubr.bf16.gmra.mxu0 %v4051
      %v4355 = vpop.f32.mrf.mxu0
      %v4356 = vadd.f32 %v4080, %v4355
      %v4357 = vpop.f32.mrf.mxu0
      %v4358 = vpop.f32.mrf.mxu0
      %v4359 = vadd.f32 %v4080, %v4358
      %v4360 = vpop.f32.mrf.mxu0
      %4361 = vmatprep.mubr.bf16.mxu0 0
      %4362 = vmatmul.mubr.bf16.gmra.mxu0 %v4052
      %v4363 = vpop.f32.mrf.mxu0
      %v4364 = vadd.f32 %v4080, %v4363
      %v4365 = vpop.f32.mrf.mxu0
      %v4366 = vpop.f32.mrf.mxu0
      %v4367 = vadd.f32 %v4080, %v4366
      %v4368 = vpop.f32.mrf.mxu0
      %4369 = vmatprep.mubr.bf16.mxu0 0
      %4370 = vmatmul.mubr.bf16.gmra.mxu0 %v4053
      %v4371 = vpop.f32.mrf.mxu0
      %v4372 = vadd.f32 %v4080, %v4371
      %v4373 = vpop.f32.mrf.mxu0
      %v4374 = vpop.f32.mrf.mxu0
      %v4375 = vadd.f32 %v4080, %v4374
      %v4376 = vpop.f32.mrf.mxu0
      %4377 = vmatprep.mubr.bf16.mxu0 0
      %4378 = vmatmul.mubr.bf16.gmra.mxu0 %v4054
      %v4379 = vpop.f32.mrf.mxu0
      %v4380 = vadd.f32 %v4080, %v4379
      %v4381 = vpop.f32.mrf.mxu0
      %v4382 = vpop.f32.mrf.mxu0
      %v4383 = vadd.f32 %v4080, %v4382
      %v4384 = vpop.f32.mrf.mxu0
      %4385 = vmatprep.mubr.bf16.mxu0 0
      %4386 = vmatmul.mubr.bf16.gmra.mxu0 %v4055
      %v4387 = vpop.f32.mrf.mxu0
      %v4388 = vadd.f32 %v4080, %v4387
      %v4389 = vpop.f32.mrf.mxu0
      %v4390 = vpop.f32.mrf.mxu0
      %v4391 = vadd.f32 %v4080, %v4390
      %v4392 = vpop.f32.mrf.mxu0
      %4393 = vmatprep.mubr.bf16.mxu0 0
      %4394 = vmatmul.mubr.bf16.gmra.mxu0 %v4056
      %v4395 = vpop.f32.mrf.mxu0
      %v4396 = vadd.f32 %v4080, %v4395
      %v4397 = vpop.f32.mrf.mxu0
      %v4398 = vpop.f32.mrf.mxu0
      %v4399 = vadd.f32 %v4080, %v4398
      %v4400 = vpop.f32.mrf.mxu0
      %4401 = vmatprep.mubr.bf16.mxu0 0
      %4402 = vmatmul.mubr.bf16.gmra.mxu0 %v4057
      %v4403 = vpop.f32.mrf.mxu0
      %v4404 = vadd.f32 %v4080, %v4403
      %v4405 = vpop.f32.mrf.mxu0
      %v4406 = vpop.f32.mrf.mxu0
      %v4407 = vadd.f32 %v4080, %v4406
      %v4408 = vpop.f32.mrf.mxu0
      %4409 = vmatprep.mubr.bf16.mxu0 0
      %4410 = vmatmul.mubr.bf16.gmra.mxu0 %v4058
      %v4411 = vpop.f32.mrf.mxu0
      %v4412 = vadd.f32 %v4080, %v4411
      %v4413 = vpop.f32.mrf.mxu0
      %v4414 = vpop.f32.mrf.mxu0
      %v4415 = vadd.f32 %v4080, %v4414
      %v4416 = vpop.f32.mrf.mxu0
      %4417 = vdwg.mxu0
      %v4418 = vmax.f32 %v4164, 0.0
      %v4419 = vmax.f32 %v4167, 0.0
      %v4420 = vmax.f32 %v4172, 0.0
      %v4421 = vmax.f32 %v4175, 0.0
      %v4422 = vmax.f32 %v4180, 0.0
      %v4423 = vmax.f32 %v4183, 0.0
      %v4424 = vmax.f32 %v4188, 0.0
      %v4425 = vmax.f32 %v4191, 0.0
      %v4426 = vmax.f32 %v4196, 0.0
      %v4427 = vmax.f32 %v4199, 0.0
      %v4428 = vmax.f32 %v4204, 0.0
      %v4429 = vmax.f32 %v4207, 0.0
      %v4430 = vmax.f32 %v4212, 0.0
      %v4431 = vmax.f32 %v4215, 0.0
      %v4432 = vmax.f32 %v4220, 0.0
      %v4433 = vmax.f32 %v4223, 0.0
      %v4434 = vmax.f32 %v4228, 0.0
      %v4435 = vmax.f32 %v4231, 0.0
      %v4436 = vmax.f32 %v4236, 0.0
      %v4437 = vmax.f32 %v4239, 0.0
      %v4438 = vmax.f32 %v4244, 0.0
      %v4439 = vmax.f32 %v4247, 0.0
      %v4440 = vmax.f32 %v4252, 0.0
      %v4441 = vmax.f32 %v4255, 0.0
      %v4442 = vmax.f32 %v4260, 0.0
      %v4443 = vmax.f32 %v4263, 0.0
      %v4444 = vmax.f32 %v4268, 0.0
      %v4445 = vmax.f32 %v4271, 0.0
      %v4446 = vmax.f32 %v4276, 0.0
      %v4447 = vmax.f32 %v4279, 0.0
      %v4448 = vmax.f32 %v4284, 0.0
      %v4449 = vmax.f32 %v4287, 0.0
      %v4450 = vmax.f32 %v4292, 0.0
      %v4451 = vmax.f32 %v4295, 0.0
      %v4452 = vmax.f32 %v4300, 0.0
      %v4453 = vmax.f32 %v4303, 0.0
      %v4454 = vmax.f32 %v4308, 0.0
      %v4455 = vmax.f32 %v4311, 0.0
      %v4456 = vmax.f32 %v4316, 0.0
      %v4457 = vmax.f32 %v4319, 0.0
      %v4458 = vmax.f32 %v4324, 0.0
      %v4459 = vmax.f32 %v4327, 0.0
      %v4460 = vmax.f32 %v4332, 0.0
      %v4461 = vmax.f32 %v4335, 0.0
      %v4462 = vmax.f32 %v4340, 0.0
      %v4463 = vmax.f32 %v4343, 0.0
      %v4464 = vmax.f32 %v4348, 0.0
      %v4465 = vmax.f32 %v4351, 0.0
      %v4466 = vmax.f32 %v4356, 0.0
      %v4467 = vmax.f32 %v4359, 0.0
      %v4468 = vmax.f32 %v4364, 0.0
      %v4469 = vmax.f32 %v4367, 0.0
      %v4470 = vmax.f32 %v4372, 0.0
      %v4471 = vmax.f32 %v4375, 0.0
      %v4472 = vmax.f32 %v4380, 0.0
      %v4473 = vmax.f32 %v4383, 0.0
      %v4474 = vmax.f32 %v4388, 0.0
      %v4475 = vmax.f32 %v4391, 0.0
      %v4476 = vmax.f32 %v4396, 0.0
      %v4477 = vmax.f32 %v4399, 0.0
      %v4478 = vmax.f32 %v4404, 0.0
      %v4479 = vmax.f32 %v4407, 0.0
      %v4480 = vmax.f32 %v4412, 0.0
      %v4481 = vmax.f32 %v4415, 0.0
      %v4482 = vpack.c.bf16 %v4419, %v4418
      %v4483 = vpack.c.bf16 %v4421, %v4420
      %v4484 = vpack.c.bf16 %v4423, %v4422
      %v4485 = vpack.c.bf16 %v4425, %v4424
      %v4486 = vpack.c.bf16 %v4427, %v4426
      %v4487 = vpack.c.bf16 %v4429, %v4428
      %v4488 = vpack.c.bf16 %v4431, %v4430
      %v4489 = vpack.c.bf16 %v4433, %v4432
      %v4490 = vpack.c.bf16 %v4435, %v4434
      %v4491 = vpack.c.bf16 %v4437, %v4436
      %v4492 = vpack.c.bf16 %v4439, %v4438
      %v4493 = vpack.c.bf16 %v4441, %v4440
      %v4494 = vpack.c.bf16 %v4443, %v4442
      %v4495 = vpack.c.bf16 %v4445, %v4444
      %v4496 = vpack.c.bf16 %v4447, %v4446
      %v4497 = vpack.c.bf16 %v4449, %v4448
      %v4498 = vpack.c.bf16 %v4451, %v4450
      %v4499 = vpack.c.bf16 %v4453, %v4452
      %v4500 = vpack.c.bf16 %v4455, %v4454
      %v4501 = vpack.c.bf16 %v4457, %v4456
      %v4502 = vpack.c.bf16 %v4459, %v4458
      %v4503 = vpack.c.bf16 %v4461, %v4460
      %v4504 = vpack.c.bf16 %v4463, %v4462
      %v4505 = vpack.c.bf16 %v4465, %v4464
      %v4506 = vpack.c.bf16 %v4467, %v4466
      %v4507 = vpack.c.bf16 %v4469, %v4468
      %v4508 = vpack.c.bf16 %v4471, %v4470
      %v4509 = vpack.c.bf16 %v4473, %v4472
      %v4510 = vpack.c.bf16 %v4475, %v4474
      %v4511 = vpack.c.bf16 %v4477, %v4476
      %v4512 = vpack.c.bf16 %v4479, %v4478
      %v4513 = vpack.c.bf16 %v4481, %v4480
      %v4514 = vld [vmem:[%s3] sm:$0xf]
      %v4515 = vld [vmem:[%s3 + $0x4] sm:$0xf]
      %v4516 = vld [vmem:[%s3 + $0x8] sm:$0xf]
      %v4517 = vld [vmem:[%s3 + $0xc] sm:$0xf]
      %v4518 = vld [vmem:[%s3 + $0x10] sm:$0xf]
      %v4519 = vld [vmem:[%s3 + $0x14] sm:$0xf]
      %v4520 = vld [vmem:[%s3 + $0x18] sm:$0xf]
      %v4521 = vld [vmem:[%s3 + $0x1c] sm:$0xf]
      %v4522 = vld [vmem:[%s3 + $0x20] sm:$0xf]
      %v4523 = vld [vmem:[%s3 + $0x24] sm:$0xf]
      %v4524 = vld [vmem:[%s3 + $0x28] sm:$0xf]
      %v4525 = vld [vmem:[%s3 + $0x2c] sm:$0xf]
      %v4526 = vld [vmem:[%s3 + $0x30] sm:$0xf]
      %v4527 = vld [vmem:[%s3 + $0x34] sm:$0xf]
      %v4528 = vld [vmem:[%s3 + $0x38] sm:$0xf]
      %v4529 = vld [vmem:[%s3 + $0x3c] sm:$0xf]
      %v4530 = vld [vmem:[%s5] sm:$0x1]
      %v4532 = vlaneseq
      %v4533 = vshrl.u32 %v4532, 7
      %v4534 = vsub.s32 0, %v4533
      %v4535 = vrot.slane %v4530, %v4534
      %v4553 = vunpack.c.l.b16 %v4514
      %v4554 = vunpack.c.l.b16 %v4515
      %v4555 = vunpack.c.l.b16 %v4516
      %v4556 = vunpack.c.l.b16 %v4517
      %v4557 = vunpack.c.l.b16 %v4518
      %v4558 = vunpack.c.l.b16 %v4519
      %v4559 = vunpack.c.l.b16 %v4520
      %v4560 = vunpack.c.l.b16 %v4521
      %v4561 = vunpack.c.l.b16 %v4522
      %v4562 = vunpack.c.l.b16 %v4523
      %v4563 = vunpack.c.l.b16 %v4524
      %v4564 = vunpack.c.l.b16 %v4525
      %v4565 = vunpack.c.l.b16 %v4526
      %v4566 = vunpack.c.l.b16 %v4527
      %v4567 = vunpack.c.l.b16 %v4528
      %v4568 = vunpack.c.l.b16 %v4529
      %v4569 = vpack.c.b16 %v4554, %v4553
      %v4570 = vpack.c.b16 %v4556, %v4555
      %v4571 = vpack.c.b16 %v4558, %v4557
      %v4572 = vpack.c.b16 %v4560, %v4559
      %v4573 = vpack.c.b16 %v4562, %v4561
      %v4574 = vpack.c.b16 %v4564, %v4563
      %v4575 = vpack.c.b16 %v4566, %v4565
      %v4576 = vpack.c.b16 %v4568, %v4567
      %4585 = vmatprep.subr.bf16.mxu0 0
      %4586 = vmatpush1.bf16.msra.mxu0 %v4576
      %4587 = vmatprep.subr.bf16.mxu0 0
      %4588 = vmatpush1.bf16.msra.mxu0 %v4575
      %4589 = vmatprep.subr.bf16.mxu0 0
      %4590 = vmatpush1.bf16.msra.mxu0 %v4574
      %4591 = vmatprep.subr.bf16.mxu0 0
      %4592 = vmatpush1.bf16.msra.mxu0 %v4573
      %4593 = vmatprep.subr.bf16.mxu0 0
      %4594 = vmatpush1.bf16.msra.mxu0 %v4572
      %4595 = vmatprep.subr.bf16.mxu0 0
      %4596 = vmatpush1.bf16.msra.mxu0 %v4571
      %4597 = vmatprep.subr.bf16.mxu0 0
      %4598 = vmatpush1.bf16.msra.mxu0 %v4570
      %4599 = vmatprep.subr.bf16.mxu0 0
      %4600 = vmatpush1.bf16.msra.mxu0 %v4569
      %4601 = vmatprep.subr.bf16.mxu0 0
      %4602 = vmatpush2.bf16.msra.mxu0 0
      %4603 = vmatprep.subr.bf16.mxu0 0
      %4604 = vmatpush2.bf16.msra.mxu0 0
      %4605 = vmatprep.subr.bf16.mxu0 0
      %4606 = vmatpush2.bf16.msra.mxu0 0
      %4607 = vmatprep.subr.bf16.mxu0 0
      %4608 = vmatpush2.bf16.msra.mxu0 0
      %4609 = vmatprep.subr.bf16.mxu0 0
      %4610 = vmatpush2.bf16.msra.mxu0 0
      %4611 = vmatprep.subr.bf16.mxu0 0
      %4612 = vmatpush2.bf16.msra.mxu0 0
      %4613 = vmatprep.subr.bf16.mxu0 0
      %4614 = vmatpush2.bf16.msra.mxu0 0
      %4615 = vmatprep.subr.bf16.mxu0 0
      %4616 = vmatpush2.bf16.msra.mxu0 0
      %4617 = vmatprep.mubr.bf16.mxu0 0
      %4618 = vmatmul.mubr.bf16.gmra.mxu0 %v4482
      %v4619 = vpop.f32.mrf.mxu0
      %v4620 = vadd.f32 %v4535, %v4619
      %v4621 = vpop.f32.mrf.mxu0
      %v4622 = vpop.f32.mrf.mxu0
      %v4623 = vadd.f32 %v4535, %v4622
      %v4624 = vpop.f32.mrf.mxu0
      %4625 = vmatprep.mubr.bf16.mxu0 0
      %4626 = vmatmul.mubr.bf16.gmra.mxu0 %v4483
      %v4627 = vpop.f32.mrf.mxu0
      %v4628 = vadd.f32 %v4535, %v4627
      %v4629 = vpop.f32.mrf.mxu0
      %v4630 = vpop.f32.mrf.mxu0
      %v4631 = vadd.f32 %v4535, %v4630
      %v4632 = vpop.f32.mrf.mxu0
      %4633 = vmatprep.mubr.bf16.mxu0 0
      %4634 = vmatmul.mubr.bf16.gmra.mxu0 %v4484
      %v4635 = vpop.f32.mrf.mxu0
      %v4636 = vadd.f32 %v4535, %v4635
      %v4637 = vpop.f32.mrf.mxu0
      %v4638 = vpop.f32.mrf.mxu0
      %v4639 = vadd.f32 %v4535, %v4638
      %v4640 = vpop.f32.mrf.mxu0
      %4641 = vmatprep.mubr.bf16.mxu0 0
      %4642 = vmatmul.mubr.bf16.gmra.mxu0 %v4485
      %v4643 = vpop.f32.mrf.mxu0
      %v4644 = vadd.f32 %v4535, %v4643
      %v4645 = vpop.f32.mrf.mxu0
      %v4646 = vpop.f32.mrf.mxu0
      %v4647 = vadd.f32 %v4535, %v4646
      %v4648 = vpop.f32.mrf.mxu0
      %4649 = vmatprep.mubr.bf16.mxu0 0
      %4650 = vmatmul.mubr.bf16.gmra.mxu0 %v4486
      %v4651 = vpop.f32.mrf.mxu0
      %v4652 = vadd.f32 %v4535, %v4651
      %v4653 = vpop.f32.mrf.mxu0
      %v4654 = vpop.f32.mrf.mxu0
      %v4655 = vadd.f32 %v4535, %v4654
      %v4656 = vpop.f32.mrf.mxu0
      %4657 = vmatprep.mubr.bf16.mxu0 0
      %4658 = vmatmul.mubr.bf16.gmra.mxu0 %v4487
      %v4659 = vpop.f32.mrf.mxu0
      %v4660 = vadd.f32 %v4535, %v4659
      %v4661 = vpop.f32.mrf.mxu0
      %v4662 = vpop.f32.mrf.mxu0
      %v4663 = vadd.f32 %v4535, %v4662
      %v4664 = vpop.f32.mrf.mxu0
      %4665 = vmatprep.mubr.bf16.mxu0 0
      %4666 = vmatmul.mubr.bf16.gmra.mxu0 %v4488
      %v4667 = vpop.f32.mrf.mxu0
      %v4668 = vadd.f32 %v4535, %v4667
      %v4669 = vpop.f32.mrf.mxu0
      %v4670 = vpop.f32.mrf.mxu0
      %v4671 = vadd.f32 %v4535, %v4670
      %v4672 = vpop.f32.mrf.mxu0
      %4673 = vmatprep.mubr.bf16.mxu0 0
      %4674 = vmatmul.mubr.bf16.gmra.mxu0 %v4489
      %v4675 = vpop.f32.mrf.mxu0
      %v4676 = vadd.f32 %v4535, %v4675
      %v4677 = vpop.f32.mrf.mxu0
      %v4678 = vpop.f32.mrf.mxu0
      %v4679 = vadd.f32 %v4535, %v4678
      %v4680 = vpop.f32.mrf.mxu0
      %4681 = vmatprep.mubr.bf16.mxu0 0
      %4682 = vmatmul.mubr.bf16.gmra.mxu0 %v4490
      %v4683 = vpop.f32.mrf.mxu0
      %v4684 = vadd.f32 %v4535, %v4683
      %v4685 = vpop.f32.mrf.mxu0
      %v4686 = vpop.f32.mrf.mxu0
      %v4687 = vadd.f32 %v4535, %v4686
      %v4688 = vpop.f32.mrf.mxu0
      %4689 = vmatprep.mubr.bf16.mxu0 0
      %4690 = vmatmul.mubr.bf16.gmra.mxu0 %v4491
      %v4691 = vpop.f32.mrf.mxu0
      %v4692 = vadd.f32 %v4535, %v4691
      %v4693 = vpop.f32.mrf.mxu0
      %v4694 = vpop.f32.mrf.mxu0
      %v4695 = vadd.f32 %v4535, %v4694
      %v4696 = vpop.f32.mrf.mxu0
      %4697 = vmatprep.mubr.bf16.mxu0 0
      %4698 = vmatmul.mubr.bf16.gmra.mxu0 %v4492
      %v4699 = vpop.f32.mrf.mxu0
      %v4700 = vadd.f32 %v4535, %v4699
      %v4701 = vpop.f32.mrf.mxu0
      %v4702 = vpop.f32.mrf.mxu0
      %v4703 = vadd.f32 %v4535, %v4702
      %v4704 = vpop.f32.mrf.mxu0
      %4705 = vmatprep.mubr.bf16.mxu0 0
      %4706 = vmatmul.mubr.bf16.gmra.mxu0 %v4493
      %v4707 = vpop.f32.mrf.mxu0
      %v4708 = vadd.f32 %v4535, %v4707
      %v4709 = vpop.f32.mrf.mxu0
      %v4710 = vpop.f32.mrf.mxu0
      %v4711 = vadd.f32 %v4535, %v4710
      %v4712 = vpop.f32.mrf.mxu0
      %4713 = vmatprep.mubr.bf16.mxu0 0
      %4714 = vmatmul.mubr.bf16.gmra.mxu0 %v4494
      %v4715 = vpop.f32.mrf.mxu0
      %v4716 = vadd.f32 %v4535, %v4715
      %v4717 = vpop.f32.mrf.mxu0
      %v4718 = vpop.f32.mrf.mxu0
      %v4719 = vadd.f32 %v4535, %v4718
      %v4720 = vpop.f32.mrf.mxu0
      %4721 = vmatprep.mubr.bf16.mxu0 0
      %4722 = vmatmul.mubr.bf16.gmra.mxu0 %v4495
      %v4723 = vpop.f32.mrf.mxu0
      %v4724 = vadd.f32 %v4535, %v4723
      %v4725 = vpop.f32.mrf.mxu0
      %v4726 = vpop.f32.mrf.mxu0
      %v4727 = vadd.f32 %v4535, %v4726
      %v4728 = vpop.f32.mrf.mxu0
      %4729 = vmatprep.mubr.bf16.mxu0 0
      %4730 = vmatmul.mubr.bf16.gmra.mxu0 %v4496
      %v4731 = vpop.f32.mrf.mxu0
      %v4732 = vadd.f32 %v4535, %v4731
      %v4733 = vpop.f32.mrf.mxu0
      %v4734 = vpop.f32.mrf.mxu0
      %v4735 = vadd.f32 %v4535, %v4734
      %v4736 = vpop.f32.mrf.mxu0
      %4737 = vmatprep.mubr.bf16.mxu0 0
      %4738 = vmatmul.mubr.bf16.gmra.mxu0 %v4497
      %v4739 = vpop.f32.mrf.mxu0
      %v4740 = vadd.f32 %v4535, %v4739
      %v4741 = vpop.f32.mrf.mxu0
      %v4742 = vpop.f32.mrf.mxu0
      %v4743 = vadd.f32 %v4535, %v4742
      %v4744 = vpop.f32.mrf.mxu0
      %4745 = vmatprep.mubr.bf16.mxu0 0
      %4746 = vmatmul.mubr.bf16.gmra.mxu0 %v4498
      %v4747 = vpop.f32.mrf.mxu0
      %v4748 = vadd.f32 %v4535, %v4747
      %v4749 = vpop.f32.mrf.mxu0
      %v4750 = vpop.f32.mrf.mxu0
      %v4751 = vadd.f32 %v4535, %v4750
      %v4752 = vpop.f32.mrf.mxu0
      %4753 = vmatprep.mubr.bf16.mxu0 0
      %4754 = vmatmul.mubr.bf16.gmra.mxu0 %v4499
      %v4755 = vpop.f32.mrf.mxu0
      %v4756 = vadd.f32 %v4535, %v4755
      %v4757 = vpop.f32.mrf.mxu0
      %v4758 = vpop.f32.mrf.mxu0
      %v4759 = vadd.f32 %v4535, %v4758
      %v4760 = vpop.f32.mrf.mxu0
      %4761 = vmatprep.mubr.bf16.mxu0 0
      %4762 = vmatmul.mubr.bf16.gmra.mxu0 %v4500
      %v4763 = vpop.f32.mrf.mxu0
      %v4764 = vadd.f32 %v4535, %v4763
      %v4765 = vpop.f32.mrf.mxu0
      %v4766 = vpop.f32.mrf.mxu0
      %v4767 = vadd.f32 %v4535, %v4766
      %v4768 = vpop.f32.mrf.mxu0
      %4769 = vmatprep.mubr.bf16.mxu0 0
      %4770 = vmatmul.mubr.bf16.gmra.mxu0 %v4501
      %v4771 = vpop.f32.mrf.mxu0
      %v4772 = vadd.f32 %v4535, %v4771
      %v4773 = vpop.f32.mrf.mxu0
      %v4774 = vpop.f32.mrf.mxu0
      %v4775 = vadd.f32 %v4535, %v4774
      %v4776 = vpop.f32.mrf.mxu0
      %4777 = vmatprep.mubr.bf16.mxu0 0
      %4778 = vmatmul.mubr.bf16.gmra.mxu0 %v4502
      %v4779 = vpop.f32.mrf.mxu0
      %v4780 = vadd.f32 %v4535, %v4779
      %v4781 = vpop.f32.mrf.mxu0
      %v4782 = vpop.f32.mrf.mxu0
      %v4783 = vadd.f32 %v4535, %v4782
      %v4784 = vpop.f32.mrf.mxu0
      %4785 = vmatprep.mubr.bf16.mxu0 0
      %4786 = vmatmul.mubr.bf16.gmra.mxu0 %v4503
      %v4787 = vpop.f32.mrf.mxu0
      %v4788 = vadd.f32 %v4535, %v4787
      %v4789 = vpop.f32.mrf.mxu0
      %v4790 = vpop.f32.mrf.mxu0
      %v4791 = vadd.f32 %v4535, %v4790
      %v4792 = vpop.f32.mrf.mxu0
      %4793 = vmatprep.mubr.bf16.mxu0 0
      %4794 = vmatmul.mubr.bf16.gmra.mxu0 %v4504
      %v4795 = vpop.f32.mrf.mxu0
      %v4796 = vadd.f32 %v4535, %v4795
      %v4797 = vpop.f32.mrf.mxu0
      %v4798 = vpop.f32.mrf.mxu0
      %v4799 = vadd.f32 %v4535, %v4798
      %v4800 = vpop.f32.mrf.mxu0
      %4801 = vmatprep.mubr.bf16.mxu0 0
      %4802 = vmatmul.mubr.bf16.gmra.mxu0 %v4505
      %v4803 = vpop.f32.mrf.mxu0
      %v4804 = vadd.f32 %v4535, %v4803
      %v4805 = vpop.f32.mrf.mxu0
      %v4806 = vpop.f32.mrf.mxu0
      %v4807 = vadd.f32 %v4535, %v4806
      %v4808 = vpop.f32.mrf.mxu0
      %4809 = vmatprep.mubr.bf16.mxu0 0
      %4810 = vmatmul.mubr.bf16.gmra.mxu0 %v4506
      %v4811 = vpop.f32.mrf.mxu0
      %v4812 = vadd.f32 %v4535, %v4811
      %v4813 = vpop.f32.mrf.mxu0
      %v4814 = vpop.f32.mrf.mxu0
      %v4815 = vadd.f32 %v4535, %v4814
      %v4816 = vpop.f32.mrf.mxu0
      %4817 = vmatprep.mubr.bf16.mxu0 0
      %4818 = vmatmul.mubr.bf16.gmra.mxu0 %v4507
      %v4819 = vpop.f32.mrf.mxu0
      %v4820 = vadd.f32 %v4535, %v4819
      %v4821 = vpop.f32.mrf.mxu0
      %v4822 = vpop.f32.mrf.mxu0
      %v4823 = vadd.f32 %v4535, %v4822
      %v4824 = vpop.f32.mrf.mxu0
      %4825 = vmatprep.mubr.bf16.mxu0 0
      %4826 = vmatmul.mubr.bf16.gmra.mxu0 %v4508
      %v4827 = vpop.f32.mrf.mxu0
      %v4828 = vadd.f32 %v4535, %v4827
      %v4829 = vpop.f32.mrf.mxu0
      %v4830 = vpop.f32.mrf.mxu0
      %v4831 = vadd.f32 %v4535, %v4830
      %v4832 = vpop.f32.mrf.mxu0
      %4833 = vmatprep.mubr.bf16.mxu0 0
      %4834 = vmatmul.mubr.bf16.gmra.mxu0 %v4509
      %v4835 = vpop.f32.mrf.mxu0
      %v4836 = vadd.f32 %v4535, %v4835
      %v4837 = vpop.f32.mrf.mxu0
      %v4838 = vpop.f32.mrf.mxu0
      %v4839 = vadd.f32 %v4535, %v4838
      %v4840 = vpop.f32.mrf.mxu0
      %4841 = vmatprep.mubr.bf16.mxu0 0
      %4842 = vmatmul.mubr.bf16.gmra.mxu0 %v4510
      %v4843 = vpop.f32.mrf.mxu0
      %v4844 = vadd.f32 %v4535, %v4843
      %v4845 = vpop.f32.mrf.mxu0
      %v4846 = vpop.f32.mrf.mxu0
      %v4847 = vadd.f32 %v4535, %v4846
      %v4848 = vpop.f32.mrf.mxu0
      %4849 = vmatprep.mubr.bf16.mxu0 0
      %4850 = vmatmul.mubr.bf16.gmra.mxu0 %v4511
      %v4851 = vpop.f32.mrf.mxu0
      %v4852 = vadd.f32 %v4535, %v4851
      %v4853 = vpop.f32.mrf.mxu0
      %v4854 = vpop.f32.mrf.mxu0
      %v4855 = vadd.f32 %v4535, %v4854
      %v4856 = vpop.f32.mrf.mxu0
      %4857 = vmatprep.mubr.bf16.mxu0 0
      %4858 = vmatmul.mubr.bf16.gmra.mxu0 %v4512
      %v4859 = vpop.f32.mrf.mxu0
      %v4860 = vadd.f32 %v4535, %v4859
      %v4861 = vpop.f32.mrf.mxu0
      %v4862 = vpop.f32.mrf.mxu0
      %v4863 = vadd.f32 %v4535, %v4862
      %v4864 = vpop.f32.mrf.mxu0
      %4865 = vmatprep.mubr.bf16.mxu0 0
      %4866 = vmatmul.mubr.bf16.gmra.mxu0 %v4513
      %v4867 = vpop.f32.mrf.mxu0
      %v4868 = vadd.f32 %v4535, %v4867
      %v4869 = vpop.f32.mrf.mxu0
      %v4870 = vpop.f32.mrf.mxu0
      %v4871 = vadd.f32 %v4535, %v4870
      %v4872 = vpop.f32.mrf.mxu0
      %4873 = vdwg.mxu0
      %4874 = vst.msk [vmem:[%s253] sm:$0xff] %vm486, %v4620
      %4875 = vst.msk [vmem:[%s253 + $0x8] sm:$0xff] %vm486, %v4623
      %4876 = vst.msk [vmem:[%s253 + $0x10] sm:$0xff] %vm486, %v4628
      %4877 = vst.msk [vmem:[%s253 + $0x18] sm:$0xff] %vm486, %v4631
      %4878 = vst.msk [vmem:[%s253 + $0x20] sm:$0xff] %vm486, %v4636
      %4879 = vst.msk [vmem:[%s253 + $0x28] sm:$0xff] %vm486, %v4639
      %4880 = vst.msk [vmem:[%s253 + $0x30] sm:$0xff] %vm486, %v4644
      %4881 = vst.msk [vmem:[%s253 + $0x38] sm:$0xff] %vm486, %v4647
      %4882 = vst.msk [vmem:[%s253 + $0x40] sm:$0xff] %vm486, %v4652
      %4883 = vst.msk [vmem:[%s253 + $0x48] sm:$0xff] %vm486, %v4655
      %4884 = vst.msk [vmem:[%s253 + $0x50] sm:$0xff] %vm486, %v4660
      %4885 = vst.msk [vmem:[%s253 + $0x58] sm:$0xff] %vm486, %v4663
      %4886 = vst.msk [vmem:[%s253 + $0x60] sm:$0xff] %vm486, %v4668
      %4887 = vst.msk [vmem:[%s253 + $0x68] sm:$0xff] %vm486, %v4671
      %4888 = vst.msk [vmem:[%s253 + $0x70] sm:$0xff] %vm486, %v4676
      %4889 = vst.msk [vmem:[%s253 + $0x78] sm:$0xff] %vm486, %v4679
      %4890 = vst.msk [vmem:[%s253 + $0x80] sm:$0xff] %vm486, %v4684
      %4891 = vst.msk [vmem:[%s253 + $0x88] sm:$0xff] %vm486, %v4687
      %4892 = vst.msk [vmem:[%s253 + $0x90] sm:$0xff] %vm486, %v4692
      %4893 = vst.msk [vmem:[%s253 + $0x98] sm:$0xff] %vm486, %v4695
      %4894 = vst.msk [vmem:[%s253 + $0xa0] sm:$0xff] %vm486, %v4700
      %4895 = vst.msk [vmem:[%s253 + $0xa8] sm:$0xff] %vm486, %v4703
      %4896 = vst.msk [vmem:[%s253 + $0xb0] sm:$0xff] %vm486, %v4708
      %4897 = vst.msk [vmem:[%s253 + $0xb8] sm:$0xff] %vm486, %v4711
      %4898 = vst.msk [vmem:[%s253 + $0xc0] sm:$0xff] %vm486, %v4716
      %4899 = vst.msk [vmem:[%s253 + $0xc8] sm:$0xff] %vm486, %v4719
      %4900 = vst.msk [vmem:[%s253 + $0xd0] sm:$0xff] %vm486, %v4724
      %4901 = vst.msk [vmem:[%s253 + $0xd8] sm:$0xff] %vm486, %v4727
      %4902 = vst.msk [vmem:[%s253 + $0xe0] sm:$0xff] %vm486, %v4732
      %4903 = vst.msk [vmem:[%s253 + $0xe8] sm:$0xff] %vm486, %v4735
      %4904 = vst.msk [vmem:[%s253 + $0xf0] sm:$0xff] %vm486, %v4740
      %4905 = vst.msk [vmem:[%s253 + $0xf8] sm:$0xff] %vm486, %v4743
      %4906 = vst.msk [vmem:[%s253 + $0x100] sm:$0xff] %vm486, %v4748
      %4907 = vst.msk [vmem:[%s253 + $0x108] sm:$0xff] %vm486, %v4751
      %4908 = vst.msk [vmem:[%s253 + $0x110] sm:$0xff] %vm486, %v4756
      %4909 = vst.msk [vmem:[%s253 + $0x118] sm:$0xff] %vm486, %v4759
      %4910 = vst.msk [vmem:[%s253 + $0x120] sm:$0xff] %vm486, %v4764
      %4911 = vst.msk [vmem:[%s253 + $0x128] sm:$0xff] %vm486, %v4767
      %4912 = vst.msk [vmem:[%s253 + $0x130] sm:$0xff] %vm486, %v4772
      %4913 = vst.msk [vmem:[%s253 + $0x138] sm:$0xff] %vm486, %v4775
      %4914 = vst.msk [vmem:[%s253 + $0x140] sm:$0xff] %vm486, %v4780
      %4915 = vst.msk [vmem:[%s253 + $0x148] sm:$0xff] %vm486, %v4783
      %4916 = vst.msk [vmem:[%s253 + $0x150] sm:$0xff] %vm486, %v4788
      %4917 = vst.msk [vmem:[%s253 + $0x158] sm:$0xff] %vm486, %v4791
      %4918 = vst.msk [vmem:[%s253 + $0x160] sm:$0xff] %vm486, %v4796
      %4919 = vst.msk [vmem:[%s253 + $0x168] sm:$0xff] %vm486, %v4799
      %4920 = vst.msk [vmem:[%s253 + $0x170] sm:$0xff] %vm486, %v4804
      %4921 = vst.msk [vmem:[%s253 + $0x178] sm:$0xff] %vm486, %v4807
      %4922 = vst.msk [vmem:[%s253 + $0x180] sm:$0xff] %vm486, %v4812
      %4923 = vst.msk [vmem:[%s253 + $0x188] sm:$0xff] %vm486, %v4815
      %4924 = vst.msk [vmem:[%s253 + $0x190] sm:$0xff] %vm486, %v4820
      %4925 = vst.msk [vmem:[%s253 + $0x198] sm:$0xff] %vm486, %v4823
      %4926 = vst.msk [vmem:[%s253 + $0x1a0] sm:$0xff] %vm486, %v4828
      %4927 = vst.msk [vmem:[%s253 + $0x1a8] sm:$0xff] %vm486, %v4831
      %4928 = vst.msk [vmem:[%s253 + $0x1b0] sm:$0xff] %vm486, %v4836
      %4929 = vst.msk [vmem:[%s253 + $0x1b8] sm:$0xff] %vm486, %v4839
      %4930 = vst.msk [vmem:[%s253 + $0x1c0] sm:$0xff] %vm486, %v4844
      %4931 = vst.msk [vmem:[%s253 + $0x1c8] sm:$0xff] %vm486, %v4847
      %4932 = vst.msk [vmem:[%s253 + $0x1d0] sm:$0xff] %vm486, %v4852
      %4933 = vst.msk [vmem:[%s253 + $0x1d8] sm:$0xff] %vm486, %v4855
      %4934 = vst.msk [vmem:[%s253 + $0x1e0] sm:$0xff] %vm486, %v4860
      %4935 = vst.msk [vmem:[%s253 + $0x1e8] sm:$0xff] %vm486, %v4863
      %4936 = vst.msk [vmem:[%s253 + $0x1f0] sm:$0xff] %vm486, %v4868
      %4937 = vst.msk [vmem:[%s253 + $0x1f8] sm:$0xff] %vm486, %v4871
      %s4938 = smul.u32 64, %s17
      %p4939 = scmp.lt.s32.totalorder %s4938, 127
      %s4940 = scalar_select %p4939, %s4938, 127
      %s4941 = smul.addr %s4940, 8
      %s4942 = scalar_lea.vmem %s6, %s4941
      // Predicated region
      $region45: #{nerf2_forward.1} parent=43 // pred_check
        %p4943 = pneg %p166
      $region46: #{nerf2_forward.1} parent=43 // pred_check_branch
        %4945 = sbr.rel (%p4943) target = $region48
      $region47: #{nerf2_forward.1} parent=43 // pred_region
        %s4946 = smul.u32 64, %s17
      $region48: #{nerf2_forward.1} parent=43 // pred_fallthru
        _
    $region44: #{nerf2_forward.1} parent=5 // pred_fallthru
      _
    %p4947 = scmp.le.s32.totalorder 2, %s12
    // Predicated region
    $region49: #{nerf2_forward.1} parent=5 // pred_check
      %p4948 = pneg %p4947
    $region50: #{nerf2_forward.1} parent=5 // pred_check_branch
      %4950 = sbr.rel (%p4948) target = $region52
    $region51: #{nerf2_forward.1} parent=5 // pred_region
      %s4951 = ssub.s32 %s12, 2
      // Predicated region
      $region53: #{nerf2_forward.1} parent=51 // pred_check
        %p4952 = pneg %p172
      $region54: #{nerf2_forward.1} parent=51 // pred_check_branch
        %4954 = sbr.rel (%p4952) target = $region56
      $region55: #{nerf2_forward.1} parent=51 // pred_region
        %s4955 = smul.u32 64, %s18
        %p4956 = scmp.lt.s32.totalorder %s4955, 127
        %s4957 = scalar_select %p4956, %s4955, 127
        %s4958 = smul.addr %s4957, 8
        %s4959 = scalar_lea.vmem %s6, %s4958
      $region56: #{nerf2_forward.1} parent=51 // pred_fallthru
        _
    $region52: #{nerf2_forward.1} parent=5 // pred_fallthru
      _
  $region6: #{nerf2_forward.1} parent=0 // loop_footer
    %s16 = sadd.s32 1, %s12
  $region7: #{nerf2_forward.1} parent=0 // loop_footer_branch
    %11 = sbr.rel target = $region3
  $region8: #{nerf2_forward.1} parent=0 // loop_exit
    _

</llo_original>
